<compile_context>
chip_gen: v7x
topology: tpu7x:2x2x1
jax: 0.10.0
libtpu: 0.0.40
codegen_flags: <defaults>
</compile_context>

<pallas_src>
import functools

import jax
import jax.numpy as jnp
from jax import lax
from jax.experimental import pallas as pl
from jax.experimental.pallas import tpu as pltpu

KSIZE = 4
STRIDE = 2
PAD = 1
BN_EPS = 1e-5
LEAKY_SLOPE = 0.01
VMEM_LIMIT = 32 * 1024 * 1024  # safe scoped limit on v5e/v6e (128 MiB) and v7x (64 MiB)


# ---------------------------------------------------------------------------
# Fused kernel bodies (grid=(1,): all operands are KB-scale and VMEM resident)
# ---------------------------------------------------------------------------
def _bn_lrelu_from_matmul(p_ref, w_ref, g_ref, b_ref, f_ref, ft_ref, inv_m):
    """Conv-as-matmul (block-diagonal weight) + training-mode BatchNorm + LeakyReLU.

    p_ref : (R, G*Kd) bf16  grouped im2col patches (G spatial positions folded in lanes)
    w_ref : (G*Kd, G*C) bf16  kron(I_G, W) block-diagonal conv weight
    g_ref, b_ref : (1, C) f32  BN gamma / beta
    f_ref : (G*C, C) f32  0/1 lane->channel fold matrix;  ft_ref: (C, G*C) its transpose
    Returns the (R, G*C) f32 activation (lane index = spatial_group * C + channel).
    """
    z = jnp.dot(p_ref[...], w_ref[...], preferred_element_type=jnp.float32)   # (R, G*C)
    # --- per-channel batch statistics (biased variance, two-pass) ---
    s = jnp.sum(z, axis=0, keepdims=True)                                      # (1, G*C)
    mean = jnp.dot(s, f_ref[...], preferred_element_type=jnp.float32) * inv_m  # (1, C)
    d = z - jnp.dot(mean, ft_ref[...], preferred_element_type=jnp.float32)     # centered
    q = jnp.sum(d * d, axis=0, keepdims=True)                                  # (1, G*C)
    var = jnp.dot(q, f_ref[...], preferred_element_type=jnp.float32) * inv_m   # (1, C)
    scale = g_ref[...] * lax.rsqrt(var + BN_EPS)                               # (1, C)
    zn = d * jnp.dot(scale, ft_ref[...], preferred_element_type=jnp.float32) \
         + jnp.dot(b_ref[...], ft_ref[...], preferred_element_type=jnp.float32)
    return jnp.where(zn >= 0, zn, LEAKY_SLOPE * zn)


def _conv_bn_lrelu_kernel(p_ref, w_ref, g_ref, b_ref, f_ref, ft_ref, o_ref, *, inv_m):
    act = _bn_lrelu_from_matmul(p_ref, w_ref, g_ref, b_ref, f_ref, ft_ref, inv_m)
    o_ref[...] = act.astype(o_ref.dtype)          # lane-dense bf16 store


def _conv_bn_lrelu_linear_kernel(p_ref, w_ref, g_ref, b_ref, f_ref, ft_ref,
                                 wl_ref, bl_ref, o_ref, *, inv_m):
    # Last conv layer: all OH*OW positions are folded into lanes, so `act` rows are the
    # NHWC-flattened features -> classifier Linear is one more matmul with fused bias.
    act = _bn_lrelu_from_matmul(p_ref, w_ref, g_ref, b_ref, f_ref, ft_ref, inv_m)
    y = jnp.dot(act.astype(jnp.bfloat16), wl_ref[...],
                preferred_element_type=jnp.float32)
    o_ref[...] = (y + bl_ref[...]).astype(o_ref.dtype)


# ---------------------------------------------------------------------------
# XLA glue: grouped im2col (TODO(synk): move into the kernel)
# ---------------------------------------------------------------------------
def _im2col_grouped(x_nhwc, group):
    """k=4, s=2, p=1 patches, with `group` consecutive output positions folded into the
    lane dimension: returns P2 of shape (N*OH*OW/group, group*k*k*Cin), plus OH, OW."""
    N, H, W, Cin = x_nhwc.shape
    OH = (H + 2 * PAD - KSIZE) // STRIDE + 1
    OW = (W + 2 * PAD - KSIZE) // STRIDE + 1
    xp = jnp.pad(x_nhwc, ((0, 0), (PAD, PAD), (PAD, PAD), (0, 0)))
    cols = [xp[:, ky:ky + STRIDE * OH:STRIDE, kx:kx + STRIDE * OW:STRIDE, :]
            for ky in range(KSIZE) for kx in range(KSIZE)]
    patches = jnp.stack(cols, axis=3).reshape(N * OH * OW, KSIZE * KSIZE * Cin)
    rows = (N * OH * OW) // group
    return patches.reshape(rows, group * KSIZE * KSIZE * Cin), OH, OW


# ---------------------------------------------------------------------------
# Layer wrappers (one pallas_call each)
# ---------------------------------------------------------------------------
def conv_bn_lrelu(x_nhwc, layer):
    w_big, gamma, beta, fold, foldT = layer
    N = x_nhwc.shape[0]
    C = gamma.shape[1]
    GC = w_big.shape[1]
    G = GC // C
    P2, OH, OW = _im2col_grouped(x_nhwc, G)
    R, GKd = P2.shape
    M = N * OH * OW
    kern = functools.partial(_conv_bn_lrelu_kernel, inv_m=1.0 / M)
    cost = pl.CostEstimate(flops=2 * R * GKd * GC + 10 * R * GC, transcendentals=C,
                           bytes_accessed=P2.size * 2 + w_big.size * 2 + R * GC * 2)
    out = pl.pallas_call(
        kern,
        out_shape=jax.ShapeDtypeStruct((R, GC), jnp.bfloat16),
        grid=(1,),
        in_specs=[pl.BlockSpec((R, GKd), lambda i: (0, 0)),
                  pl.BlockSpec((GKd, GC), lambda i: (0, 0)),
                  pl.BlockSpec((1, C), lambda i: (0, 0)),
                  pl.BlockSpec((1, C), lambda i: (0, 0)),
                  pl.BlockSpec((GC, C), lambda i: (0, 0)),
                  pl.BlockSpec((C, GC), lambda i: (0, 0))],
        out_specs=pl.BlockSpec((R, GC), lambda i: (0, 0)),
        compiler_params=pltpu.CompilerParams(
            dimension_semantics=("arbitrary",), vmem_limit_bytes=VMEM_LIMIT),
        cost_estimate=cost,
    )(P2, w_big, gamma, beta, fold, foldT)
    return out.reshape(N, OH, OW, C)        # free reshape of contiguous bf16 HBM data


def conv_bn_lrelu_linear(x_nhwc, layer, linear_params):
    w_big, gamma, beta, fold, foldT = layer
    w_lin_pad, b_lin_pad = linear_params            # (F, Opad) bf16, (1, Opad) f32
    N = x_nhwc.shape[0]
    C = gamma.shape[1]
    GC = w_big.shape[1]
    G = GC // C
    P2, OH, OW = _im2col_grouped(x_nhwc, G)
    R, GKd = P2.shape                                # R == N for the last layer
    Op = w_lin_pad.shape[1]
    M = N * OH * OW
    kern = functools.partial(_conv_bn_lrelu_linear_kernel, inv_m=1.0 / M)
    cost = pl.CostEstimate(
        flops=2 * R * GKd * GC + 2 * R * GC * Op + 10 * R * GC,
        transcendentals=C,
        bytes_accessed=P2.size * 2 + w_big.size * 2 + w_lin_pad.size * 2 + R * Op * 4)
    return pl.pallas_call(
        kern,
        out_shape=jax.ShapeDtypeStruct((R, Op), jnp.float32),
        grid=(1,),
        in_specs=[pl.BlockSpec((R, GKd), lambda i: (0, 0)),
                  pl.BlockSpec((GKd, GC), lambda i: (0, 0)),
                  pl.BlockSpec((1, C), lambda i: (0, 0)),
                  pl.BlockSpec((1, C), lambda i: (0, 0)),
                  pl.BlockSpec((GC, C), lambda i: (0, 0)),
                  pl.BlockSpec((C, GC), lambda i: (0, 0)),
                  pl.BlockSpec((GC, Op), lambda i: (0, 0)),
                  pl.BlockSpec((1, Op), lambda i: (0, 0))],
        out_specs=pl.BlockSpec((R, Op), lambda i: (0, 0)),
        compiler_params=pltpu.CompilerParams(
            dimension_semantics=("arbitrary",), vmem_limit_bytes=VMEM_LIMIT),
        cost_estimate=cost,
    )(P2, w_big, gamma, beta, fold, foldT, w_lin_pad, b_lin_pad)


# ---------------------------------------------------------------------------
# Parameters: PyTorch-layout init + one-time kernel-friendly preparation
# ---------------------------------------------------------------------------
def init_params(key, depth=4, dim_img=32, in_channels=3, start_channels=8,
                num_classes=525):
    params = {"conv": []}
    cin, cout = in_channels, start_channels
    for _ in range(depth):
        key, k1 = jax.random.split(key)
        w = jax.random.normal(k1, (cout, cin, KSIZE, KSIZE), jnp.float32) * 0.05
        gamma = jnp.ones((cout,), jnp.float32)   # PyTorch BatchNorm2d default init
        beta = jnp.zeros((cout,), jnp.float32)
        params["conv"].append((w, gamma, beta))
        cin, cout = cout, cout * 2
    feat = int((dim_img // 2 ** depth) ** 2 * cout // 2)
    key, k1, k2 = jax.random.split(key, 3)
    w_lin = jax.random.normal(k1, (num_classes, feat), jnp.float32) * 0.02
    b_lin = jax.random.normal(k2, (num_classes,), jnp.float32) * 0.01
    params["linear"] = (w_lin, b_lin)
    return params


def prepare_params(params, depth=4, dim_img=32):
    """One-time conversion to kernel-friendly operands:
      * conv weight -> block-diagonal kron(I_G, W) bf16 (G = #spatial positions folded
        into lanes: OW for inner layers, OH*OW for the last layer so G*C is 128/256),
      * 0/1 fold matrices for per-channel BN stats on the lane-dense layout,
      * linear weight with the PyTorch NCHW-flatten permutation folded into its rows,
        transposed, output dim padded to a 128 multiple, bf16; bias padded, f32."""
    conv = []
    n_layers = len(params["conv"])
    spatial = dim_img
    for li, (w, gamma, beta) in enumerate(params["conv"]):
        cout, cin, kh, kw = w.shape
        spatial //= 2                                # output spatial size of this layer
        group = spatial * spatial if li == n_layers - 1 else spatial
        w_mat = jnp.transpose(w, (2, 3, 1, 0)).reshape(kh * kw * cin, cout)
        w_big = jnp.kron(jnp.eye(group, dtype=jnp.float32), w_mat).astype(jnp.bfloat16)
        fold = jnp.kron(jnp.ones((group, 1), jnp.float32),
                        jnp.eye(cout, dtype=jnp.float32))          # (G*C, C)
        foldT = jnp.asarray(fold.T)                                 # (C, G*C)
        conv.append((w_big, gamma.reshape(1, cout), beta.reshape(1, cout), fold, foldT))

    w_lin, b_lin = params["linear"]
    O, F = w_lin.shape
    C_last = params["conv"][-1][0].shape[0]
    HS = dim_img // (2 ** depth)
    w_perm = jnp.transpose(w_lin.reshape(O, C_last, HS, HS), (2, 3, 1, 0)).reshape(F, O)
    Opad = ((O + 127) // 128) * 128
    w_pad = jnp.pad(w_perm, ((0, 0), (0, Opad - O))).astype(jnp.bfloat16)
    b_pad = jnp.pad(b_lin, (0, Opad - O)).astype(jnp.float32).reshape(1, Opad)
    return {"conv": tuple(conv), "linear": (w_pad, b_pad)}


# ---------------------------------------------------------------------------
# Forward pass (4 pallas_calls total)
# ---------------------------------------------------------------------------
def net_forward(x_nchw, prepared, *, num_classes=525):
    x = jnp.transpose(x_nchw, (0, 2, 3, 1)).astype(jnp.bfloat16)   # NCHW -> NHWC bf16
    conv_layers = prepared["conv"]
    for layer in conv_layers[:-1]:
        x = conv_bn_lrelu(x, layer)
    logits = conv_bn_lrelu_linear(x, conv_layers[-1], prepared["linear"])
    return logits[:, :num_classes]


# ---------------------------------------------------------------------------
# Pure-JAX f32 reference (PyTorch training-mode semantics) for a sanity check
# ---------------------------------------------------------------------------
def reference_forward(x_nchw, params):
    x = x_nchw.astype(jnp.float32)
    for (w, gamma, beta) in params["conv"]:
        y = lax.conv_general_dilated(
            x, w, window_strides=(STRIDE, STRIDE), padding=((PAD, PAD), (PAD, PAD)),
            dimension_numbers=("NCHW", "OIHW", "NCHW"),
            precision=lax.Precision.HIGHEST)
        mean = jnp.mean(y, axis=(0, 2, 3), keepdims=True)
        var = jnp.mean(jnp.square(y - mean), axis=(0, 2, 3), keepdims=True)
        yn = (y - mean) * lax.rsqrt(var + BN_EPS) * gamma.reshape(1, -1, 1, 1) \
             + beta.reshape(1, -1, 1, 1)
        x = jnp.where(yn >= 0, yn, LEAKY_SLOPE * yn)
    w_lin, b_lin = params["linear"]
    flat = x.reshape(x.shape[0], -1)                 # PyTorch NCHW flatten
    return jnp.dot(flat, w_lin.T, precision=lax.Precision.HIGHEST) + b_lin


# ---------------------------------------------------------------------------
if __name__ == "__main__":
    # Small shapes consistent with Net: depth=4, dim_img=32, in_channels=3, start_channels=8
    # -> channels 3->8->16->32->64, spatial 32->16->8->4->2, linear in_features = 2*2*64 = 256
    key = jax.random.PRNGKey(0)
    kx, kp = jax.random.split(key)
    x = jax.random.normal(kx, (2, 3, 32, 32), jnp.float32)          # NCHW like PyTorch
    params = init_params(kp, depth=4, dim_img=32, in_channels=3,
                         start_channels=8, num_classes=525)
    prepared = prepare_params(params, depth=4, dim_img=32)

    fwd = jax.jit(functools.partial(net_forward, num_classes=525))
    out = jax.block_until_ready(fwd(x, prepared))
    assert out.shape == (2, 525) and out.dtype == jnp.float32

    # Sanity check vs. f32 reference (bf16 MXU operands -> ~1e-2 level agreement).
    ref = jax.block_until_ready(reference_forward(x, params))
    rel_err = float(jnp.max(jnp.abs(out - ref)) / (jnp.max(jnp.abs(ref)) + 1e-6))
    assert rel_err < 0.15, f"kernel/reference mismatch: rel_err={rel_err}"
    print("KERNEL_OK")
</pallas_src>

<mosaic_0001>
module attributes {stable_mosaic.version = 11 : i64} {
  func.func @_conv_bn_lrelu_kernel(%arg0: i32, %arg1: memref<32x768xbf16, #tpu.memory_space<vmem>>, %arg2: memref<768x128xbf16, #tpu.memory_space<vmem>>, %arg3: memref<1x8xf32, #tpu.memory_space<vmem>>, %arg4: memref<1x8xf32, #tpu.memory_space<vmem>>, %arg5: memref<128x8xf32, #tpu.memory_space<vmem>>, %arg6: memref<8x128xf32, #tpu.memory_space<vmem>>, %arg7: memref<32x128xbf16, #tpu.memory_space<vmem>>) attributes {dimension_semantics = [#tpu.dimension_semantics<arbitrary>], iteration_bounds = array<i64: 1>, scalar_prefetch = 0 : i64, scratch_operands = 0 : i64, tpu.core_type = #tpu.core_type<tc>, window_params = [{pipeline_mode = #tpu.pipeline_mode<synchronous>, transform_indices = @transform_0, window_bounds = array<i64: 32, 768>}, {pipeline_mode = #tpu.pipeline_mode<synchronous>, transform_indices = @transform_1, window_bounds = array<i64: 768, 128>}, {pipeline_mode = #tpu.pipeline_mode<synchronous>, transform_indices = @transform_2, window_bounds = array<i64: 1, 8>}, {pipeline_mode = #tpu.pipeline_mode<synchronous>, transform_indices = @transform_3, window_bounds = array<i64: 1, 8>}, {pipeline_mode = #tpu.pipeline_mode<synchronous>, transform_indices = @transform_4, window_bounds = array<i64: 128, 8>}, {pipeline_mode = #tpu.pipeline_mode<synchronous>, transform_indices = @transform_5, window_bounds = array<i64: 8, 128>}, {pipeline_mode = #tpu.pipeline_mode<synchronous>, transform_indices = @transform_6, window_bounds = array<i64: 32, 128>}]} {
    %c0 = arith.constant 0 : index
    %c0_0 = arith.constant 0 : index
    %0 = vector.load %arg1[%c0, %c0_0] : memref<32x768xbf16, #tpu.memory_space<vmem>>, vector<32x768xbf16>
    %c0_1 = arith.constant 0 : index
    %c0_2 = arith.constant 0 : index
    %1 = vector.load %arg2[%c0_1, %c0_2] : memref<768x128xbf16, #tpu.memory_space<vmem>>, vector<768x128xbf16>
    %cst = arith.constant dense<0.000000e+00> : vector<32x128xf32>
    %2 = tpu.matmul %0, %1, %cst {dimension_numbers = #tpu.dot_dimension_numbers<[1], [0], [0], [1], [0, 0, 1, 1], [], []>} : vector<32x768xbf16>, vector<768x128xbf16>, vector<32x128xf32> -> vector<32x128xf32>
    %cst_3 = arith.constant dense<0.000000e+00> : vector<128xf32>
    %3 = vector.multi_reduction <add>, %2, %cst_3 [0] : vector<32x128xf32> to vector<128xf32>
    %4 = vector.shape_cast %3 : vector<128xf32> to vector<1x128xf32>
    %c0_4 = arith.constant 0 : index
    %c0_5 = arith.constant 0 : index
    %5 = vector.load %arg5[%c0_4, %c0_5] : memref<128x8xf32, #tpu.memory_space<vmem>>, vector<128x8xf32>
    %cst_6 = arith.constant dense<0.000000e+00> : vector<1x8xf32>
    %6 = tpu.matmul %4, %5, %cst_6 {dimension_numbers = #tpu.dot_dimension_numbers<[1], [0], [0], [1], [0, 0, 1, 1], [], []>} : vector<1x128xf32>, vector<128x8xf32>, vector<1x8xf32> -> vector<1x8xf32>
    %cst_7 = arith.constant 0.001953125 : f32
    %7 = vector.broadcast %cst_7 : f32 to vector<1x8xf32>
    %8 = arith.mulf %6, %7 : vector<1x8xf32>
    %c0_8 = arith.constant 0 : index
    %c0_9 = arith.constant 0 : index
    %9 = vector.load %arg6[%c0_8, %c0_9] : memref<8x128xf32, #tpu.memory_space<vmem>>, vector<8x128xf32>
    %cst_10 = arith.constant dense<0.000000e+00> : vector<1x128xf32>
    %10 = tpu.matmul %8, %9, %cst_10 {dimension_numbers = #tpu.dot_dimension_numbers<[1], [0], [0], [1], [0, 0, 1, 1], [], []>} : vector<1x8xf32>, vector<8x128xf32>, vector<1x128xf32> -> vector<1x128xf32>
    %11 = vector.broadcast %10 : vector<1x128xf32> to vector<32x128xf32>
    %12 = arith.subf %2, %11 : vector<32x128xf32>
    %13 = arith.mulf %12, %12 : vector<32x128xf32>
    %cst_11 = arith.constant dense<0.000000e+00> : vector<128xf32>
    %14 = vector.multi_reduction <add>, %13, %cst_11 [0] : vector<32x128xf32> to vector<128xf32>
    %15 = vector.shape_cast %14 : vector<128xf32> to vector<1x128xf32>
    %c0_12 = arith.constant 0 : index
    %c0_13 = arith.constant 0 : index
    %16 = vector.load %arg5[%c0_12, %c0_13] : memref<128x8xf32, #tpu.memory_space<vmem>>, vector<128x8xf32>
    %cst_14 = arith.constant dense<0.000000e+00> : vector<1x8xf32>
    %17 = tpu.matmul %15, %16, %cst_14 {dimension_numbers = #tpu.dot_dimension_numbers<[1], [0], [0], [1], [0, 0, 1, 1], [], []>} : vector<1x128xf32>, vector<128x8xf32>, vector<1x8xf32> -> vector<1x8xf32>
    %cst_15 = arith.constant 0.001953125 : f32
    %18 = vector.broadcast %cst_15 : f32 to vector<1x8xf32>
    %19 = arith.mulf %17, %18 : vector<1x8xf32>
    %c0_16 = arith.constant 0 : index
    %c0_17 = arith.constant 0 : index
    %20 = vector.load %arg3[%c0_16, %c0_17] : memref<1x8xf32, #tpu.memory_space<vmem>>, vector<1x8xf32>
    %cst_18 = arith.constant 9.99999974E-6 : f32
    %21 = vector.broadcast %cst_18 : f32 to vector<1x8xf32>
    %22 = arith.addf %19, %21 : vector<1x8xf32>
    %23 = math.rsqrt %22 : vector<1x8xf32>
    %24 = arith.mulf %20, %23 : vector<1x8xf32>
    %c0_19 = arith.constant 0 : index
    %c0_20 = arith.constant 0 : index
    %25 = vector.load %arg6[%c0_19, %c0_20] : memref<8x128xf32, #tpu.memory_space<vmem>>, vector<8x128xf32>
    %cst_21 = arith.constant dense<0.000000e+00> : vector<1x128xf32>
    %26 = tpu.matmul %24, %25, %cst_21 {dimension_numbers = #tpu.dot_dimension_numbers<[1], [0], [0], [1], [0, 0, 1, 1], [], []>} : vector<1x8xf32>, vector<8x128xf32>, vector<1x128xf32> -> vector<1x128xf32>
    %27 = vector.broadcast %26 : vector<1x128xf32> to vector<32x128xf32>
    %28 = arith.mulf %12, %27 : vector<32x128xf32>
    %c0_22 = arith.constant 0 : index
    %c0_23 = arith.constant 0 : index
    %29 = vector.load %arg4[%c0_22, %c0_23] : memref<1x8xf32, #tpu.memory_space<vmem>>, vector<1x8xf32>
    %c0_24 = arith.constant 0 : index
    %c0_25 = arith.constant 0 : index
    %30 = vector.load %arg6[%c0_24, %c0_25] : memref<8x128xf32, #tpu.memory_space<vmem>>, vector<8x128xf32>
    %cst_26 = arith.constant dense<0.000000e+00> : vector<1x128xf32>
    %31 = tpu.matmul %29, %30, %cst_26 {dimension_numbers = #tpu.dot_dimension_numbers<[1], [0], [0], [1], [0, 0, 1, 1], [], []>} : vector<1x8xf32>, vector<8x128xf32>, vector<1x128xf32> -> vector<1x128xf32>
    %32 = vector.broadcast %31 : vector<1x128xf32> to vector<32x128xf32>
    %33 = arith.addf %28, %32 : vector<32x128xf32>
    %cst_27 = arith.constant 0.000000e+00 : f32
    %34 = vector.broadcast %cst_27 : f32 to vector<32x128xf32>
    %35 = arith.cmpf oge, %33, %34 : vector<32x128xf32>
    %cst_28 = arith.constant 0.00999999977 : f32
    %36 = vector.broadcast %cst_28 : f32 to vector<32x128xf32>
    %37 = arith.mulf %36, %33 : vector<32x128xf32>
    %38 = arith.select %35, %33, %37 : vector<32x128xi1>, vector<32x128xf32>
    %39 = arith.truncf %38 : vector<32x128xf32> to vector<32x128xbf16>
    %c0_29 = arith.constant 0 : index
    %c0_30 = arith.constant 0 : index
    %40 = vector.load %arg7[%c0_29, %c0_30] : memref<32x128xbf16, #tpu.memory_space<vmem>>, vector<32x128xbf16>
    tpu.vector_store %arg7[%c0_29, %c0_30], %39 {strides = array<i32>} : memref<32x128xbf16, #tpu.memory_space<vmem>>, vector<32x128xbf16>,
    return
  }
  func.func @transform_0(%arg0: i32) -> (i32, i32) {
    %c0_i32 = arith.constant 0 : i32
    %c0_i32_0 = arith.constant 0 : i32
    %c0_i32_1 = arith.constant 0 : i32
    return %c0_i32, %c0_i32_0 : i32, i32
  }
  func.func @transform_1(%arg0: i32) -> (i32, i32) {
    %c0_i32 = arith.constant 0 : i32
    %c0_i32_0 = arith.constant 0 : i32
    %c0_i32_1 = arith.constant 0 : i32
    return %c0_i32, %c0_i32_0 : i32, i32
  }
  func.func @transform_2(%arg0: i32) -> (i32, i32) {
    %c0_i32 = arith.constant 0 : i32
    %c0_i32_0 = arith.constant 0 : i32
    %c0_i32_1 = arith.constant 0 : i32
    return %c0_i32, %c0_i32_0 : i32, i32
  }
  func.func @transform_3(%arg0: i32) -> (i32, i32) {
    %c0_i32 = arith.constant 0 : i32
    %c0_i32_0 = arith.constant 0 : i32
    %c0_i32_1 = arith.constant 0 : i32
    return %c0_i32, %c0_i32_0 : i32, i32
  }
  func.func @transform_4(%arg0: i32) -> (i32, i32) {
    %c0_i32 = arith.constant 0 : i32
    %c0_i32_0 = arith.constant 0 : i32
    %c0_i32_1 = arith.constant 0 : i32
    return %c0_i32, %c0_i32_0 : i32, i32
  }
  func.func @transform_5(%arg0: i32) -> (i32, i32) {
    %c0_i32 = arith.constant 0 : i32
    %c0_i32_0 = arith.constant 0 : i32
    %c0_i32_1 = arith.constant 0 : i32
    return %c0_i32, %c0_i32_0 : i32, i32
  }
  func.func @transform_6(%arg0: i32) -> (i32, i32) {
    %c0_i32 = arith.constant 0 : i32
    %c0_i32_0 = arith.constant 0 : i32
    %c0_i32_1 = arith.constant 0 : i32
    return %c0_i32, %c0_i32_0 : i32, i32
  }
}

module attributes {stable_mosaic.version = 11 : i64} {
  func.func @_conv_bn_lrelu_kernel(%arg0: i32, %arg1: memref<16x1024xbf16, #tpu.memory_space<vmem>>, %arg2: memref<1024x128xbf16, #tpu.memory_space<vmem>>, %arg3: memref<1x16xf32, #tpu.memory_space<vmem>>, %arg4: memref<1x16xf32, #tpu.memory_space<vmem>>, %arg5: memref<128x16xf32, #tpu.memory_space<vmem>>, %arg6: memref<16x128xf32, #tpu.memory_space<vmem>>, %arg7: memref<16x128xbf16, #tpu.memory_space<vmem>>) attributes {dimension_semantics = [#tpu.dimension_semantics<arbitrary>], iteration_bounds = array<i64: 1>, scalar_prefetch = 0 : i64, scratch_operands = 0 : i64, tpu.core_type = #tpu.core_type<tc>, window_params = [{pipeline_mode = #tpu.pipeline_mode<synchronous>, transform_indices = @transform_0, window_bounds = array<i64: 16, 1024>}, {pipeline_mode = #tpu.pipeline_mode<synchronous>, transform_indices = @transform_1, window_bounds = array<i64: 1024, 128>}, {pipeline_mode = #tpu.pipeline_mode<synchronous>, transform_indices = @transform_2, window_bounds = array<i64: 1, 16>}, {pipeline_mode = #tpu.pipeline_mode<synchronous>, transform_indices = @transform_3, window_bounds = array<i64: 1, 16>}, {pipeline_mode = #tpu.pipeline_mode<synchronous>, transform_indices = @transform_4, window_bounds = array<i64: 128, 16>}, {pipeline_mode = #tpu.pipeline_mode<synchronous>, transform_indices = @transform_5, window_bounds = array<i64: 16, 128>}, {pipeline_mode = #tpu.pipeline_mode<synchronous>, transform_indices = @transform_6, window_bounds = array<i64: 16, 128>}]} {
    %c0 = arith.constant 0 : index
    %c0_0 = arith.constant 0 : index
    %0 = vector.load %arg1[%c0, %c0_0] : memref<16x1024xbf16, #tpu.memory_space<vmem>>, vector<16x1024xbf16>
    %c0_1 = arith.constant 0 : index
    %c0_2 = arith.constant 0 : index
    %1 = vector.load %arg2[%c0_1, %c0_2] : memref<1024x128xbf16, #tpu.memory_space<vmem>>, vector<1024x128xbf16>
    %cst = arith.constant dense<0.000000e+00> : vector<16x128xf32>
    %2 = tpu.matmul %0, %1, %cst {dimension_numbers = #tpu.dot_dimension_numbers<[1], [0], [0], [1], [0, 0, 1, 1], [], []>} : vector<16x1024xbf16>, vector<1024x128xbf16>, vector<16x128xf32> -> vector<16x128xf32>
    %cst_3 = arith.constant dense<0.000000e+00> : vector<128xf32>
    %3 = vector.multi_reduction <add>, %2, %cst_3 [0] : vector<16x128xf32> to vector<128xf32>
    %4 = vector.shape_cast %3 : vector<128xf32> to vector<1x128xf32>
    %c0_4 = arith.constant 0 : index
    %c0_5 = arith.constant 0 : index
    %5 = vector.load %arg5[%c0_4, %c0_5] : memref<128x16xf32, #tpu.memory_space<vmem>>, vector<128x16xf32>
    %cst_6 = arith.constant dense<0.000000e+00> : vector<1x16xf32>
    %6 = tpu.matmul %4, %5, %cst_6 {dimension_numbers = #tpu.dot_dimension_numbers<[1], [0], [0], [1], [0, 0, 1, 1], [], []>} : vector<1x128xf32>, vector<128x16xf32>, vector<1x16xf32> -> vector<1x16xf32>
    %cst_7 = arith.constant 7.812500e-03 : f32
    %7 = vector.broadcast %cst_7 : f32 to vector<1x16xf32>
    %8 = arith.mulf %6, %7 : vector<1x16xf32>
    %c0_8 = arith.constant 0 : index
    %c0_9 = arith.constant 0 : index
    %9 = vector.load %arg6[%c0_8, %c0_9] : memref<16x128xf32, #tpu.memory_space<vmem>>, vector<16x128xf32>
    %cst_10 = arith.constant dense<0.000000e+00> : vector<1x128xf32>
    %10 = tpu.matmul %8, %9, %cst_10 {dimension_numbers = #tpu.dot_dimension_numbers<[1], [0], [0], [1], [0, 0, 1, 1], [], []>} : vector<1x16xf32>, vector<16x128xf32>, vector<1x128xf32> -> vector<1x128xf32>
    %11 = vector.broadcast %10 : vector<1x128xf32> to vector<16x128xf32>
    %12 = arith.subf %2, %11 : vector<16x128xf32>
    %13 = arith.mulf %12, %12 : vector<16x128xf32>
    %cst_11 = arith.constant dense<0.000000e+00> : vector<128xf32>
    %14 = vector.multi_reduction <add>, %13, %cst_11 [0] : vector<16x128xf32> to vector<128xf32>
    %15 = vector.shape_cast %14 : vector<128xf32> to vector<1x128xf32>
    %c0_12 = arith.constant 0 : index
    %c0_13 = arith.constant 0 : index
    %16 = vector.load %arg5[%c0_12, %c0_13] : memref<128x16xf32, #tpu.memory_space<vmem>>, vector<128x16xf32>
    %cst_14 = arith.constant dense<0.000000e+00> : vector<1x16xf32>
    %17 = tpu.matmul %15, %16, %cst_14 {dimension_numbers = #tpu.dot_dimension_numbers<[1], [0], [0], [1], [0, 0, 1, 1], [], []>} : vector<1x128xf32>, vector<128x16xf32>, vector<1x16xf32> -> vector<1x16xf32>
    %cst_15 = arith.constant 7.812500e-03 : f32
    %18 = vector.broadcast %cst_15 : f32 to vector<1x16xf32>
    %19 = arith.mulf %17, %18 : vector<1x16xf32>
    %c0_16 = arith.constant 0 : index
    %c0_17 = arith.constant 0 : index
    %20 = vector.load %arg3[%c0_16, %c0_17] : memref<1x16xf32, #tpu.memory_space<vmem>>, vector<1x16xf32>
    %cst_18 = arith.constant 9.99999974E-6 : f32
    %21 = vector.broadcast %cst_18 : f32 to vector<1x16xf32>
    %22 = arith.addf %19, %21 : vector<1x16xf32>
    %23 = math.rsqrt %22 : vector<1x16xf32>
    %24 = arith.mulf %20, %23 : vector<1x16xf32>
    %c0_19 = arith.constant 0 : index
    %c0_20 = arith.constant 0 : index
    %25 = vector.load %arg6[%c0_19, %c0_20] : memref<16x128xf32, #tpu.memory_space<vmem>>, vector<16x128xf32>
    %cst_21 = arith.constant dense<0.000000e+00> : vector<1x128xf32>
    %26 = tpu.matmul %24, %25, %cst_21 {dimension_numbers = #tpu.dot_dimension_numbers<[1], [0], [0], [1], [0, 0, 1, 1], [], []>} : vector<1x16xf32>, vector<16x128xf32>, vector<1x128xf32> -> vector<1x128xf32>
    %27 = vector.broadcast %26 : vector<1x128xf32> to vector<16x128xf32>
    %28 = arith.mulf %12, %27 : vector<16x128xf32>
    %c0_22 = arith.constant 0 : index
    %c0_23 = arith.constant 0 : index
    %29 = vector.load %arg4[%c0_22, %c0_23] : memref<1x16xf32, #tpu.memory_space<vmem>>, vector<1x16xf32>
    %c0_24 = arith.constant 0 : index
    %c0_25 = arith.constant 0 : index
    %30 = vector.load %arg6[%c0_24, %c0_25] : memref<16x128xf32, #tpu.memory_space<vmem>>, vector<16x128xf32>
    %cst_26 = arith.constant dense<0.000000e+00> : vector<1x128xf32>
    %31 = tpu.matmul %29, %30, %cst_26 {dimension_numbers = #tpu.dot_dimension_numbers<[1], [0], [0], [1], [0, 0, 1, 1], [], []>} : vector<1x16xf32>, vector<16x128xf32>, vector<1x128xf32> -> vector<1x128xf32>
    %32 = vector.broadcast %31 : vector<1x128xf32> to vector<16x128xf32>
    %33 = arith.addf %28, %32 : vector<16x128xf32>
    %cst_27 = arith.constant 0.000000e+00 : f32
    %34 = vector.broadcast %cst_27 : f32 to vector<16x128xf32>
    %35 = arith.cmpf oge, %33, %34 : vector<16x128xf32>
    %cst_28 = arith.constant 0.00999999977 : f32
    %36 = vector.broadcast %cst_28 : f32 to vector<16x128xf32>
    %37 = arith.mulf %36, %33 : vector<16x128xf32>
    %38 = arith.select %35, %33, %37 : vector<16x128xi1>, vector<16x128xf32>
    %39 = arith.truncf %38 : vector<16x128xf32> to vector<16x128xbf16>
    %c0_29 = arith.constant 0 : index
    %c0_30 = arith.constant 0 : index
    %40 = vector.load %arg7[%c0_29, %c0_30] : memref<16x128xbf16, #tpu.memory_space<vmem>>, vector<16x128xbf16>
    tpu.vector_store %arg7[%c0_29, %c0_30], %39 {strides = array<i32>} : memref<16x128xbf16, #tpu.memory_space<vmem>>, vector<16x128xbf16>,
    return
  }
  func.func @transform_0(%arg0: i32) -> (i32, i32) {
    %c0_i32 = arith.constant 0 : i32
    %c0_i32_0 = arith.constant 0 : i32
    %c0_i32_1 = arith.constant 0 : i32
    return %c0_i32, %c0_i32_0 : i32, i32
  }
  func.func @transform_1(%arg0: i32) -> (i32, i32) {
    %c0_i32 = arith.constant 0 : i32
    %c0_i32_0 = arith.constant 0 : i32
    %c0_i32_1 = arith.constant 0 : i32
    return %c0_i32, %c0_i32_0 : i32, i32
  }
  func.func @transform_2(%arg0: i32) -> (i32, i32) {
    %c0_i32 = arith.constant 0 : i32
    %c0_i32_0 = arith.constant 0 : i32
    %c0_i32_1 = arith.constant 0 : i32
    return %c0_i32, %c0_i32_0 : i32, i32
  }
  func.func @transform_3(%arg0: i32) -> (i32, i32) {
    %c0_i32 = arith.constant 0 : i32
    %c0_i32_0 = arith.constant 0 : i32
    %c0_i32_1 = arith.constant 0 : i32
    return %c0_i32, %c0_i32_0 : i32, i32
  }
  func.func @transform_4(%arg0: i32) -> (i32, i32) {
    %c0_i32 = arith.constant 0 : i32
    %c0_i32_0 = arith.constant 0 : i32
    %c0_i32_1 = arith.constant 0 : i32
    return %c0_i32, %c0_i32_0 : i32, i32
  }
  func.func @transform_5(%arg0: i32) -> (i32, i32) {
    %c0_i32 = arith.constant 0 : i32
    %c0_i32_0 = arith.constant 0 : i32
    %c0_i32_1 = arith.constant 0 : i32
    return %c0_i32, %c0_i32_0 : i32, i32
  }
  func.func @transform_6(%arg0: i32) -> (i32, i32) {
    %c0_i32 = arith.constant 0 : i32
    %c0_i32_0 = arith.constant 0 : i32
    %c0_i32_1 = arith.constant 0 : i32
    return %c0_i32, %c0_i32_0 : i32, i32
  }
}

module attributes {stable_mosaic.version = 11 : i64} {
  func.func @_conv_bn_lrelu_kernel(%arg0: i32, %arg1: memref<8x1024xbf16, #tpu.memory_space<vmem>>, %arg2: memref<1024x128xbf16, #tpu.memory_space<vmem>>, %arg3: memref<1x32xf32, #tpu.memory_space<vmem>>, %arg4: memref<1x32xf32, #tpu.memory_space<vmem>>, %arg5: memref<128x32xf32, #tpu.memory_space<vmem>>, %arg6: memref<32x128xf32, #tpu.memory_space<vmem>>, %arg7: memref<8x128xbf16, #tpu.memory_space<vmem>>) attributes {dimension_semantics = [#tpu.dimension_semantics<arbitrary>], iteration_bounds = array<i64: 1>, scalar_prefetch = 0 : i64, scratch_operands = 0 : i64, tpu.core_type = #tpu.core_type<tc>, window_params = [{pipeline_mode = #tpu.pipeline_mode<synchronous>, transform_indices = @transform_0, window_bounds = array<i64: 8, 1024>}, {pipeline_mode = #tpu.pipeline_mode<synchronous>, transform_indices = @transform_1, window_bounds = array<i64: 1024, 128>}, {pipeline_mode = #tpu.pipeline_mode<synchronous>, transform_indices = @transform_2, window_bounds = array<i64: 1, 32>}, {pipeline_mode = #tpu.pipeline_mode<synchronous>, transform_indices = @transform_3, window_bounds = array<i64: 1, 32>}, {pipeline_mode = #tpu.pipeline_mode<synchronous>, transform_indices = @transform_4, window_bounds = array<i64: 128, 32>}, {pipeline_mode = #tpu.pipeline_mode<synchronous>, transform_indices = @transform_5, window_bounds = array<i64: 32, 128>}, {pipeline_mode = #tpu.pipeline_mode<synchronous>, transform_indices = @transform_6, window_bounds = array<i64: 8, 128>}]} {
    %c0 = arith.constant 0 : index
    %c0_0 = arith.constant 0 : index
    %0 = vector.load %arg1[%c0, %c0_0] : memref<8x1024xbf16, #tpu.memory_space<vmem>>, vector<8x1024xbf16>
    %c0_1 = arith.constant 0 : index
    %c0_2 = arith.constant 0 : index
    %1 = vector.load %arg2[%c0_1, %c0_2] : memref<1024x128xbf16, #tpu.memory_space<vmem>>, vector<1024x128xbf16>
    %cst = arith.constant dense<0.000000e+00> : vector<8x128xf32>
    %2 = tpu.matmul %0, %1, %cst {dimension_numbers = #tpu.dot_dimension_numbers<[1], [0], [0], [1], [0, 0, 1, 1], [], []>} : vector<8x1024xbf16>, vector<1024x128xbf16>, vector<8x128xf32> -> vector<8x128xf32>
    %cst_3 = arith.constant dense<0.000000e+00> : vector<128xf32>
    %3 = vector.multi_reduction <add>, %2, %cst_3 [0] : vector<8x128xf32> to vector<128xf32>
    %4 = vector.shape_cast %3 : vector<128xf32> to vector<1x128xf32>
    %c0_4 = arith.constant 0 : index
    %c0_5 = arith.constant 0 : index
    %5 = vector.load %arg5[%c0_4, %c0_5] : memref<128x32xf32, #tpu.memory_space<vmem>>, vector<128x32xf32>
    %cst_6 = arith.constant dense<0.000000e+00> : vector<1x32xf32>
    %6 = tpu.matmul %4, %5, %cst_6 {dimension_numbers = #tpu.dot_dimension_numbers<[1], [0], [0], [1], [0, 0, 1, 1], [], []>} : vector<1x128xf32>, vector<128x32xf32>, vector<1x32xf32> -> vector<1x32xf32>
    %cst_7 = arith.constant 3.125000e-02 : f32
    %7 = vector.broadcast %cst_7 : f32 to vector<1x32xf32>
    %8 = arith.mulf %6, %7 : vector<1x32xf32>
    %c0_8 = arith.constant 0 : index
    %c0_9 = arith.constant 0 : index
    %9 = vector.load %arg6[%c0_8, %c0_9] : memref<32x128xf32, #tpu.memory_space<vmem>>, vector<32x128xf32>
    %cst_10 = arith.constant dense<0.000000e+00> : vector<1x128xf32>
    %10 = tpu.matmul %8, %9, %cst_10 {dimension_numbers = #tpu.dot_dimension_numbers<[1], [0], [0], [1], [0, 0, 1, 1], [], []>} : vector<1x32xf32>, vector<32x128xf32>, vector<1x128xf32> -> vector<1x128xf32>
    %11 = vector.broadcast %10 : vector<1x128xf32> to vector<8x128xf32>
    %12 = arith.subf %2, %11 : vector<8x128xf32>
    %13 = arith.mulf %12, %12 : vector<8x128xf32>
    %cst_11 = arith.constant dense<0.000000e+00> : vector<128xf32>
    %14 = vector.multi_reduction <add>, %13, %cst_11 [0] : vector<8x128xf32> to vector<128xf32>
    %15 = vector.shape_cast %14 : vector<128xf32> to vector<1x128xf32>
    %c0_12 = arith.constant 0 : index
    %c0_13 = arith.constant 0 : index
    %16 = vector.load %arg5[%c0_12, %c0_13] : memref<128x32xf32, #tpu.memory_space<vmem>>, vector<128x32xf32>
    %cst_14 = arith.constant dense<0.000000e+00> : vector<1x32xf32>
    %17 = tpu.matmul %15, %16, %cst_14 {dimension_numbers = #tpu.dot_dimension_numbers<[1], [0], [0], [1], [0, 0, 1, 1], [], []>} : vector<1x128xf32>, vector<128x32xf32>, vector<1x32xf32> -> vector<1x32xf32>
    %cst_15 = arith.constant 3.125000e-02 : f32
    %18 = vector.broadcast %cst_15 : f32 to vector<1x32xf32>
    %19 = arith.mulf %17, %18 : vector<1x32xf32>
    %c0_16 = arith.constant 0 : index
    %c0_17 = arith.constant 0 : index
    %20 = vector.load %arg3[%c0_16, %c0_17] : memref<1x32xf32, #tpu.memory_space<vmem>>, vector<1x32xf32>
    %cst_18 = arith.constant 9.99999974E-6 : f32
    %21 = vector.broadcast %cst_18 : f32 to vector<1x32xf32>
    %22 = arith.addf %19, %21 : vector<1x32xf32>
    %23 = math.rsqrt %22 : vector<1x32xf32>
    %24 = arith.mulf %20, %23 : vector<1x32xf32>
    %c0_19 = arith.constant 0 : index
    %c0_20 = arith.constant 0 : index
    %25 = vector.load %arg6[%c0_19, %c0_20] : memref<32x128xf32, #tpu.memory_space<vmem>>, vector<32x128xf32>
    %cst_21 = arith.constant dense<0.000000e+00> : vector<1x128xf32>
    %26 = tpu.matmul %24, %25, %cst_21 {dimension_numbers = #tpu.dot_dimension_numbers<[1], [0], [0], [1], [0, 0, 1, 1], [], []>} : vector<1x32xf32>, vector<32x128xf32>, vector<1x128xf32> -> vector<1x128xf32>
    %27 = vector.broadcast %26 : vector<1x128xf32> to vector<8x128xf32>
    %28 = arith.mulf %12, %27 : vector<8x128xf32>
    %c0_22 = arith.constant 0 : index
    %c0_23 = arith.constant 0 : index
    %29 = vector.load %arg4[%c0_22, %c0_23] : memref<1x32xf32, #tpu.memory_space<vmem>>, vector<1x32xf32>
    %c0_24 = arith.constant 0 : index
    %c0_25 = arith.constant 0 : index
    %30 = vector.load %arg6[%c0_24, %c0_25] : memref<32x128xf32, #tpu.memory_space<vmem>>, vector<32x128xf32>
    %cst_26 = arith.constant dense<0.000000e+00> : vector<1x128xf32>
    %31 = tpu.matmul %29, %30, %cst_26 {dimension_numbers = #tpu.dot_dimension_numbers<[1], [0], [0], [1], [0, 0, 1, 1], [], []>} : vector<1x32xf32>, vector<32x128xf32>, vector<1x128xf32> -> vector<1x128xf32>
    %32 = vector.broadcast %31 : vector<1x128xf32> to vector<8x128xf32>
    %33 = arith.addf %28, %32 : vector<8x128xf32>
    %cst_27 = arith.constant 0.000000e+00 : f32
    %34 = vector.broadcast %cst_27 : f32 to vector<8x128xf32>
    %35 = arith.cmpf oge, %33, %34 : vector<8x128xf32>
    %cst_28 = arith.constant 0.00999999977 : f32
    %36 = vector.broadcast %cst_28 : f32 to vector<8x128xf32>
    %37 = arith.mulf %36, %33 : vector<8x128xf32>
    %38 = arith.select %35, %33, %37 : vector<8x128xi1>, vector<8x128xf32>
    %39 = arith.truncf %38 : vector<8x128xf32> to vector<8x128xbf16>
    %c0_29 = arith.constant 0 : index
    %c0_30 = arith.constant 0 : index
    %40 = vector.load %arg7[%c0_29, %c0_30] : memref<8x128xbf16, #tpu.memory_space<vmem>>, vector<8x128xbf16>
    tpu.vector_store %arg7[%c0_29, %c0_30], %39 {strides = array<i32>} : memref<8x128xbf16, #tpu.memory_space<vmem>>, vector<8x128xbf16>,
    return
  }
  func.func @transform_0(%arg0: i32) -> (i32, i32) {
    %c0_i32 = arith.constant 0 : i32
    %c0_i32_0 = arith.constant 0 : i32
    %c0_i32_1 = arith.constant 0 : i32
    return %c0_i32, %c0_i32_0 : i32, i32
  }
  func.func @transform_1(%arg0: i32) -> (i32, i32) {
    %c0_i32 = arith.constant 0 : i32
    %c0_i32_0 = arith.constant 0 : i32
    %c0_i32_1 = arith.constant 0 : i32
    return %c0_i32, %c0_i32_0 : i32, i32
  }
  func.func @transform_2(%arg0: i32) -> (i32, i32) {
    %c0_i32 = arith.constant 0 : i32
    %c0_i32_0 = arith.constant 0 : i32
    %c0_i32_1 = arith.constant 0 : i32
    return %c0_i32, %c0_i32_0 : i32, i32
  }
  func.func @transform_3(%arg0: i32) -> (i32, i32) {
    %c0_i32 = arith.constant 0 : i32
    %c0_i32_0 = arith.constant 0 : i32
    %c0_i32_1 = arith.constant 0 : i32
    return %c0_i32, %c0_i32_0 : i32, i32
  }
  func.func @transform_4(%arg0: i32) -> (i32, i32) {
    %c0_i32 = arith.constant 0 : i32
    %c0_i32_0 = arith.constant 0 : i32
    %c0_i32_1 = arith.constant 0 : i32
    return %c0_i32, %c0_i32_0 : i32, i32
  }
  func.func @transform_5(%arg0: i32) -> (i32, i32) {
    %c0_i32 = arith.constant 0 : i32
    %c0_i32_0 = arith.constant 0 : i32
    %c0_i32_1 = arith.constant 0 : i32
    return %c0_i32, %c0_i32_0 : i32, i32
  }
  func.func @transform_6(%arg0: i32) -> (i32, i32) {
    %c0_i32 = arith.constant 0 : i32
    %c0_i32_0 = arith.constant 0 : i32
    %c0_i32_1 = arith.constant 0 : i32
    return %c0_i32, %c0_i32_0 : i32, i32
  }
}

module attributes {stable_mosaic.version = 11 : i64} {
  func.func @_conv_bn_lrelu_linear_kernel(%arg0: i32, %arg1: memref<2x2048xbf16, #tpu.memory_space<vmem>>, %arg2: memref<2048x256xbf16, #tpu.memory_space<vmem>>, %arg3: memref<1x64xf32, #tpu.memory_space<vmem>>, %arg4: memref<1x64xf32, #tpu.memory_space<vmem>>, %arg5: memref<256x64xf32, #tpu.memory_space<vmem>>, %arg6: memref<64x256xf32, #tpu.memory_space<vmem>>, %arg7: memref<256x640xbf16, #tpu.memory_space<vmem>>, %arg8: memref<1x640xf32, #tpu.memory_space<vmem>>, %arg9: memref<2x640xf32, #tpu.memory_space<vmem>>) attributes {dimension_semantics = [#tpu.dimension_semantics<arbitrary>], iteration_bounds = array<i64: 1>, scalar_prefetch = 0 : i64, scratch_operands = 0 : i64, tpu.core_type = #tpu.core_type<tc>, window_params = [{pipeline_mode = #tpu.pipeline_mode<synchronous>, transform_indices = @transform_0, window_bounds = array<i64: 2, 2048>}, {pipeline_mode = #tpu.pipeline_mode<synchronous>, transform_indices = @transform_1, window_bounds = array<i64: 2048, 256>}, {pipeline_mode = #tpu.pipeline_mode<synchronous>, transform_indices = @transform_2, window_bounds = array<i64: 1, 64>}, {pipeline_mode = #tpu.pipeline_mode<synchronous>, transform_indices = @transform_3, window_bounds = array<i64: 1, 64>}, {pipeline_mode = #tpu.pipeline_mode<synchronous>, transform_indices = @transform_4, window_bounds = array<i64: 256, 64>}, {pipeline_mode = #tpu.pipeline_mode<synchronous>, transform_indices = @transform_5, window_bounds = array<i64: 64, 256>}, {pipeline_mode = #tpu.pipeline_mode<synchronous>, transform_indices = @transform_6, window_bounds = array<i64: 256, 640>}, {pipeline_mode = #tpu.pipeline_mode<synchronous>, transform_indices = @transform_7, window_bounds = array<i64: 1, 640>}, {pipeline_mode = #tpu.pipeline_mode<synchronous>, transform_indices = @transform_8, window_bounds = array<i64: 2, 640>}]} {
    %c0 = arith.constant 0 : index
    %c0_0 = arith.constant 0 : index
    %0 = vector.load %arg1[%c0, %c0_0] : memref<2x2048xbf16, #tpu.memory_space<vmem>>, vector<2x2048xbf16>
    %c0_1 = arith.constant 0 : index
    %c0_2 = arith.constant 0 : index
    %1 = vector.load %arg2[%c0_1, %c0_2] : memref<2048x256xbf16, #tpu.memory_space<vmem>>, vector<2048x256xbf16>
    %cst = arith.constant dense<0.000000e+00> : vector<2x256xf32>
    %2 = tpu.matmul %0, %1, %cst {dimension_numbers = #tpu.dot_dimension_numbers<[1], [0], [0], [1], [0, 0, 1, 1], [], []>} : vector<2x2048xbf16>, vector<2048x256xbf16>, vector<2x256xf32> -> vector<2x256xf32>
    %cst_3 = arith.constant dense<0.000000e+00> : vector<256xf32>
    %3 = vector.multi_reduction <add>, %2, %cst_3 [0] : vector<2x256xf32> to vector<256xf32>
    %4 = vector.shape_cast %3 : vector<256xf32> to vector<1x256xf32>
    %c0_4 = arith.constant 0 : index
    %c0_5 = arith.constant 0 : index
    %5 = vector.load %arg5[%c0_4, %c0_5] : memref<256x64xf32, #tpu.memory_space<vmem>>, vector<256x64xf32>
    %cst_6 = arith.constant dense<0.000000e+00> : vector<1x64xf32>
    %6 = tpu.matmul %4, %5, %cst_6 {dimension_numbers = #tpu.dot_dimension_numbers<[1], [0], [0], [1], [0, 0, 1, 1], [], []>} : vector<1x256xf32>, vector<256x64xf32>, vector<1x64xf32> -> vector<1x64xf32>
    %cst_7 = arith.constant 1.250000e-01 : f32
    %7 = vector.broadcast %cst_7 : f32 to vector<1x64xf32>
    %8 = arith.mulf %6, %7 : vector<1x64xf32>
    %c0_8 = arith.constant 0 : index
    %c0_9 = arith.constant 0 : index
    %9 = vector.load %arg6[%c0_8, %c0_9] : memref<64x256xf32, #tpu.memory_space<vmem>>, vector<64x256xf32>
    %cst_10 = arith.constant dense<0.000000e+00> : vector<1x256xf32>
    %10 = tpu.matmul %8, %9, %cst_10 {dimension_numbers = #tpu.dot_dimension_numbers<[1], [0], [0], [1], [0, 0, 1, 1], [], []>} : vector<1x64xf32>, vector<64x256xf32>, vector<1x256xf32> -> vector<1x256xf32>
    %11 = vector.broadcast %10 : vector<1x256xf32> to vector<2x256xf32>
    %12 = arith.subf %2, %11 : vector<2x256xf32>
    %13 = arith.mulf %12, %12 : vector<2x256xf32>
    %cst_11 = arith.constant dense<0.000000e+00> : vector<256xf32>
    %14 = vector.multi_reduction <add>, %13, %cst_11 [0] : vector<2x256xf32> to vector<256xf32>
    %15 = vector.shape_cast %14 : vector<256xf32> to vector<1x256xf32>
    %c0_12 = arith.constant 0 : index
    %c0_13 = arith.constant 0 : index
    %16 = vector.load %arg5[%c0_12, %c0_13] : memref<256x64xf32, #tpu.memory_space<vmem>>, vector<256x64xf32>
    %cst_14 = arith.constant dense<0.000000e+00> : vector<1x64xf32>
    %17 = tpu.matmul %15, %16, %cst_14 {dimension_numbers = #tpu.dot_dimension_numbers<[1], [0], [0], [1], [0, 0, 1, 1], [], []>} : vector<1x256xf32>, vector<256x64xf32>, vector<1x64xf32> -> vector<1x64xf32>
    %cst_15 = arith.constant 1.250000e-01 : f32
    %18 = vector.broadcast %cst_15 : f32 to vector<1x64xf32>
    %19 = arith.mulf %17, %18 : vector<1x64xf32>
    %c0_16 = arith.constant 0 : index
    %c0_17 = arith.constant 0 : index
    %20 = vector.load %arg3[%c0_16, %c0_17] : memref<1x64xf32, #tpu.memory_space<vmem>>, vector<1x64xf32>
    %cst_18 = arith.constant 9.99999974E-6 : f32
    %21 = vector.broadcast %cst_18 : f32 to vector<1x64xf32>
    %22 = arith.addf %19, %21 : vector<1x64xf32>
    %23 = math.rsqrt %22 : vector<1x64xf32>
    %24 = arith.mulf %20, %23 : vector<1x64xf32>
    %c0_19 = arith.constant 0 : index
    %c0_20 = arith.constant 0 : index
    %25 = vector.load %arg6[%c0_19, %c0_20] : memref<64x256xf32, #tpu.memory_space<vmem>>, vector<64x256xf32>
    %cst_21 = arith.constant dense<0.000000e+00> : vector<1x256xf32>
    %26 = tpu.matmul %24, %25, %cst_21 {dimension_numbers = #tpu.dot_dimension_numbers<[1], [0], [0], [1], [0, 0, 1, 1], [], []>} : vector<1x64xf32>, vector<64x256xf32>, vector<1x256xf32> -> vector<1x256xf32>
    %27 = vector.broadcast %26 : vector<1x256xf32> to vector<2x256xf32>
    %28 = arith.mulf %12, %27 : vector<2x256xf32>
    %c0_22 = arith.constant 0 : index
    %c0_23 = arith.constant 0 : index
    %29 = vector.load %arg4[%c0_22, %c0_23] : memref<1x64xf32, #tpu.memory_space<vmem>>, vector<1x64xf32>
    %c0_24 = arith.constant 0 : index
    %c0_25 = arith.constant 0 : index
    %30 = vector.load %arg6[%c0_24, %c0_25] : memref<64x256xf32, #tpu.memory_space<vmem>>, vector<64x256xf32>
    %cst_26 = arith.constant dense<0.000000e+00> : vector<1x256xf32>
    %31 = tpu.matmul %29, %30, %cst_26 {dimension_numbers = #tpu.dot_dimension_numbers<[1], [0], [0], [1], [0, 0, 1, 1], [], []>} : vector<1x64xf32>, vector<64x256xf32>, vector<1x256xf32> -> vector<1x256xf32>
    %32 = vector.broadcast %31 : vector<1x256xf32> to vector<2x256xf32>
    %33 = arith.addf %28, %32 : vector<2x256xf32>
    %cst_27 = arith.constant 0.000000e+00 : f32
    %34 = vector.broadcast %cst_27 : f32 to vector<2x256xf32>
    %35 = arith.cmpf oge, %33, %34 : vector<2x256xf32>
    %cst_28 = arith.constant 0.00999999977 : f32
    %36 = vector.broadcast %cst_28 : f32 to vector<2x256xf32>
    %37 = arith.mulf %36, %33 : vector<2x256xf32>
    %38 = arith.select %35, %33, %37 : vector<2x256xi1>, vector<2x256xf32>
    %39 = arith.truncf %38 : vector<2x256xf32> to vector<2x256xbf16>
    %c0_29 = arith.constant 0 : index
    %c0_30 = arith.constant 0 : index
    %40 = vector.load %arg7[%c0_29, %c0_30] : memref<256x640xbf16, #tpu.memory_space<vmem>>, vector<256x640xbf16>
    %cst_31 = arith.constant dense<0.000000e+00> : vector<2x640xf32>
    %41 = tpu.matmul %39, %40, %cst_31 {dimension_numbers = #tpu.dot_dimension_numbers<[1], [0], [0], [1], [0, 0, 1, 1], [], []>} : vector<2x256xbf16>, vector<256x640xbf16>, vector<2x640xf32> -> vector<2x640xf32>
    %c0_32 = arith.constant 0 : index
    %c0_33 = arith.constant 0 : index
    %42 = vector.load %arg8[%c0_32, %c0_33] : memref<1x640xf32, #tpu.memory_space<vmem>>, vector<1x640xf32>
    %43 = vector.broadcast %42 : vector<1x640xf32> to vector<2x640xf32>
    %44 = arith.addf %41, %43 : vector<2x640xf32>
    %c0_34 = arith.constant 0 : index
    %c0_35 = arith.constant 0 : index
    %45 = vector.load %arg9[%c0_34, %c0_35] : memref<2x640xf32, #tpu.memory_space<vmem>>, vector<2x640xf32>
    tpu.vector_store %arg9[%c0_34, %c0_35], %44 {strides = array<i32>} : memref<2x640xf32, #tpu.memory_space<vmem>>, vector<2x640xf32>,
    return
  }
  func.func @transform_0(%arg0: i32) -> (i32, i32) {
    %c0_i32 = arith.constant 0 : i32
    %c0_i32_0 = arith.constant 0 : i32
    %c0_i32_1 = arith.constant 0 : i32
    return %c0_i32, %c0_i32_0 : i32, i32
  }
  func.func @transform_1(%arg0: i32) -> (i32, i32) {
    %c0_i32 = arith.constant 0 : i32
    %c0_i32_0 = arith.constant 0 : i32
    %c0_i32_1 = arith.constant 0 : i32
    return %c0_i32, %c0_i32_0 : i32, i32
  }
  func.func @transform_2(%arg0: i32) -> (i32, i32) {
    %c0_i32 = arith.constant 0 : i32
    %c0_i32_0 = arith.constant 0 : i32
    %c0_i32_1 = arith.constant 0 : i32
    return %c0_i32, %c0_i32_0 : i32, i32
  }
  func.func @transform_3(%arg0: i32) -> (i32, i32) {
    %c0_i32 = arith.constant 0 : i32
    %c0_i32_0 = arith.constant 0 : i32
    %c0_i32_1 = arith.constant 0 : i32
    return %c0_i32, %c0_i32_0 : i32, i32
  }
  func.func @transform_4(%arg0: i32) -> (i32, i32) {
    %c0_i32 = arith.constant 0 : i32
    %c0_i32_0 = arith.constant 0 : i32
    %c0_i32_1 = arith.constant 0 : i32
    return %c0_i32, %c0_i32_0 : i32, i32
  }
  func.func @transform_5(%arg0: i32) -> (i32, i32) {
    %c0_i32 = arith.constant 0 : i32
    %c0_i32_0 = arith.constant 0 : i32
    %c0_i32_1 = arith.constant 0 : i32
    return %c0_i32, %c0_i32_0 : i32, i32
  }
  func.func @transform_6(%arg0: i32) -> (i32, i32) {
    %c0_i32 = arith.constant 0 : i32
    %c0_i32_0 = arith.constant 0 : i32
    %c0_i32_1 = arith.constant 0 : i32
    return %c0_i32, %c0_i32_0 : i32, i32
  }
  func.func @transform_7(%arg0: i32) -> (i32, i32) {
    %c0_i32 = arith.constant 0 : i32
    %c0_i32_0 = arith.constant 0 : i32
    %c0_i32_1 = arith.constant 0 : i32
    return %c0_i32, %c0_i32_0 : i32, i32
  }
  func.func @transform_8(%arg0: i32) -> (i32, i32) {
    %c0_i32 = arith.constant 0 : i32
    %c0_i32_0 = arith.constant 0 : i32
    %c0_i32_1 = arith.constant 0 : i32
    return %c0_i32, %c0_i32_0 : i32, i32
  }
}

</mosaic_0001>

<llo_original>
// kernel: net_forward.4
$region0: #{net_forward.4}
  #allocation0 [shape = 'u32[]', space=smem, size = 0x4, offset = 0x4, fixed_abs, tag = 'smem constant byte address 0x4 - core index']
  #allocation1 [shape = 'u32[144,128]{1,0:T(1,128)}', space=vmem, size = 0x12000, scoped, tag = 'internal scratch']
  %s0 = inlined_call_operand.vmem [shape: bf16[32,768], index: 0, kind: input, shape index: {}]
  %s1 = inlined_call_operand.vmem [shape: bf16[768,128], index: 1, kind: input, shape index: {}]
  %s2 = inlined_call_operand.vmem [shape: f32[1,8], index: 2, kind: input, shape index: {}]
  %s3 = inlined_call_operand.vmem [shape: f32[1,8], index: 3, kind: input, shape index: {}]
  %s4 = inlined_call_operand.vmem [shape: f32[128,8], index: 4, kind: input, shape index: {}]
  %s5 = inlined_call_operand.vmem [shape: f32[8,128], index: 5, kind: input, shape index: {}]
  %s6 = inlined_call_operand.vmem [shape: bf16[32,128], index: 6, kind: output, shape index: {}]
  %s7 = sld [smem:[#allocation0]]
  $region34: #{net_forward.4} parent=0
    _
  %s9 = ssub.s32 1, %s7
  %s10 = scalar_select 0, %s9, %s7
  // Predicated region
  $region2: #{net_forward.4} parent=0 // pred_check
    _
  $region3: #{net_forward.4} parent=0 // pred_check_branch
    %12 = sbr.rel (0) target = $region5
  $region4: #{net_forward.4} parent=0 // pred_region
    _
  $region5: #{net_forward.4} parent=0 // pred_fallthru
    _
  // Predicated region
  $region6: #{net_forward.4} parent=0 // pred_check
    _
  $region7: #{net_forward.4} parent=0 // pred_check_branch
    %14 = sbr.rel (0) target = $region9
  $region8: #{net_forward.4} parent=0 // pred_region
    _
  $region9: #{net_forward.4} parent=0 // pred_fallthru
    _
  // Predicated region
  $region10: #{net_forward.4} parent=0 // pred_check
    _
  $region11: #{net_forward.4} parent=0 // pred_check_branch
    %16 = sbr.rel (0) target = $region13
  $region12: #{net_forward.4} parent=0 // pred_region
    _
  $region13: #{net_forward.4} parent=0 // pred_fallthru
    _
  // Predicated region
  $region14: #{net_forward.4} parent=0 // pred_check
    _
  $region15: #{net_forward.4} parent=0 // pred_check_branch
    %18 = sbr.rel (0) target = $region17
  $region16: #{net_forward.4} parent=0 // pred_region
    _
  $region17: #{net_forward.4} parent=0 // pred_fallthru
    _
  // Predicated region
  $region18: #{net_forward.4} parent=0 // pred_check
    _
  $region19: #{net_forward.4} parent=0 // pred_check_branch
    %20 = sbr.rel (0) target = $region21
  $region20: #{net_forward.4} parent=0 // pred_region
    _
  $region21: #{net_forward.4} parent=0 // pred_fallthru
    _
  // Predicated region
  $region22: #{net_forward.4} parent=0 // pred_check
    _
  $region23: #{net_forward.4} parent=0 // pred_check_branch
    %22 = sbr.rel (0) target = $region25
  $region24: #{net_forward.4} parent=0 // pred_region
    _
  $region25: #{net_forward.4} parent=0 // pred_fallthru
    _
  %v24 = vld [vmem:[%s0] sm:$0xff]
  %v25 = vld [vmem:[%s0 + $0x8] sm:$0xff]
  %v26 = vld [vmem:[%s0 + $0x10] sm:$0xff]
  %v27 = vld [vmem:[%s0 + $0x18] sm:$0xff]
  %v28 = vld [vmem:[%s0 + $0x20] sm:$0xff]
  %v29 = vld [vmem:[%s0 + $0x28] sm:$0xff]
  %v30 = vld [vmem:[%s0 + $0x30] sm:$0xff]
  %v31 = vld [vmem:[%s0 + $0x38] sm:$0xff]
  %v32 = vld [vmem:[%s0 + $0x40] sm:$0xff]
  %v33 = vld [vmem:[%s0 + $0x48] sm:$0xff]
  %v34 = vld [vmem:[%s0 + $0x50] sm:$0xff]
  %v35 = vld [vmem:[%s0 + $0x58] sm:$0xff]
  %v36 = vld [vmem:[%s1] sm:$0xf]
  %v37 = vld [vmem:[%s1 + $0x4] sm:$0xf]
  %v38 = vld [vmem:[%s1 + $0x8] sm:$0xf]
  %v39 = vld [vmem:[%s1 + $0xc] sm:$0xf]
  %v40 = vld [vmem:[%s1 + $0x10] sm:$0xf]
  %v41 = vld [vmem:[%s1 + $0x14] sm:$0xf]
  %v42 = vld [vmem:[%s1 + $0x18] sm:$0xf]
  %v43 = vld [vmem:[%s1 + $0x1c] sm:$0xf]
  %v44 = vld [vmem:[%s1 + $0x20] sm:$0xf]
  %v45 = vld [vmem:[%s1 + $0x24] sm:$0xf]
  %v46 = vld [vmem:[%s1 + $0x28] sm:$0xf]
  %v47 = vld [vmem:[%s1 + $0x2c] sm:$0xf]
  %v48 = vld [vmem:[%s1 + $0x30] sm:$0xf]
  %v49 = vld [vmem:[%s1 + $0x34] sm:$0xf]
  %v50 = vld [vmem:[%s1 + $0x38] sm:$0xf]
  %v51 = vld [vmem:[%s1 + $0x3c] sm:$0xf]
  %v52 = vld [vmem:[%s1 + $0x40] sm:$0xf]
  %v53 = vld [vmem:[%s1 + $0x44] sm:$0xf]
  %v54 = vld [vmem:[%s1 + $0x48] sm:$0xf]
  %v55 = vld [vmem:[%s1 + $0x4c] sm:$0xf]
  %v56 = vld [vmem:[%s1 + $0x50] sm:$0xf]
  %v57 = vld [vmem:[%s1 + $0x54] sm:$0xf]
  %v58 = vld [vmem:[%s1 + $0x58] sm:$0xf]
  %v59 = vld [vmem:[%s1 + $0x5c] sm:$0xf]
  %v60 = vld [vmem:[%s1 + $0x60] sm:$0xf]
  %v61 = vld [vmem:[%s1 + $0x64] sm:$0xf]
  %v62 = vld [vmem:[%s1 + $0x68] sm:$0xf]
  %v63 = vld [vmem:[%s1 + $0x6c] sm:$0xf]
  %v64 = vld [vmem:[%s1 + $0x70] sm:$0xf]
  %v65 = vld [vmem:[%s1 + $0x74] sm:$0xf]
  %v66 = vld [vmem:[%s1 + $0x78] sm:$0xf]
  %v67 = vld [vmem:[%s1 + $0x7c] sm:$0xf]
  %v68 = vld [vmem:[%s1 + $0x80] sm:$0xf]
  %v69 = vld [vmem:[%s1 + $0x84] sm:$0xf]
  %v70 = vld [vmem:[%s1 + $0x88] sm:$0xf]
  %v71 = vld [vmem:[%s1 + $0x8c] sm:$0xf]
  %v72 = vld [vmem:[%s1 + $0x90] sm:$0xf]
  %v73 = vld [vmem:[%s1 + $0x94] sm:$0xf]
  %v74 = vld [vmem:[%s1 + $0x98] sm:$0xf]
  %v75 = vld [vmem:[%s1 + $0x9c] sm:$0xf]
  %v76 = vld [vmem:[%s1 + $0xa0] sm:$0xf]
  %v77 = vld [vmem:[%s1 + $0xa4] sm:$0xf]
  %v78 = vld [vmem:[%s1 + $0xa8] sm:$0xf]
  %v79 = vld [vmem:[%s1 + $0xac] sm:$0xf]
  %v80 = vld [vmem:[%s1 + $0xb0] sm:$0xf]
  %v81 = vld [vmem:[%s1 + $0xb4] sm:$0xf]
  %v82 = vld [vmem:[%s1 + $0xb8] sm:$0xf]
  %v83 = vld [vmem:[%s1 + $0xbc] sm:$0xf]
  %v84 = vld [vmem:[%s1 + $0xc0] sm:$0xf]
  %v85 = vld [vmem:[%s1 + $0xc4] sm:$0xf]
  %v86 = vld [vmem:[%s1 + $0xc8] sm:$0xf]
  %v87 = vld [vmem:[%s1 + $0xcc] sm:$0xf]
  %v88 = vld [vmem:[%s1 + $0xd0] sm:$0xf]
  %v89 = vld [vmem:[%s1 + $0xd4] sm:$0xf]
  %v90 = vld [vmem:[%s1 + $0xd8] sm:$0xf]
  %v91 = vld [vmem:[%s1 + $0xdc] sm:$0xf]
  %v92 = vld [vmem:[%s1 + $0xe0] sm:$0xf]
  %v93 = vld [vmem:[%s1 + $0xe4] sm:$0xf]
  %v94 = vld [vmem:[%s1 + $0xe8] sm:$0xf]
  %v95 = vld [vmem:[%s1 + $0xec] sm:$0xf]
  %v96 = vld [vmem:[%s1 + $0xf0] sm:$0xf]
  %v97 = vld [vmem:[%s1 + $0xf4] sm:$0xf]
  %v98 = vld [vmem:[%s1 + $0xf8] sm:$0xf]
  %v99 = vld [vmem:[%s1 + $0xfc] sm:$0xf]
  %v100 = vld [vmem:[%s1 + $0x100] sm:$0xf]
  %v101 = vld [vmem:[%s1 + $0x104] sm:$0xf]
  %v102 = vld [vmem:[%s1 + $0x108] sm:$0xf]
  %v103 = vld [vmem:[%s1 + $0x10c] sm:$0xf]
  %v104 = vld [vmem:[%s1 + $0x110] sm:$0xf]
  %v105 = vld [vmem:[%s1 + $0x114] sm:$0xf]
  %v106 = vld [vmem:[%s1 + $0x118] sm:$0xf]
  %v107 = vld [vmem:[%s1 + $0x11c] sm:$0xf]
  %v108 = vld [vmem:[%s1 + $0x120] sm:$0xf]
  %v109 = vld [vmem:[%s1 + $0x124] sm:$0xf]
  %v110 = vld [vmem:[%s1 + $0x128] sm:$0xf]
  %v111 = vld [vmem:[%s1 + $0x12c] sm:$0xf]
  %v112 = vld [vmem:[%s1 + $0x130] sm:$0xf]
  %v113 = vld [vmem:[%s1 + $0x134] sm:$0xf]
  %v114 = vld [vmem:[%s1 + $0x138] sm:$0xf]
  %v115 = vld [vmem:[%s1 + $0x13c] sm:$0xf]
  %v116 = vld [vmem:[%s1 + $0x140] sm:$0xf]
  %v117 = vld [vmem:[%s1 + $0x144] sm:$0xf]
  %v118 = vld [vmem:[%s1 + $0x148] sm:$0xf]
  %v119 = vld [vmem:[%s1 + $0x14c] sm:$0xf]
  %v120 = vld [vmem:[%s1 + $0x150] sm:$0xf]
  %v121 = vld [vmem:[%s1 + $0x154] sm:$0xf]
  %v122 = vld [vmem:[%s1 + $0x158] sm:$0xf]
  %v123 = vld [vmem:[%s1 + $0x15c] sm:$0xf]
  %v124 = vld [vmem:[%s1 + $0x160] sm:$0xf]
  %v125 = vld [vmem:[%s1 + $0x164] sm:$0xf]
  %v126 = vld [vmem:[%s1 + $0x168] sm:$0xf]
  %v127 = vld [vmem:[%s1 + $0x16c] sm:$0xf]
  %v128 = vld [vmem:[%s1 + $0x170] sm:$0xf]
  %v129 = vld [vmem:[%s1 + $0x174] sm:$0xf]
  %v130 = vld [vmem:[%s1 + $0x178] sm:$0xf]
  %v131 = vld [vmem:[%s1 + $0x17c] sm:$0xf]
  %v144 = vunpack.c.l.b16 %v24
  %v145 = vunpack.c.h.b16 %v24
  %v146 = vunpack.c.l.b16 %v25
  %v147 = vunpack.c.h.b16 %v25
  %v148 = vunpack.c.l.b16 %v26
  %v149 = vunpack.c.h.b16 %v26
  %v150 = vunpack.c.l.b16 %v27
  %v151 = vunpack.c.h.b16 %v27
  %v152 = vunpack.c.l.b16 %v28
  %v153 = vunpack.c.h.b16 %v28
  %v154 = vunpack.c.l.b16 %v29
  %v155 = vunpack.c.h.b16 %v29
  %v156 = vunpack.c.l.b16 %v30
  %v157 = vunpack.c.h.b16 %v30
  %v158 = vunpack.c.l.b16 %v31
  %v159 = vunpack.c.h.b16 %v31
  %v160 = vunpack.c.l.b16 %v32
  %v161 = vunpack.c.h.b16 %v32
  %v162 = vunpack.c.l.b16 %v33
  %v163 = vunpack.c.h.b16 %v33
  %v164 = vunpack.c.l.b16 %v34
  %v165 = vunpack.c.h.b16 %v34
  %v166 = vunpack.c.l.b16 %v35
  %v167 = vunpack.c.h.b16 %v35
  %v168 = vpack.c.b16 %v150, %v144
  %v169 = vpack.c.b16 %v151, %v145
  %v170 = vpack.c.b16 %v152, %v146
  %v171 = vpack.c.b16 %v153, %v147
  %v172 = vpack.c.b16 %v154, %v148
  %v173 = vpack.c.b16 %v155, %v149
  %v174 = vpack.c.b16 %v162, %v156
  %v175 = vpack.c.b16 %v163, %v157
  %v176 = vpack.c.b16 %v164, %v158
  %v177 = vpack.c.b16 %v165, %v159
  %v178 = vpack.c.b16 %v166, %v160
  %v179 = vpack.c.b16 %v167, %v161
  %v288 = vunpack.c.l.b16 %v36
  %v289 = vunpack.c.l.b16 %v37
  %v290 = vunpack.c.l.b16 %v38
  %v291 = vunpack.c.l.b16 %v39
  %v292 = vunpack.c.l.b16 %v40
  %v293 = vunpack.c.l.b16 %v41
  %v294 = vunpack.c.l.b16 %v42
  %v295 = vunpack.c.l.b16 %v43
  %v296 = vunpack.c.l.b16 %v44
  %v297 = vunpack.c.l.b16 %v45
  %v298 = vunpack.c.l.b16 %v46
  %v299 = vunpack.c.l.b16 %v47
  %v300 = vunpack.c.l.b16 %v48
  %v301 = vunpack.c.l.b16 %v49
  %v302 = vunpack.c.l.b16 %v50
  %v303 = vunpack.c.l.b16 %v51
  %v304 = vunpack.c.l.b16 %v52
  %v305 = vunpack.c.l.b16 %v53
  %v306 = vunpack.c.l.b16 %v54
  %v307 = vunpack.c.l.b16 %v55
  %v308 = vunpack.c.l.b16 %v56
  %v309 = vunpack.c.l.b16 %v57
  %v310 = vunpack.c.l.b16 %v58
  %v311 = vunpack.c.l.b16 %v59
  %v312 = vunpack.c.l.b16 %v60
  %v313 = vunpack.c.l.b16 %v61
  %v314 = vunpack.c.l.b16 %v62
  %v315 = vunpack.c.l.b16 %v63
  %v316 = vunpack.c.l.b16 %v64
  %v317 = vunpack.c.l.b16 %v65
  %v318 = vunpack.c.l.b16 %v66
  %v319 = vunpack.c.l.b16 %v67
  %v320 = vunpack.c.l.b16 %v68
  %v321 = vunpack.c.l.b16 %v69
  %v322 = vunpack.c.l.b16 %v70
  %v323 = vunpack.c.l.b16 %v71
  %v324 = vunpack.c.l.b16 %v72
  %v325 = vunpack.c.l.b16 %v73
  %v326 = vunpack.c.l.b16 %v74
  %v327 = vunpack.c.l.b16 %v75
  %v328 = vunpack.c.l.b16 %v76
  %v329 = vunpack.c.l.b16 %v77
  %v330 = vunpack.c.l.b16 %v78
  %v331 = vunpack.c.l.b16 %v79
  %v332 = vunpack.c.l.b16 %v80
  %v333 = vunpack.c.l.b16 %v81
  %v334 = vunpack.c.l.b16 %v82
  %v335 = vunpack.c.l.b16 %v83
  %v336 = vunpack.c.l.b16 %v84
  %v337 = vunpack.c.l.b16 %v85
  %v338 = vunpack.c.l.b16 %v86
  %v339 = vunpack.c.l.b16 %v87
  %v340 = vunpack.c.l.b16 %v88
  %v341 = vunpack.c.l.b16 %v89
  %v342 = vunpack.c.l.b16 %v90
  %v343 = vunpack.c.l.b16 %v91
  %v344 = vunpack.c.l.b16 %v92
  %v345 = vunpack.c.l.b16 %v93
  %v346 = vunpack.c.l.b16 %v94
  %v347 = vunpack.c.l.b16 %v95
  %v348 = vunpack.c.l.b16 %v96
  %v349 = vunpack.c.l.b16 %v97
  %v350 = vunpack.c.l.b16 %v98
  %v351 = vunpack.c.l.b16 %v99
  %v352 = vunpack.c.l.b16 %v100
  %v353 = vunpack.c.l.b16 %v101
  %v354 = vunpack.c.l.b16 %v102
  %v355 = vunpack.c.l.b16 %v103
  %v356 = vunpack.c.l.b16 %v104
  %v357 = vunpack.c.l.b16 %v105
  %v358 = vunpack.c.l.b16 %v106
  %v359 = vunpack.c.l.b16 %v107
  %v360 = vunpack.c.l.b16 %v108
  %v361 = vunpack.c.l.b16 %v109
  %v362 = vunpack.c.l.b16 %v110
  %v363 = vunpack.c.l.b16 %v111
  %v364 = vunpack.c.l.b16 %v112
  %v365 = vunpack.c.l.b16 %v113
  %v366 = vunpack.c.l.b16 %v114
  %v367 = vunpack.c.l.b16 %v115
  %v368 = vunpack.c.l.b16 %v116
  %v369 = vunpack.c.l.b16 %v117
  %v370 = vunpack.c.l.b16 %v118
  %v371 = vunpack.c.l.b16 %v119
  %v372 = vunpack.c.l.b16 %v120
  %v373 = vunpack.c.l.b16 %v121
  %v374 = vunpack.c.l.b16 %v122
  %v375 = vunpack.c.l.b16 %v123
  %v376 = vunpack.c.l.b16 %v124
  %v377 = vunpack.c.l.b16 %v125
  %v378 = vunpack.c.l.b16 %v126
  %v379 = vunpack.c.l.b16 %v127
  %v380 = vunpack.c.l.b16 %v128
  %v381 = vunpack.c.l.b16 %v129
  %v382 = vunpack.c.l.b16 %v130
  %v383 = vunpack.c.l.b16 %v131
  %v384 = vpack.c.b16 %v289, %v288
  %v385 = vpack.c.b16 %v291, %v290
  %v386 = vpack.c.b16 %v293, %v292
  %v387 = vpack.c.b16 %v295, %v294
  %v388 = vpack.c.b16 %v297, %v296
  %v389 = vpack.c.b16 %v299, %v298
  %v390 = vpack.c.b16 %v301, %v300
  %v391 = vpack.c.b16 %v303, %v302
  %v392 = vpack.c.b16 %v305, %v304
  %v393 = vpack.c.b16 %v307, %v306
  %v394 = vpack.c.b16 %v309, %v308
  %v395 = vpack.c.b16 %v311, %v310
  %v396 = vpack.c.b16 %v313, %v312
  %v397 = vpack.c.b16 %v315, %v314
  %v398 = vpack.c.b16 %v317, %v316
  %v399 = vpack.c.b16 %v319, %v318
  %v400 = vpack.c.b16 %v321, %v320
  %v401 = vpack.c.b16 %v323, %v322
  %v402 = vpack.c.b16 %v325, %v324
  %v403 = vpack.c.b16 %v327, %v326
  %v404 = vpack.c.b16 %v329, %v328
  %v405 = vpack.c.b16 %v331, %v330
  %v406 = vpack.c.b16 %v333, %v332
  %v407 = vpack.c.b16 %v335, %v334
  %v408 = vpack.c.b16 %v337, %v336
  %v409 = vpack.c.b16 %v339, %v338
  %v410 = vpack.c.b16 %v341, %v340
  %v411 = vpack.c.b16 %v343, %v342
  %v412 = vpack.c.b16 %v345, %v344
  %v413 = vpack.c.b16 %v347, %v346
  %v414 = vpack.c.b16 %v349, %v348
  %v415 = vpack.c.b16 %v351, %v350
  %v416 = vpack.c.b16 %v353, %v352
  %v417 = vpack.c.b16 %v355, %v354
  %v418 = vpack.c.b16 %v357, %v356
  %v419 = vpack.c.b16 %v359, %v358
  %v420 = vpack.c.b16 %v361, %v360
  %v421 = vpack.c.b16 %v363, %v362
  %v422 = vpack.c.b16 %v365, %v364
  %v423 = vpack.c.b16 %v367, %v366
  %v424 = vpack.c.b16 %v369, %v368
  %v425 = vpack.c.b16 %v371, %v370
  %v426 = vpack.c.b16 %v373, %v372
  %v427 = vpack.c.b16 %v375, %v374
  %v428 = vpack.c.b16 %v377, %v376
  %v429 = vpack.c.b16 %v379, %v378
  %v430 = vpack.c.b16 %v381, %v380
  %v431 = vpack.c.b16 %v383, %v382
  %480 = vmatprep.subr.bf16.mxu0 0
  %481 = vmatpush1.bf16.msra.mxu0 %v384
  %482 = vmatprep.subr.bf16.mxu0 0
  %483 = vmatpush1.bf16.msra.mxu0 %v385
  %484 = vmatprep.subr.bf16.mxu0 0
  %485 = vmatpush1.bf16.msra.mxu0 %v386
  %486 = vmatprep.subr.bf16.mxu0 0
  %487 = vmatpush1.bf16.msra.mxu0 %v387
  %488 = vmatprep.subr.bf16.mxu0 0
  %489 = vmatpush1.bf16.msra.mxu0 %v388
  %490 = vmatprep.subr.bf16.mxu0 0
  %491 = vmatpush1.bf16.msra.mxu0 %v389
  %492 = vmatprep.subr.bf16.mxu0 0
  %493 = vmatpush1.bf16.msra.mxu0 %v390
  %494 = vmatprep.subr.bf16.mxu0 0
  %495 = vmatpush1.bf16.msra.mxu0 %v391
  %496 = vmatprep.subr.bf16.mxu0 0
  %497 = vmatpush1.bf16.msra.mxu0 %v392
  %498 = vmatprep.subr.bf16.mxu0 0
  %499 = vmatpush1.bf16.msra.mxu0 %v393
  %500 = vmatprep.subr.bf16.mxu0 0
  %501 = vmatpush1.bf16.msra.mxu0 %v394
  %502 = vmatprep.subr.bf16.mxu0 0
  %503 = vmatpush1.bf16.msra.mxu0 %v395
  %504 = vmatprep.subr.bf16.mxu0 0
  %505 = vmatpush1.bf16.msra.mxu0 %v396
  %506 = vmatprep.subr.bf16.mxu0 0
  %507 = vmatpush1.bf16.msra.mxu0 %v397
  %508 = vmatprep.subr.bf16.mxu0 0
  %509 = vmatpush1.bf16.msra.mxu0 %v398
  %510 = vmatprep.subr.bf16.mxu0 0
  %511 = vmatpush1.bf16.msra.mxu0 %v399
  %512 = vmatprep.mubr.bf16.mxu0 %v169
  %513 = vmatmul.mubr.bf16.gmra.mrb[0].mxu0 %v168
  %v514 = vpop.f32.mrb[0].mxu0
  %v515 = vadd.f32 0.0, %v514
  %v516 = vpop.f32.mrb[0].mxu0
  %v517 = vpop.f32.mrb[0].mxu0
  %v518 = vadd.f32 0.0, %v517
  %v519 = vpop.f32.mrb[0].mxu0
  %520 = vmatprep.mubr.bf16.mxu0 %v175
  %521 = vmatmul.mubr.bf16.gmra.mrb[0].mxu0 %v174
  %v522 = vpop.f32.mrb[0].mxu0
  %v523 = vadd.f32 0.0, %v522
  %v524 = vpop.f32.mrb[0].mxu0
  %v525 = vpop.f32.mrb[0].mxu0
  %v526 = vadd.f32 0.0, %v525
  %v527 = vpop.f32.mrb[0].mxu0
  %528 = vdwg.mxu0
  %529 = vmatprep.subr.bf16.mxu0 0
  %530 = vmatpush1.bf16.msra.mxu0 %v400
  %531 = vmatprep.subr.bf16.mxu0 0
  %532 = vmatpush1.bf16.msra.mxu0 %v401
  %533 = vmatprep.subr.bf16.mxu0 0
  %534 = vmatpush1.bf16.msra.mxu0 %v402
  %535 = vmatprep.subr.bf16.mxu0 0
  %536 = vmatpush1.bf16.msra.mxu0 %v403
  %537 = vmatprep.subr.bf16.mxu0 0
  %538 = vmatpush1.bf16.msra.mxu0 %v404
  %539 = vmatprep.subr.bf16.mxu0 0
  %540 = vmatpush1.bf16.msra.mxu0 %v405
  %541 = vmatprep.subr.bf16.mxu0 0
  %542 = vmatpush1.bf16.msra.mxu0 %v406
  %543 = vmatprep.subr.bf16.mxu0 0
  %544 = vmatpush1.bf16.msra.mxu0 %v407
  %545 = vmatprep.subr.bf16.mxu0 0
  %546 = vmatpush1.bf16.msra.mxu0 %v408
  %547 = vmatprep.subr.bf16.mxu0 0
  %548 = vmatpush1.bf16.msra.mxu0 %v409
  %549 = vmatprep.subr.bf16.mxu0 0
  %550 = vmatpush1.bf16.msra.mxu0 %v410
  %551 = vmatprep.subr.bf16.mxu0 0
  %552 = vmatpush1.bf16.msra.mxu0 %v411
  %553 = vmatprep.subr.bf16.mxu0 0
  %554 = vmatpush1.bf16.msra.mxu0 %v412
  %555 = vmatprep.subr.bf16.mxu0 0
  %556 = vmatpush1.bf16.msra.mxu0 %v413
  %557 = vmatprep.subr.bf16.mxu0 0
  %558 = vmatpush1.bf16.msra.mxu0 %v414
  %559 = vmatprep.subr.bf16.mxu0 0
  %560 = vmatpush1.bf16.msra.mxu0 %v415
  %561 = vmatprep.mubr.bf16.mxu0 %v171
  %562 = vmatmul.mubr.bf16.gmra.mrb[0].mxu0 %v170
  %v563 = vpop.f32.mrb[0].mxu0
  %v564 = vadd.f32 %v515, %v563
  %v565 = vpop.f32.mrb[0].mxu0
  %v566 = vpop.f32.mrb[0].mxu0
  %v567 = vadd.f32 %v518, %v566
  %v568 = vpop.f32.mrb[0].mxu0
  %569 = vmatprep.mubr.bf16.mxu0 %v177
  %570 = vmatmul.mubr.bf16.gmra.mrb[0].mxu0 %v176
  %v571 = vpop.f32.mrb[0].mxu0
  %v572 = vadd.f32 %v523, %v571
  %v573 = vpop.f32.mrb[0].mxu0
  %v574 = vpop.f32.mrb[0].mxu0
  %v575 = vadd.f32 %v526, %v574
  %v576 = vpop.f32.mrb[0].mxu0
  %577 = vdwg.mxu0
  %578 = vmatprep.subr.bf16.mxu0 0
  %579 = vmatpush1.bf16.msra.mxu0 %v416
  %580 = vmatprep.subr.bf16.mxu0 0
  %581 = vmatpush1.bf16.msra.mxu0 %v417
  %582 = vmatprep.subr.bf16.mxu0 0
  %583 = vmatpush1.bf16.msra.mxu0 %v418
  %584 = vmatprep.subr.bf16.mxu0 0
  %585 = vmatpush1.bf16.msra.mxu0 %v419
  %586 = vmatprep.subr.bf16.mxu0 0
  %587 = vmatpush1.bf16.msra.mxu0 %v420
  %588 = vmatprep.subr.bf16.mxu0 0
  %589 = vmatpush1.bf16.msra.mxu0 %v421
  %590 = vmatprep.subr.bf16.mxu0 0
  %591 = vmatpush1.bf16.msra.mxu0 %v422
  %592 = vmatprep.subr.bf16.mxu0 0
  %593 = vmatpush1.bf16.msra.mxu0 %v423
  %594 = vmatprep.subr.bf16.mxu0 0
  %595 = vmatpush1.bf16.msra.mxu0 %v424
  %596 = vmatprep.subr.bf16.mxu0 0
  %597 = vmatpush1.bf16.msra.mxu0 %v425
  %598 = vmatprep.subr.bf16.mxu0 0
  %599 = vmatpush1.bf16.msra.mxu0 %v426
  %600 = vmatprep.subr.bf16.mxu0 0
  %601 = vmatpush1.bf16.msra.mxu0 %v427
  %602 = vmatprep.subr.bf16.mxu0 0
  %603 = vmatpush1.bf16.msra.mxu0 %v428
  %604 = vmatprep.subr.bf16.mxu0 0
  %605 = vmatpush1.bf16.msra.mxu0 %v429
  %606 = vmatprep.subr.bf16.mxu0 0
  %607 = vmatpush1.bf16.msra.mxu0 %v430
  %608 = vmatprep.subr.bf16.mxu0 0
  %609 = vmatpush1.bf16.msra.mxu0 %v431
  %610 = vmatprep.mubr.bf16.mxu0 %v173
  %611 = vmatmul.mubr.bf16.gmra.mrb[0].mxu0 %v172
  %v612 = vpop.f32.mrb[0].mxu0
  %v613 = vadd.f32 %v564, %v612
  %v614 = vpop.f32.mrb[0].mxu0
  %v615 = vpop.f32.mrb[0].mxu0
  %v616 = vadd.f32 %v567, %v615
  %v617 = vpop.f32.mrb[0].mxu0
  %618 = vmatprep.mubr.bf16.mxu0 %v179
  %619 = vmatmul.mubr.bf16.gmra.mrb[0].mxu0 %v178
  %v620 = vpop.f32.mrb[0].mxu0
  %v621 = vadd.f32 %v572, %v620
  %v622 = vpop.f32.mrb[0].mxu0
  %v623 = vpop.f32.mrb[0].mxu0
  %v624 = vadd.f32 %v575, %v623
  %v625 = vpop.f32.mrb[0].mxu0
  %626 = vdwg.mxu0
  %v627 = vadd.f32 %v613, %v616
  %v628 = vadd.f32 %v627, %v621
  %v629 = vadd.f32 %v628, %v624
  %v630 = vrot.slane %v629, 4
  %v631 = vadd.f32 %v629, %v630
  %v632 = vrot.slane %v631, 2
  %v633 = vadd.f32 %v631, %v632
  %v634 = vrot.slane %v633, 1
  %v635 = vadd.f32 %v633, %v634
  %v636 = vld [vmem:[%s4] sm:$0xff]
  %v637 = vld [vmem:[%s4 + $0x8] sm:$0xff]
  %v638 = vld [vmem:[%s4 + $0x10] sm:$0xff]
  %v639 = vld [vmem:[%s4 + $0x18] sm:$0xff]
  %v640 = vld [vmem:[%s4 + $0x20] sm:$0xff]
  %v641 = vld [vmem:[%s4 + $0x28] sm:$0xff]
  %v642 = vld [vmem:[%s4 + $0x30] sm:$0xff]
  %v643 = vld [vmem:[%s4 + $0x38] sm:$0xff]
  %v644 = vld [vmem:[%s4 + $0x40] sm:$0xff]
  %v645 = vld [vmem:[%s4 + $0x48] sm:$0xff]
  %v646 = vld [vmem:[%s4 + $0x50] sm:$0xff]
  %v647 = vld [vmem:[%s4 + $0x58] sm:$0xff]
  %v648 = vld [vmem:[%s4 + $0x60] sm:$0xff]
  %v649 = vld [vmem:[%s4 + $0x68] sm:$0xff]
  %v650 = vld [vmem:[%s4 + $0x70] sm:$0xff]
  %v651 = vld [vmem:[%s4 + $0x78] sm:$0xff]
  %652 = vmatprep.subr.mxu0 0.0
  %653 = vmatpush1.msra.mxu0 %v636
  %654 = vmatprep.subr.mxu0 0.0
  %655 = vmatpush1.msra.mxu0 %v637
  %656 = vmatprep.subr.mxu0 0.0
  %657 = vmatpush1.msra.mxu0 %v638
  %658 = vmatprep.subr.mxu0 0.0
  %659 = vmatpush1.msra.mxu0 %v639
  %660 = vmatprep.subr.mxu0 0.0
  %661 = vmatpush1.msra.mxu0 %v640
  %662 = vmatprep.subr.mxu0 0.0
  %663 = vmatpush1.msra.mxu0 %v641
  %664 = vmatprep.subr.mxu0 0.0
  %665 = vmatpush1.msra.mxu0 %v642
  %666 = vmatprep.subr.mxu0 0.0
  %667 = vmatpush1.msra.mxu0 %v643
  %668 = vmatprep.subr.mxu0 0.0
  %669 = vmatpush1.msra.mxu0 %v644
  %670 = vmatprep.subr.mxu0 0.0
  %671 = vmatpush1.msra.mxu0 %v645
  %672 = vmatprep.subr.mxu0 0.0
  %673 = vmatpush1.msra.mxu0 %v646
  %674 = vmatprep.subr.mxu0 0.0
  %675 = vmatpush1.msra.mxu0 %v647
  %676 = vmatprep.subr.mxu0 0.0
  %677 = vmatpush1.msra.mxu0 %v648
  %678 = vmatprep.subr.mxu0 0.0
  %679 = vmatpush1.msra.mxu0 %v649
  %680 = vmatprep.subr.mxu0 0.0
  %681 = vmatpush1.msra.mxu0 %v650
  %682 = vmatprep.subr.mxu0 0.0
  %683 = vmatpush1.msra.mxu0 %v651
  %684 = vmatprep.subr.mxu0 0.0
  %685 = vmatpush1.msra.mxu0 0.0
  %686 = vmatprep.subr.mxu0 0.0
  %687 = vmatpush1.msra.mxu0 0.0
  %688 = vmatprep.subr.mxu0 0.0
  %689 = vmatpush1.msra.mxu0 0.0
  %690 = vmatprep.subr.mxu0 0.0
  %691 = vmatpush1.msra.mxu0 0.0
  %692 = vmatprep.subr.mxu0 0.0
  %693 = vmatpush1.msra.mxu0 0.0
  %694 = vmatprep.subr.mxu0 0.0
  %695 = vmatpush1.msra.mxu0 0.0
  %696 = vmatprep.subr.mxu0 0.0
  %697 = vmatpush1.msra.mxu0 0.0
  %698 = vmatprep.subr.mxu0 0.0
  %699 = vmatpush1.msra.mxu0 0.0
  %700 = vmatprep.subr.mxu0 0.0
  %701 = vmatpush1.msra.mxu0 0.0
  %702 = vmatprep.subr.mxu0 0.0
  %703 = vmatpush1.msra.mxu0 0.0
  %704 = vmatprep.subr.mxu0 0.0
  %705 = vmatpush1.msra.mxu0 0.0
  %706 = vmatprep.subr.mxu0 0.0
  %707 = vmatpush1.msra.mxu0 0.0
  %708 = vmatprep.subr.mxu0 0.0
  %709 = vmatpush1.msra.mxu0 0.0
  %710 = vmatprep.subr.mxu0 0.0
  %711 = vmatpush1.msra.mxu0 0.0
  %712 = vmatprep.subr.mxu0 0.0
  %713 = vmatpush1.msra.mxu0 0.0
  %714 = vmatprep.subr.mxu0 0.0
  %715 = vmatpush1.msra.mxu0 0.0
  %716 = vmatprep.mubr.f32.mxu0 0.0
  %717 = vmatmul.mubr.f32.gmra.mrb[0].mxu0 %v635
  %v718 = vpop.f32.mrb[0].mxu0
  %v719 = vadd.f32 0.0, %v718
  %v720 = vpop.f32.mrb[0].mxu0
  %721 = vdwg.mxu0
  %v722 = vmul.f32 %v719, 0.001953125
  %v723 = vld [vmem:[%s5] sm:$0xff]
  %vm724 = vcmask 64512
  %v726 = vsel %vm724, %v722, 0
  %728 = vmatprep.subr.mxu0 0.0
  %729 = vmatpush1.msra.mxu0 %v723
  %730 = vmatprep.subr.mxu0 0.0
  %731 = vmatpush1.msra.mxu0 0.0
  %732 = vmatprep.subr.mxu0 0.0
  %733 = vmatpush1.msra.mxu0 0.0
  %734 = vmatprep.subr.mxu0 0.0
  %735 = vmatpush1.msra.mxu0 0.0
  %736 = vmatprep.subr.mxu0 0.0
  %737 = vmatpush1.msra.mxu0 0.0
  %738 = vmatprep.subr.mxu0 0.0
  %739 = vmatpush1.msra.mxu0 0.0
  %740 = vmatprep.subr.mxu0 0.0
  %741 = vmatpush1.msra.mxu0 0.0
  %742 = vmatprep.subr.mxu0 0.0
  %743 = vmatpush1.msra.mxu0 0.0
  %744 = vmatprep.subr.mxu0 0.0
  %745 = vmatpush1.msra.mxu0 0.0
  %746 = vmatprep.subr.mxu0 0.0
  %747 = vmatpush1.msra.mxu0 0.0
  %748 = vmatprep.subr.mxu0 0.0
  %749 = vmatpush1.msra.mxu0 0.0
  %750 = vmatprep.subr.mxu0 0.0
  %751 = vmatpush1.msra.mxu0 0.0
  %752 = vmatprep.subr.mxu0 0.0
  %753 = vmatpush1.msra.mxu0 0.0
  %754 = vmatprep.subr.mxu0 0.0
  %755 = vmatpush1.msra.mxu0 0.0
  %756 = vmatprep.subr.mxu0 0.0
  %757 = vmatpush1.msra.mxu0 0.0
  %758 = vmatprep.subr.mxu0 0.0
  %759 = vmatpush1.msra.mxu0 0.0
  %760 = vmatprep.subr.mxu0 0.0
  %761 = vmatpush1.msra.mxu0 0.0
  %762 = vmatprep.subr.mxu0 0.0
  %763 = vmatpush1.msra.mxu0 0.0
  %764 = vmatprep.subr.mxu0 0.0
  %765 = vmatpush1.msra.mxu0 0.0
  %766 = vmatprep.subr.mxu0 0.0
  %767 = vmatpush1.msra.mxu0 0.0
  %768 = vmatprep.subr.mxu0 0.0
  %769 = vmatpush1.msra.mxu0 0.0
  %770 = vmatprep.subr.mxu0 0.0
  %771 = vmatpush1.msra.mxu0 0.0
  %772 = vmatprep.subr.mxu0 0.0
  %773 = vmatpush1.msra.mxu0 0.0
  %774 = vmatprep.subr.mxu0 0.0
  %775 = vmatpush1.msra.mxu0 0.0
  %776 = vmatprep.subr.mxu0 0.0
  %777 = vmatpush1.msra.mxu0 0.0
  %778 = vmatprep.subr.mxu0 0.0
  %779 = vmatpush1.msra.mxu0 0.0
  %780 = vmatprep.subr.mxu0 0.0
  %781 = vmatpush1.msra.mxu0 0.0
  %782 = vmatprep.subr.mxu0 0.0
  %783 = vmatpush1.msra.mxu0 0.0
  %784 = vmatprep.subr.mxu0 0.0
  %785 = vmatpush1.msra.mxu0 0.0
  %786 = vmatprep.subr.mxu0 0.0
  %787 = vmatpush1.msra.mxu0 0.0
  %788 = vmatprep.subr.mxu0 0.0
  %789 = vmatpush1.msra.mxu0 0.0
  %790 = vmatprep.subr.mxu0 0.0
  %791 = vmatpush1.msra.mxu0 0.0
  %792 = vmatprep.mubr.f32.mxu0 0.0
  %793 = vmatmul.mubr.f32.gmra.mrb[0].mxu0 %v726
  %v794 = vpop.f32.mrb[0].mxu0
  %v795 = vadd.f32 0.0, %v794
  %v796 = vpop.f32.mrb[0].mxu0
  %797 = vdwg.mxu0
  %v798 = vlaneseq
  %v799 = vshrl.u32 %v798, 7
  %v800 = vsub.s32 0, %v799
  %v801 = vrot.slane %v795, %v800
  %v802 = vsub.f32 %v613, %v801
  %v803 = vsub.f32 %v616, %v801
  %v804 = vsub.f32 %v621, %v801
  %v805 = vsub.f32 %v624, %v801
  %v806 = vmul.f32 %v802, %v802
  %v807 = vmul.f32 %v803, %v803
  %v808 = vmul.f32 %v804, %v804
  %v809 = vmul.f32 %v805, %v805
  %v810 = vadd.f32 %v806, %v807
  %v811 = vadd.f32 %v810, %v808
  %v812 = vadd.f32 %v811, %v809
  %v813 = vrot.slane %v812, 4
  %v814 = vadd.f32 %v812, %v813
  %v815 = vrot.slane %v814, 2
  %v816 = vadd.f32 %v814, %v815
  %v817 = vrot.slane %v816, 1
  %v818 = vadd.f32 %v816, %v817
  %819 = vmatprep.subr.mxu0 0.0
  %820 = vmatpush1.msra.mxu0 %v636
  %821 = vmatprep.subr.mxu0 0.0
  %822 = vmatpush1.msra.mxu0 %v637
  %823 = vmatprep.subr.mxu0 0.0
  %824 = vmatpush1.msra.mxu0 %v638
  %825 = vmatprep.subr.mxu0 0.0
  %826 = vmatpush1.msra.mxu0 %v639
  %827 = vmatprep.subr.mxu0 0.0
  %828 = vmatpush1.msra.mxu0 %v640
  %829 = vmatprep.subr.mxu0 0.0
  %830 = vmatpush1.msra.mxu0 %v641
  %831 = vmatprep.subr.mxu0 0.0
  %832 = vmatpush1.msra.mxu0 %v642
  %833 = vmatprep.subr.mxu0 0.0
  %834 = vmatpush1.msra.mxu0 %v643
  %835 = vmatprep.subr.mxu0 0.0
  %836 = vmatpush1.msra.mxu0 %v644
  %837 = vmatprep.subr.mxu0 0.0
  %838 = vmatpush1.msra.mxu0 %v645
  %839 = vmatprep.subr.mxu0 0.0
  %840 = vmatpush1.msra.mxu0 %v646
  %841 = vmatprep.subr.mxu0 0.0
  %842 = vmatpush1.msra.mxu0 %v647
  %843 = vmatprep.subr.mxu0 0.0
  %844 = vmatpush1.msra.mxu0 %v648
  %845 = vmatprep.subr.mxu0 0.0
  %846 = vmatpush1.msra.mxu0 %v649
  %847 = vmatprep.subr.mxu0 0.0
  %848 = vmatpush1.msra.mxu0 %v650
  %849 = vmatprep.subr.mxu0 0.0
  %850 = vmatpush1.msra.mxu0 %v651
  %851 = vmatprep.subr.mxu0 0.0
  %852 = vmatpush1.msra.mxu0 0.0
  %853 = vmatprep.subr.mxu0 0.0
  %854 = vmatpush1.msra.mxu0 0.0
  %855 = vmatprep.subr.mxu0 0.0
  %856 = vmatpush1.msra.mxu0 0.0
  %857 = vmatprep.subr.mxu0 0.0
  %858 = vmatpush1.msra.mxu0 0.0
  %859 = vmatprep.subr.mxu0 0.0
  %860 = vmatpush1.msra.mxu0 0.0
  %861 = vmatprep.subr.mxu0 0.0
  %862 = vmatpush1.msra.mxu0 0.0
  %863 = vmatprep.subr.mxu0 0.0
  %864 = vmatpush1.msra.mxu0 0.0
  %865 = vmatprep.subr.mxu0 0.0
  %866 = vmatpush1.msra.mxu0 0.0
  %867 = vmatprep.subr.mxu0 0.0
  %868 = vmatpush1.msra.mxu0 0.0
  %869 = vmatprep.subr.mxu0 0.0
  %870 = vmatpush1.msra.mxu0 0.0
  %871 = vmatprep.subr.mxu0 0.0
  %872 = vmatpush1.msra.mxu0 0.0
  %873 = vmatprep.subr.mxu0 0.0
  %874 = vmatpush1.msra.mxu0 0.0
  %875 = vmatprep.subr.mxu0 0.0
  %876 = vmatpush1.msra.mxu0 0.0
  %877 = vmatprep.subr.mxu0 0.0
  %878 = vmatpush1.msra.mxu0 0.0
  %879 = vmatprep.subr.mxu0 0.0
  %880 = vmatpush1.msra.mxu0 0.0
  %881 = vmatprep.subr.mxu0 0.0
  %882 = vmatpush1.msra.mxu0 0.0
  %883 = vmatprep.mubr.f32.mxu0 0.0
  %884 = vmatmul.mubr.f32.gmra.mrb[0].mxu0 %v818
  %v885 = vpop.f32.mrb[0].mxu0
  %v886 = vadd.f32 0.0, %v885
  %v887 = vpop.f32.mrb[0].mxu0
  %888 = vdwg.mxu0
  %v889 = vmul.f32 %v886, 0.001953125
  %v890 = vld [vmem:[%s2] sm:$0x1]
  %v891 = vadd.f32 %v889, 1e-05
  %v892 = vrsqrt.pop %v891
  %v893 = vmul.f32 %v890, %v892
  %v895 = vsel %vm724, %v893, 0
  %897 = vmatprep.subr.mxu0 0.0
  %898 = vmatpush1.msra.mxu0 %v723
  %899 = vmatprep.subr.mxu0 0.0
  %900 = vmatpush1.msra.mxu0 0.0
  %901 = vmatprep.subr.mxu0 0.0
  %902 = vmatpush1.msra.mxu0 0.0
  %903 = vmatprep.subr.mxu0 0.0
  %904 = vmatpush1.msra.mxu0 0.0
  %905 = vmatprep.subr.mxu0 0.0
  %906 = vmatpush1.msra.mxu0 0.0
  %907 = vmatprep.subr.mxu0 0.0
  %908 = vmatpush1.msra.mxu0 0.0
  %909 = vmatprep.subr.mxu0 0.0
  %910 = vmatpush1.msra.mxu0 0.0
  %911 = vmatprep.subr.mxu0 0.0
  %912 = vmatpush1.msra.mxu0 0.0
  %913 = vmatprep.subr.mxu0 0.0
  %914 = vmatpush1.msra.mxu0 0.0
  %915 = vmatprep.subr.mxu0 0.0
  %916 = vmatpush1.msra.mxu0 0.0
  %917 = vmatprep.subr.mxu0 0.0
  %918 = vmatpush1.msra.mxu0 0.0
  %919 = vmatprep.subr.mxu0 0.0
  %920 = vmatpush1.msra.mxu0 0.0
  %921 = vmatprep.subr.mxu0 0.0
  %922 = vmatpush1.msra.mxu0 0.0
  %923 = vmatprep.subr.mxu0 0.0
  %924 = vmatpush1.msra.mxu0 0.0
  %925 = vmatprep.subr.mxu0 0.0
  %926 = vmatpush1.msra.mxu0 0.0
  %927 = vmatprep.subr.mxu0 0.0
  %928 = vmatpush1.msra.mxu0 0.0
  %929 = vmatprep.subr.mxu0 0.0
  %930 = vmatpush1.msra.mxu0 0.0
  %931 = vmatprep.subr.mxu0 0.0
  %932 = vmatpush1.msra.mxu0 0.0
  %933 = vmatprep.subr.mxu0 0.0
  %934 = vmatpush1.msra.mxu0 0.0
  %935 = vmatprep.subr.mxu0 0.0
  %936 = vmatpush1.msra.mxu0 0.0
  %937 = vmatprep.subr.mxu0 0.0
  %938 = vmatpush1.msra.mxu0 0.0
  %939 = vmatprep.subr.mxu0 0.0
  %940 = vmatpush1.msra.mxu0 0.0
  %941 = vmatprep.subr.mxu0 0.0
  %942 = vmatpush1.msra.mxu0 0.0
  %943 = vmatprep.subr.mxu0 0.0
  %944 = vmatpush1.msra.mxu0 0.0
  %945 = vmatprep.subr.mxu0 0.0
  %946 = vmatpush1.msra.mxu0 0.0
  %947 = vmatprep.subr.mxu0 0.0
  %948 = vmatpush1.msra.mxu0 0.0
  %949 = vmatprep.subr.mxu0 0.0
  %950 = vmatpush1.msra.mxu0 0.0
  %951 = vmatprep.subr.mxu0 0.0
  %952 = vmatpush1.msra.mxu0 0.0
  %953 = vmatprep.subr.mxu0 0.0
  %954 = vmatpush1.msra.mxu0 0.0
  %955 = vmatprep.subr.mxu0 0.0
  %956 = vmatpush1.msra.mxu0 0.0
  %957 = vmatprep.subr.mxu0 0.0
  %958 = vmatpush1.msra.mxu0 0.0
  %959 = vmatprep.subr.mxu0 0.0
  %960 = vmatpush1.msra.mxu0 0.0
  %961 = vmatprep.mubr.f32.mxu0 0.0
  %962 = vmatmul.mubr.f32.gmra.mrb[0].mxu0 %v895
  %v963 = vpop.f32.mrb[0].mxu0
  %v964 = vadd.f32 0.0, %v963
  %v965 = vpop.f32.mrb[0].mxu0
  %966 = vdwg.mxu0
  %v967 = vlaneseq
  %v968 = vshrl.u32 %v967, 7
  %v969 = vsub.s32 0, %v968
  %v970 = vrot.slane %v964, %v969
  %v971 = vmul.f32 %v802, %v970
  %v972 = vmul.f32 %v803, %v970
  %v973 = vmul.f32 %v804, %v970
  %v974 = vmul.f32 %v805, %v970
  %v975 = vld [vmem:[%s3] sm:$0x1]
  %v977 = vsel %vm724, %v975, 0
  %979 = vmatprep.subr.mxu0 0.0
  %980 = vmatpush1.msra.mxu0 %v723
  %981 = vmatprep.subr.mxu0 0.0
  %982 = vmatpush1.msra.mxu0 0.0
  %983 = vmatprep.subr.mxu0 0.0
  %984 = vmatpush1.msra.mxu0 0.0
  %985 = vmatprep.subr.mxu0 0.0
  %986 = vmatpush1.msra.mxu0 0.0
  %987 = vmatprep.subr.mxu0 0.0
  %988 = vmatpush1.msra.mxu0 0.0
  %989 = vmatprep.subr.mxu0 0.0
  %990 = vmatpush1.msra.mxu0 0.0
  %991 = vmatprep.subr.mxu0 0.0
  %992 = vmatpush1.msra.mxu0 0.0
  %993 = vmatprep.subr.mxu0 0.0
  %994 = vmatpush1.msra.mxu0 0.0
  %995 = vmatprep.subr.mxu0 0.0
  %996 = vmatpush1.msra.mxu0 0.0
  %997 = vmatprep.subr.mxu0 0.0
  %998 = vmatpush1.msra.mxu0 0.0
  %999 = vmatprep.subr.mxu0 0.0
  %1000 = vmatpush1.msra.mxu0 0.0
  %1001 = vmatprep.subr.mxu0 0.0
  %1002 = vmatpush1.msra.mxu0 0.0
  %1003 = vmatprep.subr.mxu0 0.0
  %1004 = vmatpush1.msra.mxu0 0.0
  %1005 = vmatprep.subr.mxu0 0.0
  %1006 = vmatpush1.msra.mxu0 0.0
  %1007 = vmatprep.subr.mxu0 0.0
  %1008 = vmatpush1.msra.mxu0 0.0
  %1009 = vmatprep.subr.mxu0 0.0
  %1010 = vmatpush1.msra.mxu0 0.0
  %1011 = vmatprep.subr.mxu0 0.0
  %1012 = vmatpush1.msra.mxu0 0.0
  %1013 = vmatprep.subr.mxu0 0.0
  %1014 = vmatpush1.msra.mxu0 0.0
  %1015 = vmatprep.subr.mxu0 0.0
  %1016 = vmatpush1.msra.mxu0 0.0
  %1017 = vmatprep.subr.mxu0 0.0
  %1018 = vmatpush1.msra.mxu0 0.0
  %1019 = vmatprep.subr.mxu0 0.0
  %1020 = vmatpush1.msra.mxu0 0.0
  %1021 = vmatprep.subr.mxu0 0.0
  %1022 = vmatpush1.msra.mxu0 0.0
  %1023 = vmatprep.subr.mxu0 0.0
  %1024 = vmatpush1.msra.mxu0 0.0
  %1025 = vmatprep.subr.mxu0 0.0
  %1026 = vmatpush1.msra.mxu0 0.0
  %1027 = vmatprep.subr.mxu0 0.0
  %1028 = vmatpush1.msra.mxu0 0.0
  %1029 = vmatprep.subr.mxu0 0.0
  %1030 = vmatpush1.msra.mxu0 0.0
  %1031 = vmatprep.subr.mxu0 0.0
  %1032 = vmatpush1.msra.mxu0 0.0
  %1033 = vmatprep.subr.mxu0 0.0
  %1034 = vmatpush1.msra.mxu0 0.0
  %1035 = vmatprep.subr.mxu0 0.0
  %1036 = vmatpush1.msra.mxu0 0.0
  %1037 = vmatprep.subr.mxu0 0.0
  %1038 = vmatpush1.msra.mxu0 0.0
  %1039 = vmatprep.subr.mxu0 0.0
  %1040 = vmatpush1.msra.mxu0 0.0
  %1041 = vmatprep.subr.mxu0 0.0
  %1042 = vmatpush1.msra.mxu0 0.0
  %1043 = vmatprep.mubr.f32.mxu0 0.0
  %1044 = vmatmul.mubr.f32.gmra.mrb[0].mxu0 %v977
  %v1045 = vpop.f32.mrb[0].mxu0
  %v1046 = vadd.f32 0.0, %v1045
  %v1047 = vpop.f32.mrb[0].mxu0
  %1048 = vdwg.mxu0
  %v1049 = vlaneseq
  %v1050 = vshrl.u32 %v1049, 7
  %v1051 = vsub.s32 0, %v1050
  %v1052 = vrot.slane %v1046, %v1051
  %v1053 = vadd.f32 %v971, %v1052
  %v1054 = vadd.f32 %v972, %v1052
  %v1055 = vadd.f32 %v973, %v1052
  %v1056 = vadd.f32 %v974, %v1052
  %vm1057 = vcmp.ge.f32.partialorder %v1053, 0.0
  %vm1058 = vcmp.ge.f32.partialorder %v1054, 0.0
  %vm1059 = vcmp.ge.f32.partialorder %v1055, 0.0
  %vm1060 = vcmp.ge.f32.partialorder %v1056, 0.0
  %v1061 = vmul.f32 %v1053, 0.01
  %v1062 = vmul.f32 %v1054, 0.01
  %v1063 = vmul.f32 %v1055, 0.01
  %v1064 = vmul.f32 %v1056, 0.01
  %v1065 = vsel %vm1057, %v1053, %v1061
  %v1066 = vsel %vm1058, %v1054, %v1062
  %v1067 = vsel %vm1059, %v1055, %v1063
  %v1068 = vsel %vm1060, %v1056, %v1064
  %v1069 = vpack.c.bf16 %v1066, %v1065
  %v1070 = vpack.c.bf16 %v1068, %v1067
  %v1073 = vunpack.c.l.b16 %v1069
  %v1074 = vunpack.c.h.b16 %v1069
  %v1075 = vunpack.c.l.b16 %v1070
  %v1076 = vunpack.c.h.b16 %v1070
  %v1077 = vpack.c.b16 %v1073, %v1073
  %v1078 = vpack.c.b16 %v1074, %v1074
  %v1079 = vpack.c.b16 %v1075, %v1075
  %v1080 = vpack.c.b16 %v1076, %v1076
  %1085 = vst [vmem:[%s6] sm:$0xf] %v1077
  %1086 = vst [vmem:[%s6 + $0x4] sm:$0xf] %v1078
  %1087 = vst [vmem:[%s6 + $0x8] sm:$0xf] %v1079
  %1088 = vst [vmem:[%s6 + $0xc] sm:$0xf] %v1080
  // Predicated region
  $region26: #{net_forward.4} parent=0 // pred_check
    _
  $region27: #{net_forward.4} parent=0 // pred_check_branch
    %1090 = sbr.rel (0) target = $region29
  $region28: #{net_forward.4} parent=0 // pred_region
    _
  $region29: #{net_forward.4} parent=0 // pred_fallthru
    _
  // Predicated region
  $region30: #{net_forward.4} parent=0 // pred_check
    _
  $region31: #{net_forward.4} parent=0 // pred_check_branch
    %1092 = sbr.rel (0) target = $region33
  $region32: #{net_forward.4} parent=0 // pred_region
    _
  $region33: #{net_forward.4} parent=0 // pred_fallthru
    _

// kernel: net_forward.5
$region0: #{net_forward.5}
  #allocation0 [shape = 'u32[]', space=smem, size = 0x4, offset = 0x4, fixed_abs, tag = 'smem constant byte address 0x4 - core index']
  #allocation1 [shape = 'u32[144,128]{1,0:T(1,128)}', space=vmem, size = 0x12000, scoped, tag = 'internal scratch']
  %s0 = inlined_call_operand.vmem [shape: bf16[16,1024], index: 0, kind: input, shape index: {}]
  %s1 = inlined_call_operand.vmem [shape: bf16[1024,128], index: 1, kind: input, shape index: {}]
  %s2 = inlined_call_operand.vmem [shape: f32[1,16], index: 2, kind: input, shape index: {}]
  %s3 = inlined_call_operand.vmem [shape: f32[1,16], index: 3, kind: input, shape index: {}]
  %s4 = inlined_call_operand.vmem [shape: f32[128,16], index: 4, kind: input, shape index: {}]
  %s5 = inlined_call_operand.vmem [shape: f32[16,128], index: 5, kind: input, shape index: {}]
  %s6 = inlined_call_operand.vmem [shape: bf16[16,128], index: 6, kind: output, shape index: {}]
  %s7 = sld [smem:[#allocation0]]
  $region34: #{net_forward.5} parent=0
    _
  %s9 = ssub.s32 1, %s7
  %s10 = scalar_select 0, %s9, %s7
  // Predicated region
  $region2: #{net_forward.5} parent=0 // pred_check
    _
  $region3: #{net_forward.5} parent=0 // pred_check_branch
    %12 = sbr.rel (0) target = $region5
  $region4: #{net_forward.5} parent=0 // pred_region
    _
  $region5: #{net_forward.5} parent=0 // pred_fallthru
    _
  // Predicated region
  $region6: #{net_forward.5} parent=0 // pred_check
    _
  $region7: #{net_forward.5} parent=0 // pred_check_branch
    %14 = sbr.rel (0) target = $region9
  $region8: #{net_forward.5} parent=0 // pred_region
    _
  $region9: #{net_forward.5} parent=0 // pred_fallthru
    _
  // Predicated region
  $region10: #{net_forward.5} parent=0 // pred_check
    _
  $region11: #{net_forward.5} parent=0 // pred_check_branch
    %16 = sbr.rel (0) target = $region13
  $region12: #{net_forward.5} parent=0 // pred_region
    _
  $region13: #{net_forward.5} parent=0 // pred_fallthru
    _
  // Predicated region
  $region14: #{net_forward.5} parent=0 // pred_check
    _
  $region15: #{net_forward.5} parent=0 // pred_check_branch
    %18 = sbr.rel (0) target = $region17
  $region16: #{net_forward.5} parent=0 // pred_region
    _
  $region17: #{net_forward.5} parent=0 // pred_fallthru
    _
  // Predicated region
  $region18: #{net_forward.5} parent=0 // pred_check
    _
  $region19: #{net_forward.5} parent=0 // pred_check_branch
    %20 = sbr.rel (0) target = $region21
  $region20: #{net_forward.5} parent=0 // pred_region
    _
  $region21: #{net_forward.5} parent=0 // pred_fallthru
    _
  // Predicated region
  $region22: #{net_forward.5} parent=0 // pred_check
    _
  $region23: #{net_forward.5} parent=0 // pred_check_branch
    %22 = sbr.rel (0) target = $region25
  $region24: #{net_forward.5} parent=0 // pred_region
    _
  $region25: #{net_forward.5} parent=0 // pred_fallthru
    _
  %v24 = vld [vmem:[%s0] sm:$0xff]
  %v25 = vld [vmem:[%s0 + $0x8] sm:$0xff]
  %v26 = vld [vmem:[%s0 + $0x10] sm:$0xff]
  %v27 = vld [vmem:[%s0 + $0x18] sm:$0xff]
  %v28 = vld [vmem:[%s0 + $0x20] sm:$0xff]
  %v29 = vld [vmem:[%s0 + $0x28] sm:$0xff]
  %v30 = vld [vmem:[%s0 + $0x30] sm:$0xff]
  %v31 = vld [vmem:[%s0 + $0x38] sm:$0xff]
  %v32 = vld [vmem:[%s1] sm:$0xf]
  %v33 = vld [vmem:[%s1 + $0x4] sm:$0xf]
  %v34 = vld [vmem:[%s1 + $0x8] sm:$0xf]
  %v35 = vld [vmem:[%s1 + $0xc] sm:$0xf]
  %v36 = vld [vmem:[%s1 + $0x10] sm:$0xf]
  %v37 = vld [vmem:[%s1 + $0x14] sm:$0xf]
  %v38 = vld [vmem:[%s1 + $0x18] sm:$0xf]
  %v39 = vld [vmem:[%s1 + $0x1c] sm:$0xf]
  %v40 = vld [vmem:[%s1 + $0x20] sm:$0xf]
  %v41 = vld [vmem:[%s1 + $0x24] sm:$0xf]
  %v42 = vld [vmem:[%s1 + $0x28] sm:$0xf]
  %v43 = vld [vmem:[%s1 + $0x2c] sm:$0xf]
  %v44 = vld [vmem:[%s1 + $0x30] sm:$0xf]
  %v45 = vld [vmem:[%s1 + $0x34] sm:$0xf]
  %v46 = vld [vmem:[%s1 + $0x38] sm:$0xf]
  %v47 = vld [vmem:[%s1 + $0x3c] sm:$0xf]
  %v48 = vld [vmem:[%s1 + $0x40] sm:$0xf]
  %v49 = vld [vmem:[%s1 + $0x44] sm:$0xf]
  %v50 = vld [vmem:[%s1 + $0x48] sm:$0xf]
  %v51 = vld [vmem:[%s1 + $0x4c] sm:$0xf]
  %v52 = vld [vmem:[%s1 + $0x50] sm:$0xf]
  %v53 = vld [vmem:[%s1 + $0x54] sm:$0xf]
  %v54 = vld [vmem:[%s1 + $0x58] sm:$0xf]
  %v55 = vld [vmem:[%s1 + $0x5c] sm:$0xf]
  %v56 = vld [vmem:[%s1 + $0x60] sm:$0xf]
  %v57 = vld [vmem:[%s1 + $0x64] sm:$0xf]
  %v58 = vld [vmem:[%s1 + $0x68] sm:$0xf]
  %v59 = vld [vmem:[%s1 + $0x6c] sm:$0xf]
  %v60 = vld [vmem:[%s1 + $0x70] sm:$0xf]
  %v61 = vld [vmem:[%s1 + $0x74] sm:$0xf]
  %v62 = vld [vmem:[%s1 + $0x78] sm:$0xf]
  %v63 = vld [vmem:[%s1 + $0x7c] sm:$0xf]
  %v64 = vld [vmem:[%s1 + $0x80] sm:$0xf]
  %v65 = vld [vmem:[%s1 + $0x84] sm:$0xf]
  %v66 = vld [vmem:[%s1 + $0x88] sm:$0xf]
  %v67 = vld [vmem:[%s1 + $0x8c] sm:$0xf]
  %v68 = vld [vmem:[%s1 + $0x90] sm:$0xf]
  %v69 = vld [vmem:[%s1 + $0x94] sm:$0xf]
  %v70 = vld [vmem:[%s1 + $0x98] sm:$0xf]
  %v71 = vld [vmem:[%s1 + $0x9c] sm:$0xf]
  %v72 = vld [vmem:[%s1 + $0xa0] sm:$0xf]
  %v73 = vld [vmem:[%s1 + $0xa4] sm:$0xf]
  %v74 = vld [vmem:[%s1 + $0xa8] sm:$0xf]
  %v75 = vld [vmem:[%s1 + $0xac] sm:$0xf]
  %v76 = vld [vmem:[%s1 + $0xb0] sm:$0xf]
  %v77 = vld [vmem:[%s1 + $0xb4] sm:$0xf]
  %v78 = vld [vmem:[%s1 + $0xb8] sm:$0xf]
  %v79 = vld [vmem:[%s1 + $0xbc] sm:$0xf]
  %v80 = vld [vmem:[%s1 + $0xc0] sm:$0xf]
  %v81 = vld [vmem:[%s1 + $0xc4] sm:$0xf]
  %v82 = vld [vmem:[%s1 + $0xc8] sm:$0xf]
  %v83 = vld [vmem:[%s1 + $0xcc] sm:$0xf]
  %v84 = vld [vmem:[%s1 + $0xd0] sm:$0xf]
  %v85 = vld [vmem:[%s1 + $0xd4] sm:$0xf]
  %v86 = vld [vmem:[%s1 + $0xd8] sm:$0xf]
  %v87 = vld [vmem:[%s1 + $0xdc] sm:$0xf]
  %v88 = vld [vmem:[%s1 + $0xe0] sm:$0xf]
  %v89 = vld [vmem:[%s1 + $0xe4] sm:$0xf]
  %v90 = vld [vmem:[%s1 + $0xe8] sm:$0xf]
  %v91 = vld [vmem:[%s1 + $0xec] sm:$0xf]
  %v92 = vld [vmem:[%s1 + $0xf0] sm:$0xf]
  %v93 = vld [vmem:[%s1 + $0xf4] sm:$0xf]
  %v94 = vld [vmem:[%s1 + $0xf8] sm:$0xf]
  %v95 = vld [vmem:[%s1 + $0xfc] sm:$0xf]
  %v96 = vld [vmem:[%s1 + $0x100] sm:$0xf]
  %v97 = vld [vmem:[%s1 + $0x104] sm:$0xf]
  %v98 = vld [vmem:[%s1 + $0x108] sm:$0xf]
  %v99 = vld [vmem:[%s1 + $0x10c] sm:$0xf]
  %v100 = vld [vmem:[%s1 + $0x110] sm:$0xf]
  %v101 = vld [vmem:[%s1 + $0x114] sm:$0xf]
  %v102 = vld [vmem:[%s1 + $0x118] sm:$0xf]
  %v103 = vld [vmem:[%s1 + $0x11c] sm:$0xf]
  %v104 = vld [vmem:[%s1 + $0x120] sm:$0xf]
  %v105 = vld [vmem:[%s1 + $0x124] sm:$0xf]
  %v106 = vld [vmem:[%s1 + $0x128] sm:$0xf]
  %v107 = vld [vmem:[%s1 + $0x12c] sm:$0xf]
  %v108 = vld [vmem:[%s1 + $0x130] sm:$0xf]
  %v109 = vld [vmem:[%s1 + $0x134] sm:$0xf]
  %v110 = vld [vmem:[%s1 + $0x138] sm:$0xf]
  %v111 = vld [vmem:[%s1 + $0x13c] sm:$0xf]
  %v112 = vld [vmem:[%s1 + $0x140] sm:$0xf]
  %v113 = vld [vmem:[%s1 + $0x144] sm:$0xf]
  %v114 = vld [vmem:[%s1 + $0x148] sm:$0xf]
  %v115 = vld [vmem:[%s1 + $0x14c] sm:$0xf]
  %v116 = vld [vmem:[%s1 + $0x150] sm:$0xf]
  %v117 = vld [vmem:[%s1 + $0x154] sm:$0xf]
  %v118 = vld [vmem:[%s1 + $0x158] sm:$0xf]
  %v119 = vld [vmem:[%s1 + $0x15c] sm:$0xf]
  %v120 = vld [vmem:[%s1 + $0x160] sm:$0xf]
  %v121 = vld [vmem:[%s1 + $0x164] sm:$0xf]
  %v122 = vld [vmem:[%s1 + $0x168] sm:$0xf]
  %v123 = vld [vmem:[%s1 + $0x16c] sm:$0xf]
  %v124 = vld [vmem:[%s1 + $0x170] sm:$0xf]
  %v125 = vld [vmem:[%s1 + $0x174] sm:$0xf]
  %v126 = vld [vmem:[%s1 + $0x178] sm:$0xf]
  %v127 = vld [vmem:[%s1 + $0x17c] sm:$0xf]
  %v128 = vld [vmem:[%s1 + $0x180] sm:$0xf]
  %v129 = vld [vmem:[%s1 + $0x184] sm:$0xf]
  %v130 = vld [vmem:[%s1 + $0x188] sm:$0xf]
  %v131 = vld [vmem:[%s1 + $0x18c] sm:$0xf]
  %v132 = vld [vmem:[%s1 + $0x190] sm:$0xf]
  %v133 = vld [vmem:[%s1 + $0x194] sm:$0xf]
  %v134 = vld [vmem:[%s1 + $0x198] sm:$0xf]
  %v135 = vld [vmem:[%s1 + $0x19c] sm:$0xf]
  %v136 = vld [vmem:[%s1 + $0x1a0] sm:$0xf]
  %v137 = vld [vmem:[%s1 + $0x1a4] sm:$0xf]
  %v138 = vld [vmem:[%s1 + $0x1a8] sm:$0xf]
  %v139 = vld [vmem:[%s1 + $0x1ac] sm:$0xf]
  %v140 = vld [vmem:[%s1 + $0x1b0] sm:$0xf]
  %v141 = vld [vmem:[%s1 + $0x1b4] sm:$0xf]
  %v142 = vld [vmem:[%s1 + $0x1b8] sm:$0xf]
  %v143 = vld [vmem:[%s1 + $0x1bc] sm:$0xf]
  %v144 = vld [vmem:[%s1 + $0x1c0] sm:$0xf]
  %v145 = vld [vmem:[%s1 + $0x1c4] sm:$0xf]
  %v146 = vld [vmem:[%s1 + $0x1c8] sm:$0xf]
  %v147 = vld [vmem:[%s1 + $0x1cc] sm:$0xf]
  %v148 = vld [vmem:[%s1 + $0x1d0] sm:$0xf]
  %v149 = vld [vmem:[%s1 + $0x1d4] sm:$0xf]
  %v150 = vld [vmem:[%s1 + $0x1d8] sm:$0xf]
  %v151 = vld [vmem:[%s1 + $0x1dc] sm:$0xf]
  %v152 = vld [vmem:[%s1 + $0x1e0] sm:$0xf]
  %v153 = vld [vmem:[%s1 + $0x1e4] sm:$0xf]
  %v154 = vld [vmem:[%s1 + $0x1e8] sm:$0xf]
  %v155 = vld [vmem:[%s1 + $0x1ec] sm:$0xf]
  %v156 = vld [vmem:[%s1 + $0x1f0] sm:$0xf]
  %v157 = vld [vmem:[%s1 + $0x1f4] sm:$0xf]
  %v158 = vld [vmem:[%s1 + $0x1f8] sm:$0xf]
  %v159 = vld [vmem:[%s1 + $0x1fc] sm:$0xf]
  %v168 = vunpack.c.l.b16 %v24
  %v169 = vunpack.c.h.b16 %v24
  %v170 = vunpack.c.l.b16 %v25
  %v171 = vunpack.c.h.b16 %v25
  %v172 = vunpack.c.l.b16 %v26
  %v173 = vunpack.c.h.b16 %v26
  %v174 = vunpack.c.l.b16 %v27
  %v175 = vunpack.c.h.b16 %v27
  %v176 = vunpack.c.l.b16 %v28
  %v177 = vunpack.c.h.b16 %v28
  %v178 = vunpack.c.l.b16 %v29
  %v179 = vunpack.c.h.b16 %v29
  %v180 = vunpack.c.l.b16 %v30
  %v181 = vunpack.c.h.b16 %v30
  %v182 = vunpack.c.l.b16 %v31
  %v183 = vunpack.c.h.b16 %v31
  %v184 = vpack.c.b16 %v176, %v168
  %v185 = vpack.c.b16 %v177, %v169
  %v186 = vpack.c.b16 %v178, %v170
  %v187 = vpack.c.b16 %v179, %v171
  %v188 = vpack.c.b16 %v180, %v172
  %v189 = vpack.c.b16 %v181, %v173
  %v190 = vpack.c.b16 %v182, %v174
  %v191 = vpack.c.b16 %v183, %v175
  %v328 = vunpack.c.l.b16 %v32
  %v329 = vunpack.c.l.b16 %v33
  %v330 = vunpack.c.l.b16 %v34
  %v331 = vunpack.c.l.b16 %v35
  %v332 = vunpack.c.l.b16 %v36
  %v333 = vunpack.c.l.b16 %v37
  %v334 = vunpack.c.l.b16 %v38
  %v335 = vunpack.c.l.b16 %v39
  %v336 = vunpack.c.l.b16 %v40
  %v337 = vunpack.c.l.b16 %v41
  %v338 = vunpack.c.l.b16 %v42
  %v339 = vunpack.c.l.b16 %v43
  %v340 = vunpack.c.l.b16 %v44
  %v341 = vunpack.c.l.b16 %v45
  %v342 = vunpack.c.l.b16 %v46
  %v343 = vunpack.c.l.b16 %v47
  %v344 = vunpack.c.l.b16 %v48
  %v345 = vunpack.c.l.b16 %v49
  %v346 = vunpack.c.l.b16 %v50
  %v347 = vunpack.c.l.b16 %v51
  %v348 = vunpack.c.l.b16 %v52
  %v349 = vunpack.c.l.b16 %v53
  %v350 = vunpack.c.l.b16 %v54
  %v351 = vunpack.c.l.b16 %v55
  %v352 = vunpack.c.l.b16 %v56
  %v353 = vunpack.c.l.b16 %v57
  %v354 = vunpack.c.l.b16 %v58
  %v355 = vunpack.c.l.b16 %v59
  %v356 = vunpack.c.l.b16 %v60
  %v357 = vunpack.c.l.b16 %v61
  %v358 = vunpack.c.l.b16 %v62
  %v359 = vunpack.c.l.b16 %v63
  %v360 = vunpack.c.l.b16 %v64
  %v361 = vunpack.c.l.b16 %v65
  %v362 = vunpack.c.l.b16 %v66
  %v363 = vunpack.c.l.b16 %v67
  %v364 = vunpack.c.l.b16 %v68
  %v365 = vunpack.c.l.b16 %v69
  %v366 = vunpack.c.l.b16 %v70
  %v367 = vunpack.c.l.b16 %v71
  %v368 = vunpack.c.l.b16 %v72
  %v369 = vunpack.c.l.b16 %v73
  %v370 = vunpack.c.l.b16 %v74
  %v371 = vunpack.c.l.b16 %v75
  %v372 = vunpack.c.l.b16 %v76
  %v373 = vunpack.c.l.b16 %v77
  %v374 = vunpack.c.l.b16 %v78
  %v375 = vunpack.c.l.b16 %v79
  %v376 = vunpack.c.l.b16 %v80
  %v377 = vunpack.c.l.b16 %v81
  %v378 = vunpack.c.l.b16 %v82
  %v379 = vunpack.c.l.b16 %v83
  %v380 = vunpack.c.l.b16 %v84
  %v381 = vunpack.c.l.b16 %v85
  %v382 = vunpack.c.l.b16 %v86
  %v383 = vunpack.c.l.b16 %v87
  %v384 = vunpack.c.l.b16 %v88
  %v385 = vunpack.c.l.b16 %v89
  %v386 = vunpack.c.l.b16 %v90
  %v387 = vunpack.c.l.b16 %v91
  %v388 = vunpack.c.l.b16 %v92
  %v389 = vunpack.c.l.b16 %v93
  %v390 = vunpack.c.l.b16 %v94
  %v391 = vunpack.c.l.b16 %v95
  %v392 = vunpack.c.l.b16 %v96
  %v393 = vunpack.c.l.b16 %v97
  %v394 = vunpack.c.l.b16 %v98
  %v395 = vunpack.c.l.b16 %v99
  %v396 = vunpack.c.l.b16 %v100
  %v397 = vunpack.c.l.b16 %v101
  %v398 = vunpack.c.l.b16 %v102
  %v399 = vunpack.c.l.b16 %v103
  %v400 = vunpack.c.l.b16 %v104
  %v401 = vunpack.c.l.b16 %v105
  %v402 = vunpack.c.l.b16 %v106
  %v403 = vunpack.c.l.b16 %v107
  %v404 = vunpack.c.l.b16 %v108
  %v405 = vunpack.c.l.b16 %v109
  %v406 = vunpack.c.l.b16 %v110
  %v407 = vunpack.c.l.b16 %v111
  %v408 = vunpack.c.l.b16 %v112
  %v409 = vunpack.c.l.b16 %v113
  %v410 = vunpack.c.l.b16 %v114
  %v411 = vunpack.c.l.b16 %v115
  %v412 = vunpack.c.l.b16 %v116
  %v413 = vunpack.c.l.b16 %v117
  %v414 = vunpack.c.l.b16 %v118
  %v415 = vunpack.c.l.b16 %v119
  %v416 = vunpack.c.l.b16 %v120
  %v417 = vunpack.c.l.b16 %v121
  %v418 = vunpack.c.l.b16 %v122
  %v419 = vunpack.c.l.b16 %v123
  %v420 = vunpack.c.l.b16 %v124
  %v421 = vunpack.c.l.b16 %v125
  %v422 = vunpack.c.l.b16 %v126
  %v423 = vunpack.c.l.b16 %v127
  %v424 = vunpack.c.l.b16 %v128
  %v425 = vunpack.c.l.b16 %v129
  %v426 = vunpack.c.l.b16 %v130
  %v427 = vunpack.c.l.b16 %v131
  %v428 = vunpack.c.l.b16 %v132
  %v429 = vunpack.c.l.b16 %v133
  %v430 = vunpack.c.l.b16 %v134
  %v431 = vunpack.c.l.b16 %v135
  %v432 = vunpack.c.l.b16 %v136
  %v433 = vunpack.c.l.b16 %v137
  %v434 = vunpack.c.l.b16 %v138
  %v435 = vunpack.c.l.b16 %v139
  %v436 = vunpack.c.l.b16 %v140
  %v437 = vunpack.c.l.b16 %v141
  %v438 = vunpack.c.l.b16 %v142
  %v439 = vunpack.c.l.b16 %v143
  %v440 = vunpack.c.l.b16 %v144
  %v441 = vunpack.c.l.b16 %v145
  %v442 = vunpack.c.l.b16 %v146
  %v443 = vunpack.c.l.b16 %v147
  %v444 = vunpack.c.l.b16 %v148
  %v445 = vunpack.c.l.b16 %v149
  %v446 = vunpack.c.l.b16 %v150
  %v447 = vunpack.c.l.b16 %v151
  %v448 = vunpack.c.l.b16 %v152
  %v449 = vunpack.c.l.b16 %v153
  %v450 = vunpack.c.l.b16 %v154
  %v451 = vunpack.c.l.b16 %v155
  %v452 = vunpack.c.l.b16 %v156
  %v453 = vunpack.c.l.b16 %v157
  %v454 = vunpack.c.l.b16 %v158
  %v455 = vunpack.c.l.b16 %v159
  %v456 = vpack.c.b16 %v329, %v328
  %v457 = vpack.c.b16 %v331, %v330
  %v458 = vpack.c.b16 %v333, %v332
  %v459 = vpack.c.b16 %v335, %v334
  %v460 = vpack.c.b16 %v337, %v336
  %v461 = vpack.c.b16 %v339, %v338
  %v462 = vpack.c.b16 %v341, %v340
  %v463 = vpack.c.b16 %v343, %v342
  %v464 = vpack.c.b16 %v345, %v344
  %v465 = vpack.c.b16 %v347, %v346
  %v466 = vpack.c.b16 %v349, %v348
  %v467 = vpack.c.b16 %v351, %v350
  %v468 = vpack.c.b16 %v353, %v352
  %v469 = vpack.c.b16 %v355, %v354
  %v470 = vpack.c.b16 %v357, %v356
  %v471 = vpack.c.b16 %v359, %v358
  %v472 = vpack.c.b16 %v361, %v360
  %v473 = vpack.c.b16 %v363, %v362
  %v474 = vpack.c.b16 %v365, %v364
  %v475 = vpack.c.b16 %v367, %v366
  %v476 = vpack.c.b16 %v369, %v368
  %v477 = vpack.c.b16 %v371, %v370
  %v478 = vpack.c.b16 %v373, %v372
  %v479 = vpack.c.b16 %v375, %v374
  %v480 = vpack.c.b16 %v377, %v376
  %v481 = vpack.c.b16 %v379, %v378
  %v482 = vpack.c.b16 %v381, %v380
  %v483 = vpack.c.b16 %v383, %v382
  %v484 = vpack.c.b16 %v385, %v384
  %v485 = vpack.c.b16 %v387, %v386
  %v486 = vpack.c.b16 %v389, %v388
  %v487 = vpack.c.b16 %v391, %v390
  %v488 = vpack.c.b16 %v393, %v392
  %v489 = vpack.c.b16 %v395, %v394
  %v490 = vpack.c.b16 %v397, %v396
  %v491 = vpack.c.b16 %v399, %v398
  %v492 = vpack.c.b16 %v401, %v400
  %v493 = vpack.c.b16 %v403, %v402
  %v494 = vpack.c.b16 %v405, %v404
  %v495 = vpack.c.b16 %v407, %v406
  %v496 = vpack.c.b16 %v409, %v408
  %v497 = vpack.c.b16 %v411, %v410
  %v498 = vpack.c.b16 %v413, %v412
  %v499 = vpack.c.b16 %v415, %v414
  %v500 = vpack.c.b16 %v417, %v416
  %v501 = vpack.c.b16 %v419, %v418
  %v502 = vpack.c.b16 %v421, %v420
  %v503 = vpack.c.b16 %v423, %v422
  %v504 = vpack.c.b16 %v425, %v424
  %v505 = vpack.c.b16 %v427, %v426
  %v506 = vpack.c.b16 %v429, %v428
  %v507 = vpack.c.b16 %v431, %v430
  %v508 = vpack.c.b16 %v433, %v432
  %v509 = vpack.c.b16 %v435, %v434
  %v510 = vpack.c.b16 %v437, %v436
  %v511 = vpack.c.b16 %v439, %v438
  %v512 = vpack.c.b16 %v441, %v440
  %v513 = vpack.c.b16 %v443, %v442
  %v514 = vpack.c.b16 %v445, %v444
  %v515 = vpack.c.b16 %v447, %v446
  %v516 = vpack.c.b16 %v449, %v448
  %v517 = vpack.c.b16 %v451, %v450
  %v518 = vpack.c.b16 %v453, %v452
  %v519 = vpack.c.b16 %v455, %v454
  %584 = vmatprep.subr.bf16.mxu0 0
  %585 = vmatpush1.bf16.msra.mxu0 %v456
  %586 = vmatprep.subr.bf16.mxu0 0
  %587 = vmatpush1.bf16.msra.mxu0 %v457
  %588 = vmatprep.subr.bf16.mxu0 0
  %589 = vmatpush1.bf16.msra.mxu0 %v458
  %590 = vmatprep.subr.bf16.mxu0 0
  %591 = vmatpush1.bf16.msra.mxu0 %v459
  %592 = vmatprep.subr.bf16.mxu0 0
  %593 = vmatpush1.bf16.msra.mxu0 %v460
  %594 = vmatprep.subr.bf16.mxu0 0
  %595 = vmatpush1.bf16.msra.mxu0 %v461
  %596 = vmatprep.subr.bf16.mxu0 0
  %597 = vmatpush1.bf16.msra.mxu0 %v462
  %598 = vmatprep.subr.bf16.mxu0 0
  %599 = vmatpush1.bf16.msra.mxu0 %v463
  %600 = vmatprep.subr.bf16.mxu0 0
  %601 = vmatpush1.bf16.msra.mxu0 %v464
  %602 = vmatprep.subr.bf16.mxu0 0
  %603 = vmatpush1.bf16.msra.mxu0 %v465
  %604 = vmatprep.subr.bf16.mxu0 0
  %605 = vmatpush1.bf16.msra.mxu0 %v466
  %606 = vmatprep.subr.bf16.mxu0 0
  %607 = vmatpush1.bf16.msra.mxu0 %v467
  %608 = vmatprep.subr.bf16.mxu0 0
  %609 = vmatpush1.bf16.msra.mxu0 %v468
  %610 = vmatprep.subr.bf16.mxu0 0
  %611 = vmatpush1.bf16.msra.mxu0 %v469
  %612 = vmatprep.subr.bf16.mxu0 0
  %613 = vmatpush1.bf16.msra.mxu0 %v470
  %614 = vmatprep.subr.bf16.mxu0 0
  %615 = vmatpush1.bf16.msra.mxu0 %v471
  %616 = vmatprep.mubr.bf16.mxu0 %v185
  %617 = vmatmul.mubr.bf16.gmra.mrb[0].mxu0 %v184
  %v618 = vpop.f32.mrb[0].mxu0
  %v619 = vadd.f32 0.0, %v618
  %v620 = vpop.f32.mrb[0].mxu0
  %v621 = vpop.f32.mrb[0].mxu0
  %v622 = vadd.f32 0.0, %v621
  %v623 = vpop.f32.mrb[0].mxu0
  %624 = vdwg.mxu0
  %625 = vmatprep.subr.bf16.mxu0 0
  %626 = vmatpush1.bf16.msra.mxu0 %v472
  %627 = vmatprep.subr.bf16.mxu0 0
  %628 = vmatpush1.bf16.msra.mxu0 %v473
  %629 = vmatprep.subr.bf16.mxu0 0
  %630 = vmatpush1.bf16.msra.mxu0 %v474
  %631 = vmatprep.subr.bf16.mxu0 0
  %632 = vmatpush1.bf16.msra.mxu0 %v475
  %633 = vmatprep.subr.bf16.mxu0 0
  %634 = vmatpush1.bf16.msra.mxu0 %v476
  %635 = vmatprep.subr.bf16.mxu0 0
  %636 = vmatpush1.bf16.msra.mxu0 %v477
  %637 = vmatprep.subr.bf16.mxu0 0
  %638 = vmatpush1.bf16.msra.mxu0 %v478
  %639 = vmatprep.subr.bf16.mxu0 0
  %640 = vmatpush1.bf16.msra.mxu0 %v479
  %641 = vmatprep.subr.bf16.mxu0 0
  %642 = vmatpush1.bf16.msra.mxu0 %v480
  %643 = vmatprep.subr.bf16.mxu0 0
  %644 = vmatpush1.bf16.msra.mxu0 %v481
  %645 = vmatprep.subr.bf16.mxu0 0
  %646 = vmatpush1.bf16.msra.mxu0 %v482
  %647 = vmatprep.subr.bf16.mxu0 0
  %648 = vmatpush1.bf16.msra.mxu0 %v483
  %649 = vmatprep.subr.bf16.mxu0 0
  %650 = vmatpush1.bf16.msra.mxu0 %v484
  %651 = vmatprep.subr.bf16.mxu0 0
  %652 = vmatpush1.bf16.msra.mxu0 %v485
  %653 = vmatprep.subr.bf16.mxu0 0
  %654 = vmatpush1.bf16.msra.mxu0 %v486
  %655 = vmatprep.subr.bf16.mxu0 0
  %656 = vmatpush1.bf16.msra.mxu0 %v487
  %657 = vmatprep.mubr.bf16.mxu0 %v187
  %658 = vmatmul.mubr.bf16.gmra.mrb[0].mxu0 %v186
  %v659 = vpop.f32.mrb[0].mxu0
  %v660 = vadd.f32 %v619, %v659
  %v661 = vpop.f32.mrb[0].mxu0
  %v662 = vpop.f32.mrb[0].mxu0
  %v663 = vadd.f32 %v622, %v662
  %v664 = vpop.f32.mrb[0].mxu0
  %665 = vdwg.mxu0
  %666 = vmatprep.subr.bf16.mxu0 0
  %667 = vmatpush1.bf16.msra.mxu0 %v488
  %668 = vmatprep.subr.bf16.mxu0 0
  %669 = vmatpush1.bf16.msra.mxu0 %v489
  %670 = vmatprep.subr.bf16.mxu0 0
  %671 = vmatpush1.bf16.msra.mxu0 %v490
  %672 = vmatprep.subr.bf16.mxu0 0
  %673 = vmatpush1.bf16.msra.mxu0 %v491
  %674 = vmatprep.subr.bf16.mxu0 0
  %675 = vmatpush1.bf16.msra.mxu0 %v492
  %676 = vmatprep.subr.bf16.mxu0 0
  %677 = vmatpush1.bf16.msra.mxu0 %v493
  %678 = vmatprep.subr.bf16.mxu0 0
  %679 = vmatpush1.bf16.msra.mxu0 %v494
  %680 = vmatprep.subr.bf16.mxu0 0
  %681 = vmatpush1.bf16.msra.mxu0 %v495
  %682 = vmatprep.subr.bf16.mxu0 0
  %683 = vmatpush1.bf16.msra.mxu0 %v496
  %684 = vmatprep.subr.bf16.mxu0 0
  %685 = vmatpush1.bf16.msra.mxu0 %v497
  %686 = vmatprep.subr.bf16.mxu0 0
  %687 = vmatpush1.bf16.msra.mxu0 %v498
  %688 = vmatprep.subr.bf16.mxu0 0
  %689 = vmatpush1.bf16.msra.mxu0 %v499
  %690 = vmatprep.subr.bf16.mxu0 0
  %691 = vmatpush1.bf16.msra.mxu0 %v500
  %692 = vmatprep.subr.bf16.mxu0 0
  %693 = vmatpush1.bf16.msra.mxu0 %v501
  %694 = vmatprep.subr.bf16.mxu0 0
  %695 = vmatpush1.bf16.msra.mxu0 %v502
  %696 = vmatprep.subr.bf16.mxu0 0
  %697 = vmatpush1.bf16.msra.mxu0 %v503
  %698 = vmatprep.mubr.bf16.mxu0 %v189
  %699 = vmatmul.mubr.bf16.gmra.mrb[0].mxu0 %v188
  %v700 = vpop.f32.mrb[0].mxu0
  %v701 = vadd.f32 %v660, %v700
  %v702 = vpop.f32.mrb[0].mxu0
  %v703 = vpop.f32.mrb[0].mxu0
  %v704 = vadd.f32 %v663, %v703
  %v705 = vpop.f32.mrb[0].mxu0
  %706 = vdwg.mxu0
  %707 = vmatprep.subr.bf16.mxu0 0
  %708 = vmatpush1.bf16.msra.mxu0 %v504
  %709 = vmatprep.subr.bf16.mxu0 0
  %710 = vmatpush1.bf16.msra.mxu0 %v505
  %711 = vmatprep.subr.bf16.mxu0 0
  %712 = vmatpush1.bf16.msra.mxu0 %v506
  %713 = vmatprep.subr.bf16.mxu0 0
  %714 = vmatpush1.bf16.msra.mxu0 %v507
  %715 = vmatprep.subr.bf16.mxu0 0
  %716 = vmatpush1.bf16.msra.mxu0 %v508
  %717 = vmatprep.subr.bf16.mxu0 0
  %718 = vmatpush1.bf16.msra.mxu0 %v509
  %719 = vmatprep.subr.bf16.mxu0 0
  %720 = vmatpush1.bf16.msra.mxu0 %v510
  %721 = vmatprep.subr.bf16.mxu0 0
  %722 = vmatpush1.bf16.msra.mxu0 %v511
  %723 = vmatprep.subr.bf16.mxu0 0
  %724 = vmatpush1.bf16.msra.mxu0 %v512
  %725 = vmatprep.subr.bf16.mxu0 0
  %726 = vmatpush1.bf16.msra.mxu0 %v513
  %727 = vmatprep.subr.bf16.mxu0 0
  %728 = vmatpush1.bf16.msra.mxu0 %v514
  %729 = vmatprep.subr.bf16.mxu0 0
  %730 = vmatpush1.bf16.msra.mxu0 %v515
  %731 = vmatprep.subr.bf16.mxu0 0
  %732 = vmatpush1.bf16.msra.mxu0 %v516
  %733 = vmatprep.subr.bf16.mxu0 0
  %734 = vmatpush1.bf16.msra.mxu0 %v517
  %735 = vmatprep.subr.bf16.mxu0 0
  %736 = vmatpush1.bf16.msra.mxu0 %v518
  %737 = vmatprep.subr.bf16.mxu0 0
  %738 = vmatpush1.bf16.msra.mxu0 %v519
  %739 = vmatprep.mubr.bf16.mxu0 %v191
  %740 = vmatmul.mubr.bf16.gmra.mrb[0].mxu0 %v190
  %v741 = vpop.f32.mrb[0].mxu0
  %v742 = vadd.f32 %v701, %v741
  %v743 = vpop.f32.mrb[0].mxu0
  %v744 = vpop.f32.mrb[0].mxu0
  %v745 = vadd.f32 %v704, %v744
  %v746 = vpop.f32.mrb[0].mxu0
  %747 = vdwg.mxu0
  %v748 = vadd.f32 %v742, %v745
  %v749 = vrot.slane %v748, 4
  %v750 = vadd.f32 %v748, %v749
  %v751 = vrot.slane %v750, 2
  %v752 = vadd.f32 %v750, %v751
  %v753 = vrot.slane %v752, 1
  %v754 = vadd.f32 %v752, %v753
  %v755 = vld [vmem:[%s4] sm:$0xff]
  %v756 = vld [vmem:[%s4 + $0x8] sm:$0xff]
  %v757 = vld [vmem:[%s4 + $0x10] sm:$0xff]
  %v758 = vld [vmem:[%s4 + $0x18] sm:$0xff]
  %v759 = vld [vmem:[%s4 + $0x20] sm:$0xff]
  %v760 = vld [vmem:[%s4 + $0x28] sm:$0xff]
  %v761 = vld [vmem:[%s4 + $0x30] sm:$0xff]
  %v762 = vld [vmem:[%s4 + $0x38] sm:$0xff]
  %v763 = vld [vmem:[%s4 + $0x40] sm:$0xff]
  %v764 = vld [vmem:[%s4 + $0x48] sm:$0xff]
  %v765 = vld [vmem:[%s4 + $0x50] sm:$0xff]
  %v766 = vld [vmem:[%s4 + $0x58] sm:$0xff]
  %v767 = vld [vmem:[%s4 + $0x60] sm:$0xff]
  %v768 = vld [vmem:[%s4 + $0x68] sm:$0xff]
  %v769 = vld [vmem:[%s4 + $0x70] sm:$0xff]
  %v770 = vld [vmem:[%s4 + $0x78] sm:$0xff]
  %771 = vmatprep.subr.mxu0 0.0
  %772 = vmatpush1.msra.mxu0 %v755
  %773 = vmatprep.subr.mxu0 0.0
  %774 = vmatpush1.msra.mxu0 %v756
  %775 = vmatprep.subr.mxu0 0.0
  %776 = vmatpush1.msra.mxu0 %v757
  %777 = vmatprep.subr.mxu0 0.0
  %778 = vmatpush1.msra.mxu0 %v758
  %779 = vmatprep.subr.mxu0 0.0
  %780 = vmatpush1.msra.mxu0 %v759
  %781 = vmatprep.subr.mxu0 0.0
  %782 = vmatpush1.msra.mxu0 %v760
  %783 = vmatprep.subr.mxu0 0.0
  %784 = vmatpush1.msra.mxu0 %v761
  %785 = vmatprep.subr.mxu0 0.0
  %786 = vmatpush1.msra.mxu0 %v762
  %787 = vmatprep.subr.mxu0 0.0
  %788 = vmatpush1.msra.mxu0 %v763
  %789 = vmatprep.subr.mxu0 0.0
  %790 = vmatpush1.msra.mxu0 %v764
  %791 = vmatprep.subr.mxu0 0.0
  %792 = vmatpush1.msra.mxu0 %v765
  %793 = vmatprep.subr.mxu0 0.0
  %794 = vmatpush1.msra.mxu0 %v766
  %795 = vmatprep.subr.mxu0 0.0
  %796 = vmatpush1.msra.mxu0 %v767
  %797 = vmatprep.subr.mxu0 0.0
  %798 = vmatpush1.msra.mxu0 %v768
  %799 = vmatprep.subr.mxu0 0.0
  %800 = vmatpush1.msra.mxu0 %v769
  %801 = vmatprep.subr.mxu0 0.0
  %802 = vmatpush1.msra.mxu0 %v770
  %803 = vmatprep.subr.mxu0 0.0
  %804 = vmatpush1.msra.mxu0 0.0
  %805 = vmatprep.subr.mxu0 0.0
  %806 = vmatpush1.msra.mxu0 0.0
  %807 = vmatprep.subr.mxu0 0.0
  %808 = vmatpush1.msra.mxu0 0.0
  %809 = vmatprep.subr.mxu0 0.0
  %810 = vmatpush1.msra.mxu0 0.0
  %811 = vmatprep.subr.mxu0 0.0
  %812 = vmatpush1.msra.mxu0 0.0
  %813 = vmatprep.subr.mxu0 0.0
  %814 = vmatpush1.msra.mxu0 0.0
  %815 = vmatprep.subr.mxu0 0.0
  %816 = vmatpush1.msra.mxu0 0.0
  %817 = vmatprep.subr.mxu0 0.0
  %818 = vmatpush1.msra.mxu0 0.0
  %819 = vmatprep.subr.mxu0 0.0
  %820 = vmatpush1.msra.mxu0 0.0
  %821 = vmatprep.subr.mxu0 0.0
  %822 = vmatpush1.msra.mxu0 0.0
  %823 = vmatprep.subr.mxu0 0.0
  %824 = vmatpush1.msra.mxu0 0.0
  %825 = vmatprep.subr.mxu0 0.0
  %826 = vmatpush1.msra.mxu0 0.0
  %827 = vmatprep.subr.mxu0 0.0
  %828 = vmatpush1.msra.mxu0 0.0
  %829 = vmatprep.subr.mxu0 0.0
  %830 = vmatpush1.msra.mxu0 0.0
  %831 = vmatprep.subr.mxu0 0.0
  %832 = vmatpush1.msra.mxu0 0.0
  %833 = vmatprep.subr.mxu0 0.0
  %834 = vmatpush1.msra.mxu0 0.0
  %835 = vmatprep.mubr.f32.mxu0 0.0
  %836 = vmatmul.mubr.f32.gmra.mrb[0].mxu0 %v754
  %v837 = vpop.f32.mrb[0].mxu0
  %v838 = vadd.f32 0.0, %v837
  %v839 = vpop.f32.mrb[0].mxu0
  %840 = vdwg.mxu0
  %v841 = vmul.f32 %v838, 0.0078125
  %v842 = vld [vmem:[%s5] sm:$0xff]
  %v843 = vld [vmem:[%s5 + $0x8] sm:$0xff]
  %vm844 = vcmask 130048
  %v846 = vsel %vm844, %v841, 0
  %848 = vmatprep.subr.mxu0 0.0
  %849 = vmatpush1.msra.mxu0 %v842
  %850 = vmatprep.subr.mxu0 0.0
  %851 = vmatpush1.msra.mxu0 %v843
  %852 = vmatprep.subr.mxu0 0.0
  %853 = vmatpush1.msra.mxu0 0.0
  %854 = vmatprep.subr.mxu0 0.0
  %855 = vmatpush1.msra.mxu0 0.0
  %856 = vmatprep.subr.mxu0 0.0
  %857 = vmatpush1.msra.mxu0 0.0
  %858 = vmatprep.subr.mxu0 0.0
  %859 = vmatpush1.msra.mxu0 0.0
  %860 = vmatprep.subr.mxu0 0.0
  %861 = vmatpush1.msra.mxu0 0.0
  %862 = vmatprep.subr.mxu0 0.0
  %863 = vmatpush1.msra.mxu0 0.0
  %864 = vmatprep.subr.mxu0 0.0
  %865 = vmatpush1.msra.mxu0 0.0
  %866 = vmatprep.subr.mxu0 0.0
  %867 = vmatpush1.msra.mxu0 0.0
  %868 = vmatprep.subr.mxu0 0.0
  %869 = vmatpush1.msra.mxu0 0.0
  %870 = vmatprep.subr.mxu0 0.0
  %871 = vmatpush1.msra.mxu0 0.0
  %872 = vmatprep.subr.mxu0 0.0
  %873 = vmatpush1.msra.mxu0 0.0
  %874 = vmatprep.subr.mxu0 0.0
  %875 = vmatpush1.msra.mxu0 0.0
  %876 = vmatprep.subr.mxu0 0.0
  %877 = vmatpush1.msra.mxu0 0.0
  %878 = vmatprep.subr.mxu0 0.0
  %879 = vmatpush1.msra.mxu0 0.0
  %880 = vmatprep.subr.mxu0 0.0
  %881 = vmatpush1.msra.mxu0 0.0
  %882 = vmatprep.subr.mxu0 0.0
  %883 = vmatpush1.msra.mxu0 0.0
  %884 = vmatprep.subr.mxu0 0.0
  %885 = vmatpush1.msra.mxu0 0.0
  %886 = vmatprep.subr.mxu0 0.0
  %887 = vmatpush1.msra.mxu0 0.0
  %888 = vmatprep.subr.mxu0 0.0
  %889 = vmatpush1.msra.mxu0 0.0
  %890 = vmatprep.subr.mxu0 0.0
  %891 = vmatpush1.msra.mxu0 0.0
  %892 = vmatprep.subr.mxu0 0.0
  %893 = vmatpush1.msra.mxu0 0.0
  %894 = vmatprep.subr.mxu0 0.0
  %895 = vmatpush1.msra.mxu0 0.0
  %896 = vmatprep.subr.mxu0 0.0
  %897 = vmatpush1.msra.mxu0 0.0
  %898 = vmatprep.subr.mxu0 0.0
  %899 = vmatpush1.msra.mxu0 0.0
  %900 = vmatprep.subr.mxu0 0.0
  %901 = vmatpush1.msra.mxu0 0.0
  %902 = vmatprep.subr.mxu0 0.0
  %903 = vmatpush1.msra.mxu0 0.0
  %904 = vmatprep.subr.mxu0 0.0
  %905 = vmatpush1.msra.mxu0 0.0
  %906 = vmatprep.subr.mxu0 0.0
  %907 = vmatpush1.msra.mxu0 0.0
  %908 = vmatprep.subr.mxu0 0.0
  %909 = vmatpush1.msra.mxu0 0.0
  %910 = vmatprep.subr.mxu0 0.0
  %911 = vmatpush1.msra.mxu0 0.0
  %912 = vmatprep.mubr.f32.mxu0 0.0
  %913 = vmatmul.mubr.f32.gmra.mrb[0].mxu0 %v846
  %v914 = vpop.f32.mrb[0].mxu0
  %v915 = vadd.f32 0.0, %v914
  %v916 = vpop.f32.mrb[0].mxu0
  %917 = vdwg.mxu0
  %v918 = vlaneseq
  %v919 = vshrl.u32 %v918, 7
  %v920 = vsub.s32 0, %v919
  %v921 = vrot.slane %v915, %v920
  %v922 = vsub.f32 %v742, %v921
  %v923 = vsub.f32 %v745, %v921
  %v924 = vmul.f32 %v922, %v922
  %v925 = vmul.f32 %v923, %v923
  %v926 = vadd.f32 %v924, %v925
  %v927 = vrot.slane %v926, 4
  %v928 = vadd.f32 %v926, %v927
  %v929 = vrot.slane %v928, 2
  %v930 = vadd.f32 %v928, %v929
  %v931 = vrot.slane %v930, 1
  %v932 = vadd.f32 %v930, %v931
  %933 = vmatprep.subr.mxu0 0.0
  %934 = vmatpush1.msra.mxu0 %v755
  %935 = vmatprep.subr.mxu0 0.0
  %936 = vmatpush1.msra.mxu0 %v756
  %937 = vmatprep.subr.mxu0 0.0
  %938 = vmatpush1.msra.mxu0 %v757
  %939 = vmatprep.subr.mxu0 0.0
  %940 = vmatpush1.msra.mxu0 %v758
  %941 = vmatprep.subr.mxu0 0.0
  %942 = vmatpush1.msra.mxu0 %v759
  %943 = vmatprep.subr.mxu0 0.0
  %944 = vmatpush1.msra.mxu0 %v760
  %945 = vmatprep.subr.mxu0 0.0
  %946 = vmatpush1.msra.mxu0 %v761
  %947 = vmatprep.subr.mxu0 0.0
  %948 = vmatpush1.msra.mxu0 %v762
  %949 = vmatprep.subr.mxu0 0.0
  %950 = vmatpush1.msra.mxu0 %v763
  %951 = vmatprep.subr.mxu0 0.0
  %952 = vmatpush1.msra.mxu0 %v764
  %953 = vmatprep.subr.mxu0 0.0
  %954 = vmatpush1.msra.mxu0 %v765
  %955 = vmatprep.subr.mxu0 0.0
  %956 = vmatpush1.msra.mxu0 %v766
  %957 = vmatprep.subr.mxu0 0.0
  %958 = vmatpush1.msra.mxu0 %v767
  %959 = vmatprep.subr.mxu0 0.0
  %960 = vmatpush1.msra.mxu0 %v768
  %961 = vmatprep.subr.mxu0 0.0
  %962 = vmatpush1.msra.mxu0 %v769
  %963 = vmatprep.subr.mxu0 0.0
  %964 = vmatpush1.msra.mxu0 %v770
  %965 = vmatprep.subr.mxu0 0.0
  %966 = vmatpush1.msra.mxu0 0.0
  %967 = vmatprep.subr.mxu0 0.0
  %968 = vmatpush1.msra.mxu0 0.0
  %969 = vmatprep.subr.mxu0 0.0
  %970 = vmatpush1.msra.mxu0 0.0
  %971 = vmatprep.subr.mxu0 0.0
  %972 = vmatpush1.msra.mxu0 0.0
  %973 = vmatprep.subr.mxu0 0.0
  %974 = vmatpush1.msra.mxu0 0.0
  %975 = vmatprep.subr.mxu0 0.0
  %976 = vmatpush1.msra.mxu0 0.0
  %977 = vmatprep.subr.mxu0 0.0
  %978 = vmatpush1.msra.mxu0 0.0
  %979 = vmatprep.subr.mxu0 0.0
  %980 = vmatpush1.msra.mxu0 0.0
  %981 = vmatprep.subr.mxu0 0.0
  %982 = vmatpush1.msra.mxu0 0.0
  %983 = vmatprep.subr.mxu0 0.0
  %984 = vmatpush1.msra.mxu0 0.0
  %985 = vmatprep.subr.mxu0 0.0
  %986 = vmatpush1.msra.mxu0 0.0
  %987 = vmatprep.subr.mxu0 0.0
  %988 = vmatpush1.msra.mxu0 0.0
  %989 = vmatprep.subr.mxu0 0.0
  %990 = vmatpush1.msra.mxu0 0.0
  %991 = vmatprep.subr.mxu0 0.0
  %992 = vmatpush1.msra.mxu0 0.0
  %993 = vmatprep.subr.mxu0 0.0
  %994 = vmatpush1.msra.mxu0 0.0
  %995 = vmatprep.subr.mxu0 0.0
  %996 = vmatpush1.msra.mxu0 0.0
  %997 = vmatprep.mubr.f32.mxu0 0.0
  %998 = vmatmul.mubr.f32.gmra.mrb[0].mxu0 %v932
  %v999 = vpop.f32.mrb[0].mxu0
  %v1000 = vadd.f32 0.0, %v999
  %v1001 = vpop.f32.mrb[0].mxu0
  %1002 = vdwg.mxu0
  %v1003 = vmul.f32 %v1000, 0.0078125
  %v1004 = vld [vmem:[%s2] sm:$0x1]
  %v1005 = vadd.f32 %v1003, 1e-05
  %v1006 = vrsqrt.pop %v1005
  %v1007 = vmul.f32 %v1004, %v1006
  %v1009 = vsel %vm844, %v1007, 0
  %1011 = vmatprep.subr.mxu0 0.0
  %1012 = vmatpush1.msra.mxu0 %v842
  %1013 = vmatprep.subr.mxu0 0.0
  %1014 = vmatpush1.msra.mxu0 %v843
  %1015 = vmatprep.subr.mxu0 0.0
  %1016 = vmatpush1.msra.mxu0 0.0
  %1017 = vmatprep.subr.mxu0 0.0
  %1018 = vmatpush1.msra.mxu0 0.0
  %1019 = vmatprep.subr.mxu0 0.0
  %1020 = vmatpush1.msra.mxu0 0.0
  %1021 = vmatprep.subr.mxu0 0.0
  %1022 = vmatpush1.msra.mxu0 0.0
  %1023 = vmatprep.subr.mxu0 0.0
  %1024 = vmatpush1.msra.mxu0 0.0
  %1025 = vmatprep.subr.mxu0 0.0
  %1026 = vmatpush1.msra.mxu0 0.0
  %1027 = vmatprep.subr.mxu0 0.0
  %1028 = vmatpush1.msra.mxu0 0.0
  %1029 = vmatprep.subr.mxu0 0.0
  %1030 = vmatpush1.msra.mxu0 0.0
  %1031 = vmatprep.subr.mxu0 0.0
  %1032 = vmatpush1.msra.mxu0 0.0
  %1033 = vmatprep.subr.mxu0 0.0
  %1034 = vmatpush1.msra.mxu0 0.0
  %1035 = vmatprep.subr.mxu0 0.0
  %1036 = vmatpush1.msra.mxu0 0.0
  %1037 = vmatprep.subr.mxu0 0.0
  %1038 = vmatpush1.msra.mxu0 0.0
  %1039 = vmatprep.subr.mxu0 0.0
  %1040 = vmatpush1.msra.mxu0 0.0
  %1041 = vmatprep.subr.mxu0 0.0
  %1042 = vmatpush1.msra.mxu0 0.0
  %1043 = vmatprep.subr.mxu0 0.0
  %1044 = vmatpush1.msra.mxu0 0.0
  %1045 = vmatprep.subr.mxu0 0.0
  %1046 = vmatpush1.msra.mxu0 0.0
  %1047 = vmatprep.subr.mxu0 0.0
  %1048 = vmatpush1.msra.mxu0 0.0
  %1049 = vmatprep.subr.mxu0 0.0
  %1050 = vmatpush1.msra.mxu0 0.0
  %1051 = vmatprep.subr.mxu0 0.0
  %1052 = vmatpush1.msra.mxu0 0.0
  %1053 = vmatprep.subr.mxu0 0.0
  %1054 = vmatpush1.msra.mxu0 0.0
  %1055 = vmatprep.subr.mxu0 0.0
  %1056 = vmatpush1.msra.mxu0 0.0
  %1057 = vmatprep.subr.mxu0 0.0
  %1058 = vmatpush1.msra.mxu0 0.0
  %1059 = vmatprep.subr.mxu0 0.0
  %1060 = vmatpush1.msra.mxu0 0.0
  %1061 = vmatprep.subr.mxu0 0.0
  %1062 = vmatpush1.msra.mxu0 0.0
  %1063 = vmatprep.subr.mxu0 0.0
  %1064 = vmatpush1.msra.mxu0 0.0
  %1065 = vmatprep.subr.mxu0 0.0
  %1066 = vmatpush1.msra.mxu0 0.0
  %1067 = vmatprep.subr.mxu0 0.0
  %1068 = vmatpush1.msra.mxu0 0.0
  %1069 = vmatprep.subr.mxu0 0.0
  %1070 = vmatpush1.msra.mxu0 0.0
  %1071 = vmatprep.subr.mxu0 0.0
  %1072 = vmatpush1.msra.mxu0 0.0
  %1073 = vmatprep.subr.mxu0 0.0
  %1074 = vmatpush1.msra.mxu0 0.0
  %1075 = vmatprep.mubr.f32.mxu0 0.0
  %1076 = vmatmul.mubr.f32.gmra.mrb[0].mxu0 %v1009
  %v1077 = vpop.f32.mrb[0].mxu0
  %v1078 = vadd.f32 0.0, %v1077
  %v1079 = vpop.f32.mrb[0].mxu0
  %1080 = vdwg.mxu0
  %v1081 = vlaneseq
  %v1082 = vshrl.u32 %v1081, 7
  %v1083 = vsub.s32 0, %v1082
  %v1084 = vrot.slane %v1078, %v1083
  %v1085 = vmul.f32 %v922, %v1084
  %v1086 = vmul.f32 %v923, %v1084
  %v1087 = vld [vmem:[%s3] sm:$0x1]
  %v1089 = vsel %vm844, %v1087, 0
  %1091 = vmatprep.subr.mxu0 0.0
  %1092 = vmatpush1.msra.mxu0 %v842
  %1093 = vmatprep.subr.mxu0 0.0
  %1094 = vmatpush1.msra.mxu0 %v843
  %1095 = vmatprep.subr.mxu0 0.0
  %1096 = vmatpush1.msra.mxu0 0.0
  %1097 = vmatprep.subr.mxu0 0.0
  %1098 = vmatpush1.msra.mxu0 0.0
  %1099 = vmatprep.subr.mxu0 0.0
  %1100 = vmatpush1.msra.mxu0 0.0
  %1101 = vmatprep.subr.mxu0 0.0
  %1102 = vmatpush1.msra.mxu0 0.0
  %1103 = vmatprep.subr.mxu0 0.0
  %1104 = vmatpush1.msra.mxu0 0.0
  %1105 = vmatprep.subr.mxu0 0.0
  %1106 = vmatpush1.msra.mxu0 0.0
  %1107 = vmatprep.subr.mxu0 0.0
  %1108 = vmatpush1.msra.mxu0 0.0
  %1109 = vmatprep.subr.mxu0 0.0
  %1110 = vmatpush1.msra.mxu0 0.0
  %1111 = vmatprep.subr.mxu0 0.0
  %1112 = vmatpush1.msra.mxu0 0.0
  %1113 = vmatprep.subr.mxu0 0.0
  %1114 = vmatpush1.msra.mxu0 0.0
  %1115 = vmatprep.subr.mxu0 0.0
  %1116 = vmatpush1.msra.mxu0 0.0
  %1117 = vmatprep.subr.mxu0 0.0
  %1118 = vmatpush1.msra.mxu0 0.0
  %1119 = vmatprep.subr.mxu0 0.0
  %1120 = vmatpush1.msra.mxu0 0.0
  %1121 = vmatprep.subr.mxu0 0.0
  %1122 = vmatpush1.msra.mxu0 0.0
  %1123 = vmatprep.subr.mxu0 0.0
  %1124 = vmatpush1.msra.mxu0 0.0
  %1125 = vmatprep.subr.mxu0 0.0
  %1126 = vmatpush1.msra.mxu0 0.0
  %1127 = vmatprep.subr.mxu0 0.0
  %1128 = vmatpush1.msra.mxu0 0.0
  %1129 = vmatprep.subr.mxu0 0.0
  %1130 = vmatpush1.msra.mxu0 0.0
  %1131 = vmatprep.subr.mxu0 0.0
  %1132 = vmatpush1.msra.mxu0 0.0
  %1133 = vmatprep.subr.mxu0 0.0
  %1134 = vmatpush1.msra.mxu0 0.0
  %1135 = vmatprep.subr.mxu0 0.0
  %1136 = vmatpush1.msra.mxu0 0.0
  %1137 = vmatprep.subr.mxu0 0.0
  %1138 = vmatpush1.msra.mxu0 0.0
  %1139 = vmatprep.subr.mxu0 0.0
  %1140 = vmatpush1.msra.mxu0 0.0
  %1141 = vmatprep.subr.mxu0 0.0
  %1142 = vmatpush1.msra.mxu0 0.0
  %1143 = vmatprep.subr.mxu0 0.0
  %1144 = vmatpush1.msra.mxu0 0.0
  %1145 = vmatprep.subr.mxu0 0.0
  %1146 = vmatpush1.msra.mxu0 0.0
  %1147 = vmatprep.subr.mxu0 0.0
  %1148 = vmatpush1.msra.mxu0 0.0
  %1149 = vmatprep.subr.mxu0 0.0
  %1150 = vmatpush1.msra.mxu0 0.0
  %1151 = vmatprep.subr.mxu0 0.0
  %1152 = vmatpush1.msra.mxu0 0.0
  %1153 = vmatprep.subr.mxu0 0.0
  %1154 = vmatpush1.msra.mxu0 0.0
  %1155 = vmatprep.mubr.f32.mxu0 0.0
  %1156 = vmatmul.mubr.f32.gmra.mrb[0].mxu0 %v1089
  %v1157 = vpop.f32.mrb[0].mxu0
  %v1158 = vadd.f32 0.0, %v1157
  %v1159 = vpop.f32.mrb[0].mxu0
  %1160 = vdwg.mxu0
  %v1161 = vlaneseq
  %v1162 = vshrl.u32 %v1161, 7
  %v1163 = vsub.s32 0, %v1162
  %v1164 = vrot.slane %v1158, %v1163
  %v1165 = vadd.f32 %v1085, %v1164
  %v1166 = vadd.f32 %v1086, %v1164
  %vm1167 = vcmp.ge.f32.partialorder %v1165, 0.0
  %vm1168 = vcmp.ge.f32.partialorder %v1166, 0.0
  %v1169 = vmul.f32 %v1165, 0.01
  %v1170 = vmul.f32 %v1166, 0.01
  %v1171 = vsel %vm1167, %v1165, %v1169
  %v1172 = vsel %vm1168, %v1166, %v1170
  %v1173 = vpack.c.bf16 %v1172, %v1171
  %v1175 = vunpack.c.l.b16 %v1173
  %v1176 = vunpack.c.h.b16 %v1173
  %v1177 = vpack.c.b16 %v1175, %v1175
  %v1178 = vpack.c.b16 %v1176, %v1176
  %1181 = vst [vmem:[%s6] sm:$0xf] %v1177
  %1182 = vst [vmem:[%s6 + $0x4] sm:$0xf] %v1178
  // Predicated region
  $region26: #{net_forward.5} parent=0 // pred_check
    _
  $region27: #{net_forward.5} parent=0 // pred_check_branch
    %1184 = sbr.rel (0) target = $region29
  $region28: #{net_forward.5} parent=0 // pred_region
    _
  $region29: #{net_forward.5} parent=0 // pred_fallthru
    _
  // Predicated region
  $region30: #{net_forward.5} parent=0 // pred_check
    _
  $region31: #{net_forward.5} parent=0 // pred_check_branch
    %1186 = sbr.rel (0) target = $region33
  $region32: #{net_forward.5} parent=0 // pred_region
    _
  $region33: #{net_forward.5} parent=0 // pred_fallthru
    _

// kernel: net_forward.6
$region0: #{net_forward.6}
  #allocation0 [shape = 'u32[]', space=smem, size = 0x4, offset = 0x4, fixed_abs, tag = 'smem constant byte address 0x4 - core index']
  #allocation1 [shape = 'u32[144,128]{1,0:T(1,128)}', space=vmem, size = 0x12000, scoped, tag = 'internal scratch']
  %s0 = inlined_call_operand.vmem [shape: bf16[8,1024], index: 0, kind: input, shape index: {}]
  %s1 = inlined_call_operand.vmem [shape: bf16[1024,128], index: 1, kind: input, shape index: {}]
  %s2 = inlined_call_operand.vmem [shape: f32[1,32], index: 2, kind: input, shape index: {}]
  %s3 = inlined_call_operand.vmem [shape: f32[1,32], index: 3, kind: input, shape index: {}]
  %s4 = inlined_call_operand.vmem [shape: f32[128,32], index: 4, kind: input, shape index: {}]
  %s5 = inlined_call_operand.vmem [shape: f32[32,128], index: 5, kind: input, shape index: {}]
  %s6 = inlined_call_operand.vmem [shape: bf16[8,128], index: 6, kind: output, shape index: {}]
  %s7 = sld [smem:[#allocation0]]
  $region34: #{net_forward.6} parent=0
    _
  %s9 = ssub.s32 1, %s7
  %s10 = scalar_select 0, %s9, %s7
  // Predicated region
  $region2: #{net_forward.6} parent=0 // pred_check
    _
  $region3: #{net_forward.6} parent=0 // pred_check_branch
    %12 = sbr.rel (0) target = $region5
  $region4: #{net_forward.6} parent=0 // pred_region
    _
  $region5: #{net_forward.6} parent=0 // pred_fallthru
    _
  // Predicated region
  $region6: #{net_forward.6} parent=0 // pred_check
    _
  $region7: #{net_forward.6} parent=0 // pred_check_branch
    %14 = sbr.rel (0) target = $region9
  $region8: #{net_forward.6} parent=0 // pred_region
    _
  $region9: #{net_forward.6} parent=0 // pred_fallthru
    _
  // Predicated region
  $region10: #{net_forward.6} parent=0 // pred_check
    _
  $region11: #{net_forward.6} parent=0 // pred_check_branch
    %16 = sbr.rel (0) target = $region13
  $region12: #{net_forward.6} parent=0 // pred_region
    _
  $region13: #{net_forward.6} parent=0 // pred_fallthru
    _
  // Predicated region
  $region14: #{net_forward.6} parent=0 // pred_check
    _
  $region15: #{net_forward.6} parent=0 // pred_check_branch
    %18 = sbr.rel (0) target = $region17
  $region16: #{net_forward.6} parent=0 // pred_region
    _
  $region17: #{net_forward.6} parent=0 // pred_fallthru
    _
  // Predicated region
  $region18: #{net_forward.6} parent=0 // pred_check
    _
  $region19: #{net_forward.6} parent=0 // pred_check_branch
    %20 = sbr.rel (0) target = $region21
  $region20: #{net_forward.6} parent=0 // pred_region
    _
  $region21: #{net_forward.6} parent=0 // pred_fallthru
    _
  // Predicated region
  $region22: #{net_forward.6} parent=0 // pred_check
    _
  $region23: #{net_forward.6} parent=0 // pred_check_branch
    %22 = sbr.rel (0) target = $region25
  $region24: #{net_forward.6} parent=0 // pred_region
    _
  $region25: #{net_forward.6} parent=0 // pred_fallthru
    _
  %v24 = vld [vmem:[%s0] sm:$0xff]
  %v25 = vld [vmem:[%s0 + $0x8] sm:$0xff]
  %v26 = vld [vmem:[%s0 + $0x10] sm:$0xff]
  %v27 = vld [vmem:[%s0 + $0x18] sm:$0xff]
  %v28 = vld [vmem:[%s1] sm:$0xf]
  %v29 = vld [vmem:[%s1 + $0x4] sm:$0xf]
  %v30 = vld [vmem:[%s1 + $0x8] sm:$0xf]
  %v31 = vld [vmem:[%s1 + $0xc] sm:$0xf]
  %v32 = vld [vmem:[%s1 + $0x10] sm:$0xf]
  %v33 = vld [vmem:[%s1 + $0x14] sm:$0xf]
  %v34 = vld [vmem:[%s1 + $0x18] sm:$0xf]
  %v35 = vld [vmem:[%s1 + $0x1c] sm:$0xf]
  %v36 = vld [vmem:[%s1 + $0x20] sm:$0xf]
  %v37 = vld [vmem:[%s1 + $0x24] sm:$0xf]
  %v38 = vld [vmem:[%s1 + $0x28] sm:$0xf]
  %v39 = vld [vmem:[%s1 + $0x2c] sm:$0xf]
  %v40 = vld [vmem:[%s1 + $0x30] sm:$0xf]
  %v41 = vld [vmem:[%s1 + $0x34] sm:$0xf]
  %v42 = vld [vmem:[%s1 + $0x38] sm:$0xf]
  %v43 = vld [vmem:[%s1 + $0x3c] sm:$0xf]
  %v44 = vld [vmem:[%s1 + $0x40] sm:$0xf]
  %v45 = vld [vmem:[%s1 + $0x44] sm:$0xf]
  %v46 = vld [vmem:[%s1 + $0x48] sm:$0xf]
  %v47 = vld [vmem:[%s1 + $0x4c] sm:$0xf]
  %v48 = vld [vmem:[%s1 + $0x50] sm:$0xf]
  %v49 = vld [vmem:[%s1 + $0x54] sm:$0xf]
  %v50 = vld [vmem:[%s1 + $0x58] sm:$0xf]
  %v51 = vld [vmem:[%s1 + $0x5c] sm:$0xf]
  %v52 = vld [vmem:[%s1 + $0x60] sm:$0xf]
  %v53 = vld [vmem:[%s1 + $0x64] sm:$0xf]
  %v54 = vld [vmem:[%s1 + $0x68] sm:$0xf]
  %v55 = vld [vmem:[%s1 + $0x6c] sm:$0xf]
  %v56 = vld [vmem:[%s1 + $0x70] sm:$0xf]
  %v57 = vld [vmem:[%s1 + $0x74] sm:$0xf]
  %v58 = vld [vmem:[%s1 + $0x78] sm:$0xf]
  %v59 = vld [vmem:[%s1 + $0x7c] sm:$0xf]
  %v60 = vld [vmem:[%s1 + $0x80] sm:$0xf]
  %v61 = vld [vmem:[%s1 + $0x84] sm:$0xf]
  %v62 = vld [vmem:[%s1 + $0x88] sm:$0xf]
  %v63 = vld [vmem:[%s1 + $0x8c] sm:$0xf]
  %v64 = vld [vmem:[%s1 + $0x90] sm:$0xf]
  %v65 = vld [vmem:[%s1 + $0x94] sm:$0xf]
  %v66 = vld [vmem:[%s1 + $0x98] sm:$0xf]
  %v67 = vld [vmem:[%s1 + $0x9c] sm:$0xf]
  %v68 = vld [vmem:[%s1 + $0xa0] sm:$0xf]
  %v69 = vld [vmem:[%s1 + $0xa4] sm:$0xf]
  %v70 = vld [vmem:[%s1 + $0xa8] sm:$0xf]
  %v71 = vld [vmem:[%s1 + $0xac] sm:$0xf]
  %v72 = vld [vmem:[%s1 + $0xb0] sm:$0xf]
  %v73 = vld [vmem:[%s1 + $0xb4] sm:$0xf]
  %v74 = vld [vmem:[%s1 + $0xb8] sm:$0xf]
  %v75 = vld [vmem:[%s1 + $0xbc] sm:$0xf]
  %v76 = vld [vmem:[%s1 + $0xc0] sm:$0xf]
  %v77 = vld [vmem:[%s1 + $0xc4] sm:$0xf]
  %v78 = vld [vmem:[%s1 + $0xc8] sm:$0xf]
  %v79 = vld [vmem:[%s1 + $0xcc] sm:$0xf]
  %v80 = vld [vmem:[%s1 + $0xd0] sm:$0xf]
  %v81 = vld [vmem:[%s1 + $0xd4] sm:$0xf]
  %v82 = vld [vmem:[%s1 + $0xd8] sm:$0xf]
  %v83 = vld [vmem:[%s1 + $0xdc] sm:$0xf]
  %v84 = vld [vmem:[%s1 + $0xe0] sm:$0xf]
  %v85 = vld [vmem:[%s1 + $0xe4] sm:$0xf]
  %v86 = vld [vmem:[%s1 + $0xe8] sm:$0xf]
  %v87 = vld [vmem:[%s1 + $0xec] sm:$0xf]
  %v88 = vld [vmem:[%s1 + $0xf0] sm:$0xf]
  %v89 = vld [vmem:[%s1 + $0xf4] sm:$0xf]
  %v90 = vld [vmem:[%s1 + $0xf8] sm:$0xf]
  %v91 = vld [vmem:[%s1 + $0xfc] sm:$0xf]
  %v92 = vld [vmem:[%s1 + $0x100] sm:$0xf]
  %v93 = vld [vmem:[%s1 + $0x104] sm:$0xf]
  %v94 = vld [vmem:[%s1 + $0x108] sm:$0xf]
  %v95 = vld [vmem:[%s1 + $0x10c] sm:$0xf]
  %v96 = vld [vmem:[%s1 + $0x110] sm:$0xf]
  %v97 = vld [vmem:[%s1 + $0x114] sm:$0xf]
  %v98 = vld [vmem:[%s1 + $0x118] sm:$0xf]
  %v99 = vld [vmem:[%s1 + $0x11c] sm:$0xf]
  %v100 = vld [vmem:[%s1 + $0x120] sm:$0xf]
  %v101 = vld [vmem:[%s1 + $0x124] sm:$0xf]
  %v102 = vld [vmem:[%s1 + $0x128] sm:$0xf]
  %v103 = vld [vmem:[%s1 + $0x12c] sm:$0xf]
  %v104 = vld [vmem:[%s1 + $0x130] sm:$0xf]
  %v105 = vld [vmem:[%s1 + $0x134] sm:$0xf]
  %v106 = vld [vmem:[%s1 + $0x138] sm:$0xf]
  %v107 = vld [vmem:[%s1 + $0x13c] sm:$0xf]
  %v108 = vld [vmem:[%s1 + $0x140] sm:$0xf]
  %v109 = vld [vmem:[%s1 + $0x144] sm:$0xf]
  %v110 = vld [vmem:[%s1 + $0x148] sm:$0xf]
  %v111 = vld [vmem:[%s1 + $0x14c] sm:$0xf]
  %v112 = vld [vmem:[%s1 + $0x150] sm:$0xf]
  %v113 = vld [vmem:[%s1 + $0x154] sm:$0xf]
  %v114 = vld [vmem:[%s1 + $0x158] sm:$0xf]
  %v115 = vld [vmem:[%s1 + $0x15c] sm:$0xf]
  %v116 = vld [vmem:[%s1 + $0x160] sm:$0xf]
  %v117 = vld [vmem:[%s1 + $0x164] sm:$0xf]
  %v118 = vld [vmem:[%s1 + $0x168] sm:$0xf]
  %v119 = vld [vmem:[%s1 + $0x16c] sm:$0xf]
  %v120 = vld [vmem:[%s1 + $0x170] sm:$0xf]
  %v121 = vld [vmem:[%s1 + $0x174] sm:$0xf]
  %v122 = vld [vmem:[%s1 + $0x178] sm:$0xf]
  %v123 = vld [vmem:[%s1 + $0x17c] sm:$0xf]
  %v124 = vld [vmem:[%s1 + $0x180] sm:$0xf]
  %v125 = vld [vmem:[%s1 + $0x184] sm:$0xf]
  %v126 = vld [vmem:[%s1 + $0x188] sm:$0xf]
  %v127 = vld [vmem:[%s1 + $0x18c] sm:$0xf]
  %v128 = vld [vmem:[%s1 + $0x190] sm:$0xf]
  %v129 = vld [vmem:[%s1 + $0x194] sm:$0xf]
  %v130 = vld [vmem:[%s1 + $0x198] sm:$0xf]
  %v131 = vld [vmem:[%s1 + $0x19c] sm:$0xf]
  %v132 = vld [vmem:[%s1 + $0x1a0] sm:$0xf]
  %v133 = vld [vmem:[%s1 + $0x1a4] sm:$0xf]
  %v134 = vld [vmem:[%s1 + $0x1a8] sm:$0xf]
  %v135 = vld [vmem:[%s1 + $0x1ac] sm:$0xf]
  %v136 = vld [vmem:[%s1 + $0x1b0] sm:$0xf]
  %v137 = vld [vmem:[%s1 + $0x1b4] sm:$0xf]
  %v138 = vld [vmem:[%s1 + $0x1b8] sm:$0xf]
  %v139 = vld [vmem:[%s1 + $0x1bc] sm:$0xf]
  %v140 = vld [vmem:[%s1 + $0x1c0] sm:$0xf]
  %v141 = vld [vmem:[%s1 + $0x1c4] sm:$0xf]
  %v142 = vld [vmem:[%s1 + $0x1c8] sm:$0xf]
  %v143 = vld [vmem:[%s1 + $0x1cc] sm:$0xf]
  %v144 = vld [vmem:[%s1 + $0x1d0] sm:$0xf]
  %v145 = vld [vmem:[%s1 + $0x1d4] sm:$0xf]
  %v146 = vld [vmem:[%s1 + $0x1d8] sm:$0xf]
  %v147 = vld [vmem:[%s1 + $0x1dc] sm:$0xf]
  %v148 = vld [vmem:[%s1 + $0x1e0] sm:$0xf]
  %v149 = vld [vmem:[%s1 + $0x1e4] sm:$0xf]
  %v150 = vld [vmem:[%s1 + $0x1e8] sm:$0xf]
  %v151 = vld [vmem:[%s1 + $0x1ec] sm:$0xf]
  %v152 = vld [vmem:[%s1 + $0x1f0] sm:$0xf]
  %v153 = vld [vmem:[%s1 + $0x1f4] sm:$0xf]
  %v154 = vld [vmem:[%s1 + $0x1f8] sm:$0xf]
  %v155 = vld [vmem:[%s1 + $0x1fc] sm:$0xf]
  %v160 = vunpack.c.l.b16 %v24
  %v161 = vunpack.c.h.b16 %v24
  %v162 = vunpack.c.l.b16 %v25
  %v163 = vunpack.c.h.b16 %v25
  %v164 = vunpack.c.l.b16 %v26
  %v165 = vunpack.c.h.b16 %v26
  %v166 = vunpack.c.l.b16 %v27
  %v167 = vunpack.c.h.b16 %v27
  %v168 = vpack.c.b16 %v160, %v160
  %v169 = vpack.c.b16 %v161, %v161
  %v170 = vpack.c.b16 %v162, %v162
  %v171 = vpack.c.b16 %v163, %v163
  %v172 = vpack.c.b16 %v164, %v164
  %v173 = vpack.c.b16 %v165, %v165
  %v174 = vpack.c.b16 %v166, %v166
  %v175 = vpack.c.b16 %v167, %v167
  %v312 = vunpack.c.l.b16 %v28
  %v313 = vunpack.c.l.b16 %v29
  %v314 = vunpack.c.l.b16 %v30
  %v315 = vunpack.c.l.b16 %v31
  %v316 = vunpack.c.l.b16 %v32
  %v317 = vunpack.c.l.b16 %v33
  %v318 = vunpack.c.l.b16 %v34
  %v319 = vunpack.c.l.b16 %v35
  %v320 = vunpack.c.l.b16 %v36
  %v321 = vunpack.c.l.b16 %v37
  %v322 = vunpack.c.l.b16 %v38
  %v323 = vunpack.c.l.b16 %v39
  %v324 = vunpack.c.l.b16 %v40
  %v325 = vunpack.c.l.b16 %v41
  %v326 = vunpack.c.l.b16 %v42
  %v327 = vunpack.c.l.b16 %v43
  %v328 = vunpack.c.l.b16 %v44
  %v329 = vunpack.c.l.b16 %v45
  %v330 = vunpack.c.l.b16 %v46
  %v331 = vunpack.c.l.b16 %v47
  %v332 = vunpack.c.l.b16 %v48
  %v333 = vunpack.c.l.b16 %v49
  %v334 = vunpack.c.l.b16 %v50
  %v335 = vunpack.c.l.b16 %v51
  %v336 = vunpack.c.l.b16 %v52
  %v337 = vunpack.c.l.b16 %v53
  %v338 = vunpack.c.l.b16 %v54
  %v339 = vunpack.c.l.b16 %v55
  %v340 = vunpack.c.l.b16 %v56
  %v341 = vunpack.c.l.b16 %v57
  %v342 = vunpack.c.l.b16 %v58
  %v343 = vunpack.c.l.b16 %v59
  %v344 = vunpack.c.l.b16 %v60
  %v345 = vunpack.c.l.b16 %v61
  %v346 = vunpack.c.l.b16 %v62
  %v347 = vunpack.c.l.b16 %v63
  %v348 = vunpack.c.l.b16 %v64
  %v349 = vunpack.c.l.b16 %v65
  %v350 = vunpack.c.l.b16 %v66
  %v351 = vunpack.c.l.b16 %v67
  %v352 = vunpack.c.l.b16 %v68
  %v353 = vunpack.c.l.b16 %v69
  %v354 = vunpack.c.l.b16 %v70
  %v355 = vunpack.c.l.b16 %v71
  %v356 = vunpack.c.l.b16 %v72
  %v357 = vunpack.c.l.b16 %v73
  %v358 = vunpack.c.l.b16 %v74
  %v359 = vunpack.c.l.b16 %v75
  %v360 = vunpack.c.l.b16 %v76
  %v361 = vunpack.c.l.b16 %v77
  %v362 = vunpack.c.l.b16 %v78
  %v363 = vunpack.c.l.b16 %v79
  %v364 = vunpack.c.l.b16 %v80
  %v365 = vunpack.c.l.b16 %v81
  %v366 = vunpack.c.l.b16 %v82
  %v367 = vunpack.c.l.b16 %v83
  %v368 = vunpack.c.l.b16 %v84
  %v369 = vunpack.c.l.b16 %v85
  %v370 = vunpack.c.l.b16 %v86
  %v371 = vunpack.c.l.b16 %v87
  %v372 = vunpack.c.l.b16 %v88
  %v373 = vunpack.c.l.b16 %v89
  %v374 = vunpack.c.l.b16 %v90
  %v375 = vunpack.c.l.b16 %v91
  %v376 = vunpack.c.l.b16 %v92
  %v377 = vunpack.c.l.b16 %v93
  %v378 = vunpack.c.l.b16 %v94
  %v379 = vunpack.c.l.b16 %v95
  %v380 = vunpack.c.l.b16 %v96
  %v381 = vunpack.c.l.b16 %v97
  %v382 = vunpack.c.l.b16 %v98
  %v383 = vunpack.c.l.b16 %v99
  %v384 = vunpack.c.l.b16 %v100
  %v385 = vunpack.c.l.b16 %v101
  %v386 = vunpack.c.l.b16 %v102
  %v387 = vunpack.c.l.b16 %v103
  %v388 = vunpack.c.l.b16 %v104
  %v389 = vunpack.c.l.b16 %v105
  %v390 = vunpack.c.l.b16 %v106
  %v391 = vunpack.c.l.b16 %v107
  %v392 = vunpack.c.l.b16 %v108
  %v393 = vunpack.c.l.b16 %v109
  %v394 = vunpack.c.l.b16 %v110
  %v395 = vunpack.c.l.b16 %v111
  %v396 = vunpack.c.l.b16 %v112
  %v397 = vunpack.c.l.b16 %v113
  %v398 = vunpack.c.l.b16 %v114
  %v399 = vunpack.c.l.b16 %v115
  %v400 = vunpack.c.l.b16 %v116
  %v401 = vunpack.c.l.b16 %v117
  %v402 = vunpack.c.l.b16 %v118
  %v403 = vunpack.c.l.b16 %v119
  %v404 = vunpack.c.l.b16 %v120
  %v405 = vunpack.c.l.b16 %v121
  %v406 = vunpack.c.l.b16 %v122
  %v407 = vunpack.c.l.b16 %v123
  %v408 = vunpack.c.l.b16 %v124
  %v409 = vunpack.c.l.b16 %v125
  %v410 = vunpack.c.l.b16 %v126
  %v411 = vunpack.c.l.b16 %v127
  %v412 = vunpack.c.l.b16 %v128
  %v413 = vunpack.c.l.b16 %v129
  %v414 = vunpack.c.l.b16 %v130
  %v415 = vunpack.c.l.b16 %v131
  %v416 = vunpack.c.l.b16 %v132
  %v417 = vunpack.c.l.b16 %v133
  %v418 = vunpack.c.l.b16 %v134
  %v419 = vunpack.c.l.b16 %v135
  %v420 = vunpack.c.l.b16 %v136
  %v421 = vunpack.c.l.b16 %v137
  %v422 = vunpack.c.l.b16 %v138
  %v423 = vunpack.c.l.b16 %v139
  %v424 = vunpack.c.l.b16 %v140
  %v425 = vunpack.c.l.b16 %v141
  %v426 = vunpack.c.l.b16 %v142
  %v427 = vunpack.c.l.b16 %v143
  %v428 = vunpack.c.l.b16 %v144
  %v429 = vunpack.c.l.b16 %v145
  %v430 = vunpack.c.l.b16 %v146
  %v431 = vunpack.c.l.b16 %v147
  %v432 = vunpack.c.l.b16 %v148
  %v433 = vunpack.c.l.b16 %v149
  %v434 = vunpack.c.l.b16 %v150
  %v435 = vunpack.c.l.b16 %v151
  %v436 = vunpack.c.l.b16 %v152
  %v437 = vunpack.c.l.b16 %v153
  %v438 = vunpack.c.l.b16 %v154
  %v439 = vunpack.c.l.b16 %v155
  %v440 = vpack.c.b16 %v313, %v312
  %v441 = vpack.c.b16 %v315, %v314
  %v442 = vpack.c.b16 %v317, %v316
  %v443 = vpack.c.b16 %v319, %v318
  %v444 = vpack.c.b16 %v321, %v320
  %v445 = vpack.c.b16 %v323, %v322
  %v446 = vpack.c.b16 %v325, %v324
  %v447 = vpack.c.b16 %v327, %v326
  %v448 = vpack.c.b16 %v329, %v328
  %v449 = vpack.c.b16 %v331, %v330
  %v450 = vpack.c.b16 %v333, %v332
  %v451 = vpack.c.b16 %v335, %v334
  %v452 = vpack.c.b16 %v337, %v336
  %v453 = vpack.c.b16 %v339, %v338
  %v454 = vpack.c.b16 %v341, %v340
  %v455 = vpack.c.b16 %v343, %v342
  %v456 = vpack.c.b16 %v345, %v344
  %v457 = vpack.c.b16 %v347, %v346
  %v458 = vpack.c.b16 %v349, %v348
  %v459 = vpack.c.b16 %v351, %v350
  %v460 = vpack.c.b16 %v353, %v352
  %v461 = vpack.c.b16 %v355, %v354
  %v462 = vpack.c.b16 %v357, %v356
  %v463 = vpack.c.b16 %v359, %v358
  %v464 = vpack.c.b16 %v361, %v360
  %v465 = vpack.c.b16 %v363, %v362
  %v466 = vpack.c.b16 %v365, %v364
  %v467 = vpack.c.b16 %v367, %v366
  %v468 = vpack.c.b16 %v369, %v368
  %v469 = vpack.c.b16 %v371, %v370
  %v470 = vpack.c.b16 %v373, %v372
  %v471 = vpack.c.b16 %v375, %v374
  %v472 = vpack.c.b16 %v377, %v376
  %v473 = vpack.c.b16 %v379, %v378
  %v474 = vpack.c.b16 %v381, %v380
  %v475 = vpack.c.b16 %v383, %v382
  %v476 = vpack.c.b16 %v385, %v384
  %v477 = vpack.c.b16 %v387, %v386
  %v478 = vpack.c.b16 %v389, %v388
  %v479 = vpack.c.b16 %v391, %v390
  %v480 = vpack.c.b16 %v393, %v392
  %v481 = vpack.c.b16 %v395, %v394
  %v482 = vpack.c.b16 %v397, %v396
  %v483 = vpack.c.b16 %v399, %v398
  %v484 = vpack.c.b16 %v401, %v400
  %v485 = vpack.c.b16 %v403, %v402
  %v486 = vpack.c.b16 %v405, %v404
  %v487 = vpack.c.b16 %v407, %v406
  %v488 = vpack.c.b16 %v409, %v408
  %v489 = vpack.c.b16 %v411, %v410
  %v490 = vpack.c.b16 %v413, %v412
  %v491 = vpack.c.b16 %v415, %v414
  %v492 = vpack.c.b16 %v417, %v416
  %v493 = vpack.c.b16 %v419, %v418
  %v494 = vpack.c.b16 %v421, %v420
  %v495 = vpack.c.b16 %v423, %v422
  %v496 = vpack.c.b16 %v425, %v424
  %v497 = vpack.c.b16 %v427, %v426
  %v498 = vpack.c.b16 %v429, %v428
  %v499 = vpack.c.b16 %v431, %v430
  %v500 = vpack.c.b16 %v433, %v432
  %v501 = vpack.c.b16 %v435, %v434
  %v502 = vpack.c.b16 %v437, %v436
  %v503 = vpack.c.b16 %v439, %v438
  %568 = vmatprep.subr.bf16.mxu0 0
  %569 = vmatpush1.bf16.msra.mxu0 %v440
  %570 = vmatprep.subr.bf16.mxu0 0
  %571 = vmatpush1.bf16.msra.mxu0 %v441
  %572 = vmatprep.subr.bf16.mxu0 0
  %573 = vmatpush1.bf16.msra.mxu0 %v442
  %574 = vmatprep.subr.bf16.mxu0 0
  %575 = vmatpush1.bf16.msra.mxu0 %v443
  %576 = vmatprep.subr.bf16.mxu0 0
  %577 = vmatpush1.bf16.msra.mxu0 %v444
  %578 = vmatprep.subr.bf16.mxu0 0
  %579 = vmatpush1.bf16.msra.mxu0 %v445
  %580 = vmatprep.subr.bf16.mxu0 0
  %581 = vmatpush1.bf16.msra.mxu0 %v446
  %582 = vmatprep.subr.bf16.mxu0 0
  %583 = vmatpush1.bf16.msra.mxu0 %v447
  %584 = vmatprep.subr.bf16.mxu0 0
  %585 = vmatpush1.bf16.msra.mxu0 %v448
  %586 = vmatprep.subr.bf16.mxu0 0
  %587 = vmatpush1.bf16.msra.mxu0 %v449
  %588 = vmatprep.subr.bf16.mxu0 0
  %589 = vmatpush1.bf16.msra.mxu0 %v450
  %590 = vmatprep.subr.bf16.mxu0 0
  %591 = vmatpush1.bf16.msra.mxu0 %v451
  %592 = vmatprep.subr.bf16.mxu0 0
  %593 = vmatpush1.bf16.msra.mxu0 %v452
  %594 = vmatprep.subr.bf16.mxu0 0
  %595 = vmatpush1.bf16.msra.mxu0 %v453
  %596 = vmatprep.subr.bf16.mxu0 0
  %597 = vmatpush1.bf16.msra.mxu0 %v454
  %598 = vmatprep.subr.bf16.mxu0 0
  %599 = vmatpush1.bf16.msra.mxu0 %v455
  %600 = vmatprep.mubr.bf16.mxu0 %v169
  %601 = vmatmul.mubr.bf16.gmra.mrb[0].mxu0 %v168
  %v602 = vpop.f32.mrb[0].mxu0
  %v603 = vadd.f32 0.0, %v602
  %v604 = vpop.f32.mrb[0].mxu0
  %v605 = vpop.f32.mrb[0].mxu0
  %v606 = vpop.f32.mrb[0].mxu0
  %607 = vdwg.mxu0
  %608 = vmatprep.subr.bf16.mxu0 0
  %609 = vmatpush1.bf16.msra.mxu0 %v456
  %610 = vmatprep.subr.bf16.mxu0 0
  %611 = vmatpush1.bf16.msra.mxu0 %v457
  %612 = vmatprep.subr.bf16.mxu0 0
  %613 = vmatpush1.bf16.msra.mxu0 %v458
  %614 = vmatprep.subr.bf16.mxu0 0
  %615 = vmatpush1.bf16.msra.mxu0 %v459
  %616 = vmatprep.subr.bf16.mxu0 0
  %617 = vmatpush1.bf16.msra.mxu0 %v460
  %618 = vmatprep.subr.bf16.mxu0 0
  %619 = vmatpush1.bf16.msra.mxu0 %v461
  %620 = vmatprep.subr.bf16.mxu0 0
  %621 = vmatpush1.bf16.msra.mxu0 %v462
  %622 = vmatprep.subr.bf16.mxu0 0
  %623 = vmatpush1.bf16.msra.mxu0 %v463
  %624 = vmatprep.subr.bf16.mxu0 0
  %625 = vmatpush1.bf16.msra.mxu0 %v464
  %626 = vmatprep.subr.bf16.mxu0 0
  %627 = vmatpush1.bf16.msra.mxu0 %v465
  %628 = vmatprep.subr.bf16.mxu0 0
  %629 = vmatpush1.bf16.msra.mxu0 %v466
  %630 = vmatprep.subr.bf16.mxu0 0
  %631 = vmatpush1.bf16.msra.mxu0 %v467
  %632 = vmatprep.subr.bf16.mxu0 0
  %633 = vmatpush1.bf16.msra.mxu0 %v468
  %634 = vmatprep.subr.bf16.mxu0 0
  %635 = vmatpush1.bf16.msra.mxu0 %v469
  %636 = vmatprep.subr.bf16.mxu0 0
  %637 = vmatpush1.bf16.msra.mxu0 %v470
  %638 = vmatprep.subr.bf16.mxu0 0
  %639 = vmatpush1.bf16.msra.mxu0 %v471
  %640 = vmatprep.mubr.bf16.mxu0 %v171
  %641 = vmatmul.mubr.bf16.gmra.mrb[0].mxu0 %v170
  %v642 = vpop.f32.mrb[0].mxu0
  %v643 = vadd.f32 %v603, %v642
  %v644 = vpop.f32.mrb[0].mxu0
  %v645 = vpop.f32.mrb[0].mxu0
  %v646 = vpop.f32.mrb[0].mxu0
  %647 = vdwg.mxu0
  %648 = vmatprep.subr.bf16.mxu0 0
  %649 = vmatpush1.bf16.msra.mxu0 %v472
  %650 = vmatprep.subr.bf16.mxu0 0
  %651 = vmatpush1.bf16.msra.mxu0 %v473
  %652 = vmatprep.subr.bf16.mxu0 0
  %653 = vmatpush1.bf16.msra.mxu0 %v474
  %654 = vmatprep.subr.bf16.mxu0 0
  %655 = vmatpush1.bf16.msra.mxu0 %v475
  %656 = vmatprep.subr.bf16.mxu0 0
  %657 = vmatpush1.bf16.msra.mxu0 %v476
  %658 = vmatprep.subr.bf16.mxu0 0
  %659 = vmatpush1.bf16.msra.mxu0 %v477
  %660 = vmatprep.subr.bf16.mxu0 0
  %661 = vmatpush1.bf16.msra.mxu0 %v478
  %662 = vmatprep.subr.bf16.mxu0 0
  %663 = vmatpush1.bf16.msra.mxu0 %v479
  %664 = vmatprep.subr.bf16.mxu0 0
  %665 = vmatpush1.bf16.msra.mxu0 %v480
  %666 = vmatprep.subr.bf16.mxu0 0
  %667 = vmatpush1.bf16.msra.mxu0 %v481
  %668 = vmatprep.subr.bf16.mxu0 0
  %669 = vmatpush1.bf16.msra.mxu0 %v482
  %670 = vmatprep.subr.bf16.mxu0 0
  %671 = vmatpush1.bf16.msra.mxu0 %v483
  %672 = vmatprep.subr.bf16.mxu0 0
  %673 = vmatpush1.bf16.msra.mxu0 %v484
  %674 = vmatprep.subr.bf16.mxu0 0
  %675 = vmatpush1.bf16.msra.mxu0 %v485
  %676 = vmatprep.subr.bf16.mxu0 0
  %677 = vmatpush1.bf16.msra.mxu0 %v486
  %678 = vmatprep.subr.bf16.mxu0 0
  %679 = vmatpush1.bf16.msra.mxu0 %v487
  %680 = vmatprep.mubr.bf16.mxu0 %v173
  %681 = vmatmul.mubr.bf16.gmra.mrb[0].mxu0 %v172
  %v682 = vpop.f32.mrb[0].mxu0
  %v683 = vadd.f32 %v643, %v682
  %v684 = vpop.f32.mrb[0].mxu0
  %v685 = vpop.f32.mrb[0].mxu0
  %v686 = vpop.f32.mrb[0].mxu0
  %687 = vdwg.mxu0
  %688 = vmatprep.subr.bf16.mxu0 0
  %689 = vmatpush1.bf16.msra.mxu0 %v488
  %690 = vmatprep.subr.bf16.mxu0 0
  %691 = vmatpush1.bf16.msra.mxu0 %v489
  %692 = vmatprep.subr.bf16.mxu0 0
  %693 = vmatpush1.bf16.msra.mxu0 %v490
  %694 = vmatprep.subr.bf16.mxu0 0
  %695 = vmatpush1.bf16.msra.mxu0 %v491
  %696 = vmatprep.subr.bf16.mxu0 0
  %697 = vmatpush1.bf16.msra.mxu0 %v492
  %698 = vmatprep.subr.bf16.mxu0 0
  %699 = vmatpush1.bf16.msra.mxu0 %v493
  %700 = vmatprep.subr.bf16.mxu0 0
  %701 = vmatpush1.bf16.msra.mxu0 %v494
  %702 = vmatprep.subr.bf16.mxu0 0
  %703 = vmatpush1.bf16.msra.mxu0 %v495
  %704 = vmatprep.subr.bf16.mxu0 0
  %705 = vmatpush1.bf16.msra.mxu0 %v496
  %706 = vmatprep.subr.bf16.mxu0 0
  %707 = vmatpush1.bf16.msra.mxu0 %v497
  %708 = vmatprep.subr.bf16.mxu0 0
  %709 = vmatpush1.bf16.msra.mxu0 %v498
  %710 = vmatprep.subr.bf16.mxu0 0
  %711 = vmatpush1.bf16.msra.mxu0 %v499
  %712 = vmatprep.subr.bf16.mxu0 0
  %713 = vmatpush1.bf16.msra.mxu0 %v500
  %714 = vmatprep.subr.bf16.mxu0 0
  %715 = vmatpush1.bf16.msra.mxu0 %v501
  %716 = vmatprep.subr.bf16.mxu0 0
  %717 = vmatpush1.bf16.msra.mxu0 %v502
  %718 = vmatprep.subr.bf16.mxu0 0
  %719 = vmatpush1.bf16.msra.mxu0 %v503
  %720 = vmatprep.mubr.bf16.mxu0 %v175
  %721 = vmatmul.mubr.bf16.gmra.mrb[0].mxu0 %v174
  %v722 = vpop.f32.mrb[0].mxu0
  %v723 = vadd.f32 %v683, %v722
  %v724 = vpop.f32.mrb[0].mxu0
  %v725 = vpop.f32.mrb[0].mxu0
  %v726 = vpop.f32.mrb[0].mxu0
  %727 = vdwg.mxu0
  %v728 = vrot.slane %v723, 4
  %v729 = vadd.f32 %v723, %v728
  %v730 = vrot.slane %v729, 2
  %v731 = vadd.f32 %v729, %v730
  %v732 = vrot.slane %v731, 1
  %v733 = vadd.f32 %v731, %v732
  %v734 = vld [vmem:[%s4] sm:$0xff]
  %v735 = vld [vmem:[%s4 + $0x8] sm:$0xff]
  %v736 = vld [vmem:[%s4 + $0x10] sm:$0xff]
  %v737 = vld [vmem:[%s4 + $0x18] sm:$0xff]
  %v738 = vld [vmem:[%s4 + $0x20] sm:$0xff]
  %v739 = vld [vmem:[%s4 + $0x28] sm:$0xff]
  %v740 = vld [vmem:[%s4 + $0x30] sm:$0xff]
  %v741 = vld [vmem:[%s4 + $0x38] sm:$0xff]
  %v742 = vld [vmem:[%s4 + $0x40] sm:$0xff]
  %v743 = vld [vmem:[%s4 + $0x48] sm:$0xff]
  %v744 = vld [vmem:[%s4 + $0x50] sm:$0xff]
  %v745 = vld [vmem:[%s4 + $0x58] sm:$0xff]
  %v746 = vld [vmem:[%s4 + $0x60] sm:$0xff]
  %v747 = vld [vmem:[%s4 + $0x68] sm:$0xff]
  %v748 = vld [vmem:[%s4 + $0x70] sm:$0xff]
  %v749 = vld [vmem:[%s4 + $0x78] sm:$0xff]
  %750 = vmatprep.subr.mxu0 0.0
  %751 = vmatpush1.msra.mxu0 %v734
  %752 = vmatprep.subr.mxu0 0.0
  %753 = vmatpush1.msra.mxu0 %v735
  %754 = vmatprep.subr.mxu0 0.0
  %755 = vmatpush1.msra.mxu0 %v736
  %756 = vmatprep.subr.mxu0 0.0
  %757 = vmatpush1.msra.mxu0 %v737
  %758 = vmatprep.subr.mxu0 0.0
  %759 = vmatpush1.msra.mxu0 %v738
  %760 = vmatprep.subr.mxu0 0.0
  %761 = vmatpush1.msra.mxu0 %v739
  %762 = vmatprep.subr.mxu0 0.0
  %763 = vmatpush1.msra.mxu0 %v740
  %764 = vmatprep.subr.mxu0 0.0
  %765 = vmatpush1.msra.mxu0 %v741
  %766 = vmatprep.subr.mxu0 0.0
  %767 = vmatpush1.msra.mxu0 %v742
  %768 = vmatprep.subr.mxu0 0.0
  %769 = vmatpush1.msra.mxu0 %v743
  %770 = vmatprep.subr.mxu0 0.0
  %771 = vmatpush1.msra.mxu0 %v744
  %772 = vmatprep.subr.mxu0 0.0
  %773 = vmatpush1.msra.mxu0 %v745
  %774 = vmatprep.subr.mxu0 0.0
  %775 = vmatpush1.msra.mxu0 %v746
  %776 = vmatprep.subr.mxu0 0.0
  %777 = vmatpush1.msra.mxu0 %v747
  %778 = vmatprep.subr.mxu0 0.0
  %779 = vmatpush1.msra.mxu0 %v748
  %780 = vmatprep.subr.mxu0 0.0
  %781 = vmatpush1.msra.mxu0 %v749
  %782 = vmatprep.subr.mxu0 0.0
  %783 = vmatpush1.msra.mxu0 0.0
  %784 = vmatprep.subr.mxu0 0.0
  %785 = vmatpush1.msra.mxu0 0.0
  %786 = vmatprep.subr.mxu0 0.0
  %787 = vmatpush1.msra.mxu0 0.0
  %788 = vmatprep.subr.mxu0 0.0
  %789 = vmatpush1.msra.mxu0 0.0
  %790 = vmatprep.subr.mxu0 0.0
  %791 = vmatpush1.msra.mxu0 0.0
  %792 = vmatprep.subr.mxu0 0.0
  %793 = vmatpush1.msra.mxu0 0.0
  %794 = vmatprep.subr.mxu0 0.0
  %795 = vmatpush1.msra.mxu0 0.0
  %796 = vmatprep.subr.mxu0 0.0
  %797 = vmatpush1.msra.mxu0 0.0
  %798 = vmatprep.subr.mxu0 0.0
  %799 = vmatpush1.msra.mxu0 0.0
  %800 = vmatprep.subr.mxu0 0.0
  %801 = vmatpush1.msra.mxu0 0.0
  %802 = vmatprep.subr.mxu0 0.0
  %803 = vmatpush1.msra.mxu0 0.0
  %804 = vmatprep.subr.mxu0 0.0
  %805 = vmatpush1.msra.mxu0 0.0
  %806 = vmatprep.subr.mxu0 0.0
  %807 = vmatpush1.msra.mxu0 0.0
  %808 = vmatprep.subr.mxu0 0.0
  %809 = vmatpush1.msra.mxu0 0.0
  %810 = vmatprep.subr.mxu0 0.0
  %811 = vmatpush1.msra.mxu0 0.0
  %812 = vmatprep.subr.mxu0 0.0
  %813 = vmatpush1.msra.mxu0 0.0
  %814 = vmatprep.mubr.f32.mxu0 0.0
  %815 = vmatmul.mubr.f32.gmra.mrb[0].mxu0 %v733
  %v816 = vpop.f32.mrb[0].mxu0
  %v817 = vadd.f32 0.0, %v816
  %v818 = vpop.f32.mrb[0].mxu0
  %819 = vdwg.mxu0
  %v820 = vmul.f32 %v817, 0.03125
  %v821 = vld [vmem:[%s5] sm:$0xff]
  %v822 = vld [vmem:[%s5 + $0x8] sm:$0xff]
  %v823 = vld [vmem:[%s5 + $0x10] sm:$0xff]
  %v824 = vld [vmem:[%s5 + $0x18] sm:$0xff]
  %vm825 = vcmask 261120
  %v827 = vsel %vm825, %v820, 0
  %829 = vmatprep.subr.mxu0 0.0
  %830 = vmatpush1.msra.mxu0 %v821
  %831 = vmatprep.subr.mxu0 0.0
  %832 = vmatpush1.msra.mxu0 %v822
  %833 = vmatprep.subr.mxu0 0.0
  %834 = vmatpush1.msra.mxu0 %v823
  %835 = vmatprep.subr.mxu0 0.0
  %836 = vmatpush1.msra.mxu0 %v824
  %837 = vmatprep.subr.mxu0 0.0
  %838 = vmatpush1.msra.mxu0 0.0
  %839 = vmatprep.subr.mxu0 0.0
  %840 = vmatpush1.msra.mxu0 0.0
  %841 = vmatprep.subr.mxu0 0.0
  %842 = vmatpush1.msra.mxu0 0.0
  %843 = vmatprep.subr.mxu0 0.0
  %844 = vmatpush1.msra.mxu0 0.0
  %845 = vmatprep.subr.mxu0 0.0
  %846 = vmatpush1.msra.mxu0 0.0
  %847 = vmatprep.subr.mxu0 0.0
  %848 = vmatpush1.msra.mxu0 0.0
  %849 = vmatprep.subr.mxu0 0.0
  %850 = vmatpush1.msra.mxu0 0.0
  %851 = vmatprep.subr.mxu0 0.0
  %852 = vmatpush1.msra.mxu0 0.0
  %853 = vmatprep.subr.mxu0 0.0
  %854 = vmatpush1.msra.mxu0 0.0
  %855 = vmatprep.subr.mxu0 0.0
  %856 = vmatpush1.msra.mxu0 0.0
  %857 = vmatprep.subr.mxu0 0.0
  %858 = vmatpush1.msra.mxu0 0.0
  %859 = vmatprep.subr.mxu0 0.0
  %860 = vmatpush1.msra.mxu0 0.0
  %861 = vmatprep.subr.mxu0 0.0
  %862 = vmatpush1.msra.mxu0 0.0
  %863 = vmatprep.subr.mxu0 0.0
  %864 = vmatpush1.msra.mxu0 0.0
  %865 = vmatprep.subr.mxu0 0.0
  %866 = vmatpush1.msra.mxu0 0.0
  %867 = vmatprep.subr.mxu0 0.0
  %868 = vmatpush1.msra.mxu0 0.0
  %869 = vmatprep.subr.mxu0 0.0
  %870 = vmatpush1.msra.mxu0 0.0
  %871 = vmatprep.subr.mxu0 0.0
  %872 = vmatpush1.msra.mxu0 0.0
  %873 = vmatprep.subr.mxu0 0.0
  %874 = vmatpush1.msra.mxu0 0.0
  %875 = vmatprep.subr.mxu0 0.0
  %876 = vmatpush1.msra.mxu0 0.0
  %877 = vmatprep.subr.mxu0 0.0
  %878 = vmatpush1.msra.mxu0 0.0
  %879 = vmatprep.subr.mxu0 0.0
  %880 = vmatpush1.msra.mxu0 0.0
  %881 = vmatprep.subr.mxu0 0.0
  %882 = vmatpush1.msra.mxu0 0.0
  %883 = vmatprep.subr.mxu0 0.0
  %884 = vmatpush1.msra.mxu0 0.0
  %885 = vmatprep.subr.mxu0 0.0
  %886 = vmatpush1.msra.mxu0 0.0
  %887 = vmatprep.subr.mxu0 0.0
  %888 = vmatpush1.msra.mxu0 0.0
  %889 = vmatprep.subr.mxu0 0.0
  %890 = vmatpush1.msra.mxu0 0.0
  %891 = vmatprep.subr.mxu0 0.0
  %892 = vmatpush1.msra.mxu0 0.0
  %893 = vmatprep.mubr.f32.mxu0 0.0
  %894 = vmatmul.mubr.f32.gmra.mrb[0].mxu0 %v827
  %v895 = vpop.f32.mrb[0].mxu0
  %v896 = vadd.f32 0.0, %v895
  %v897 = vpop.f32.mrb[0].mxu0
  %898 = vdwg.mxu0
  %v899 = vlaneseq
  %v900 = vshrl.u32 %v899, 7
  %v901 = vsub.s32 0, %v900
  %v902 = vrot.slane %v896, %v901
  %v903 = vsub.f32 %v723, %v902
  %v904 = vmul.f32 %v903, %v903
  %v905 = vrot.slane %v904, 4
  %v906 = vadd.f32 %v904, %v905
  %v907 = vrot.slane %v906, 2
  %v908 = vadd.f32 %v906, %v907
  %v909 = vrot.slane %v908, 1
  %v910 = vadd.f32 %v908, %v909
  %911 = vmatprep.subr.mxu0 0.0
  %912 = vmatpush1.msra.mxu0 %v734
  %913 = vmatprep.subr.mxu0 0.0
  %914 = vmatpush1.msra.mxu0 %v735
  %915 = vmatprep.subr.mxu0 0.0
  %916 = vmatpush1.msra.mxu0 %v736
  %917 = vmatprep.subr.mxu0 0.0
  %918 = vmatpush1.msra.mxu0 %v737
  %919 = vmatprep.subr.mxu0 0.0
  %920 = vmatpush1.msra.mxu0 %v738
  %921 = vmatprep.subr.mxu0 0.0
  %922 = vmatpush1.msra.mxu0 %v739
  %923 = vmatprep.subr.mxu0 0.0
  %924 = vmatpush1.msra.mxu0 %v740
  %925 = vmatprep.subr.mxu0 0.0
  %926 = vmatpush1.msra.mxu0 %v741
  %927 = vmatprep.subr.mxu0 0.0
  %928 = vmatpush1.msra.mxu0 %v742
  %929 = vmatprep.subr.mxu0 0.0
  %930 = vmatpush1.msra.mxu0 %v743
  %931 = vmatprep.subr.mxu0 0.0
  %932 = vmatpush1.msra.mxu0 %v744
  %933 = vmatprep.subr.mxu0 0.0
  %934 = vmatpush1.msra.mxu0 %v745
  %935 = vmatprep.subr.mxu0 0.0
  %936 = vmatpush1.msra.mxu0 %v746
  %937 = vmatprep.subr.mxu0 0.0
  %938 = vmatpush1.msra.mxu0 %v747
  %939 = vmatprep.subr.mxu0 0.0
  %940 = vmatpush1.msra.mxu0 %v748
  %941 = vmatprep.subr.mxu0 0.0
  %942 = vmatpush1.msra.mxu0 %v749
  %943 = vmatprep.subr.mxu0 0.0
  %944 = vmatpush1.msra.mxu0 0.0
  %945 = vmatprep.subr.mxu0 0.0
  %946 = vmatpush1.msra.mxu0 0.0
  %947 = vmatprep.subr.mxu0 0.0
  %948 = vmatpush1.msra.mxu0 0.0
  %949 = vmatprep.subr.mxu0 0.0
  %950 = vmatpush1.msra.mxu0 0.0
  %951 = vmatprep.subr.mxu0 0.0
  %952 = vmatpush1.msra.mxu0 0.0
  %953 = vmatprep.subr.mxu0 0.0
  %954 = vmatpush1.msra.mxu0 0.0
  %955 = vmatprep.subr.mxu0 0.0
  %956 = vmatpush1.msra.mxu0 0.0
  %957 = vmatprep.subr.mxu0 0.0
  %958 = vmatpush1.msra.mxu0 0.0
  %959 = vmatprep.subr.mxu0 0.0
  %960 = vmatpush1.msra.mxu0 0.0
  %961 = vmatprep.subr.mxu0 0.0
  %962 = vmatpush1.msra.mxu0 0.0
  %963 = vmatprep.subr.mxu0 0.0
  %964 = vmatpush1.msra.mxu0 0.0
  %965 = vmatprep.subr.mxu0 0.0
  %966 = vmatpush1.msra.mxu0 0.0
  %967 = vmatprep.subr.mxu0 0.0
  %968 = vmatpush1.msra.mxu0 0.0
  %969 = vmatprep.subr.mxu0 0.0
  %970 = vmatpush1.msra.mxu0 0.0
  %971 = vmatprep.subr.mxu0 0.0
  %972 = vmatpush1.msra.mxu0 0.0
  %973 = vmatprep.subr.mxu0 0.0
  %974 = vmatpush1.msra.mxu0 0.0
  %975 = vmatprep.mubr.f32.mxu0 0.0
  %976 = vmatmul.mubr.f32.gmra.mrb[0].mxu0 %v910
  %v977 = vpop.f32.mrb[0].mxu0
  %v978 = vadd.f32 0.0, %v977
  %v979 = vpop.f32.mrb[0].mxu0
  %980 = vdwg.mxu0
  %v981 = vmul.f32 %v978, 0.03125
  %v982 = vld [vmem:[%s2] sm:$0x1]
  %v983 = vadd.f32 %v981, 1e-05
  %v984 = vrsqrt.pop %v983
  %v985 = vmul.f32 %v982, %v984
  %v987 = vsel %vm825, %v985, 0
  %989 = vmatprep.subr.mxu0 0.0
  %990 = vmatpush1.msra.mxu0 %v821
  %991 = vmatprep.subr.mxu0 0.0
  %992 = vmatpush1.msra.mxu0 %v822
  %993 = vmatprep.subr.mxu0 0.0
  %994 = vmatpush1.msra.mxu0 %v823
  %995 = vmatprep.subr.mxu0 0.0
  %996 = vmatpush1.msra.mxu0 %v824
  %997 = vmatprep.subr.mxu0 0.0
  %998 = vmatpush1.msra.mxu0 0.0
  %999 = vmatprep.subr.mxu0 0.0
  %1000 = vmatpush1.msra.mxu0 0.0
  %1001 = vmatprep.subr.mxu0 0.0
  %1002 = vmatpush1.msra.mxu0 0.0
  %1003 = vmatprep.subr.mxu0 0.0
  %1004 = vmatpush1.msra.mxu0 0.0
  %1005 = vmatprep.subr.mxu0 0.0
  %1006 = vmatpush1.msra.mxu0 0.0
  %1007 = vmatprep.subr.mxu0 0.0
  %1008 = vmatpush1.msra.mxu0 0.0
  %1009 = vmatprep.subr.mxu0 0.0
  %1010 = vmatpush1.msra.mxu0 0.0
  %1011 = vmatprep.subr.mxu0 0.0
  %1012 = vmatpush1.msra.mxu0 0.0
  %1013 = vmatprep.subr.mxu0 0.0
  %1014 = vmatpush1.msra.mxu0 0.0
  %1015 = vmatprep.subr.mxu0 0.0
  %1016 = vmatpush1.msra.mxu0 0.0
  %1017 = vmatprep.subr.mxu0 0.0
  %1018 = vmatpush1.msra.mxu0 0.0
  %1019 = vmatprep.subr.mxu0 0.0
  %1020 = vmatpush1.msra.mxu0 0.0
  %1021 = vmatprep.subr.mxu0 0.0
  %1022 = vmatpush1.msra.mxu0 0.0
  %1023 = vmatprep.subr.mxu0 0.0
  %1024 = vmatpush1.msra.mxu0 0.0
  %1025 = vmatprep.subr.mxu0 0.0
  %1026 = vmatpush1.msra.mxu0 0.0
  %1027 = vmatprep.subr.mxu0 0.0
  %1028 = vmatpush1.msra.mxu0 0.0
  %1029 = vmatprep.subr.mxu0 0.0
  %1030 = vmatpush1.msra.mxu0 0.0
  %1031 = vmatprep.subr.mxu0 0.0
  %1032 = vmatpush1.msra.mxu0 0.0
  %1033 = vmatprep.subr.mxu0 0.0
  %1034 = vmatpush1.msra.mxu0 0.0
  %1035 = vmatprep.subr.mxu0 0.0
  %1036 = vmatpush1.msra.mxu0 0.0
  %1037 = vmatprep.subr.mxu0 0.0
  %1038 = vmatpush1.msra.mxu0 0.0
  %1039 = vmatprep.subr.mxu0 0.0
  %1040 = vmatpush1.msra.mxu0 0.0
  %1041 = vmatprep.subr.mxu0 0.0
  %1042 = vmatpush1.msra.mxu0 0.0
  %1043 = vmatprep.subr.mxu0 0.0
  %1044 = vmatpush1.msra.mxu0 0.0
  %1045 = vmatprep.subr.mxu0 0.0
  %1046 = vmatpush1.msra.mxu0 0.0
  %1047 = vmatprep.subr.mxu0 0.0
  %1048 = vmatpush1.msra.mxu0 0.0
  %1049 = vmatprep.subr.mxu0 0.0
  %1050 = vmatpush1.msra.mxu0 0.0
  %1051 = vmatprep.subr.mxu0 0.0
  %1052 = vmatpush1.msra.mxu0 0.0
  %1053 = vmatprep.mubr.f32.mxu0 0.0
  %1054 = vmatmul.mubr.f32.gmra.mrb[0].mxu0 %v987
  %v1055 = vpop.f32.mrb[0].mxu0
  %v1056 = vadd.f32 0.0, %v1055
  %v1057 = vpop.f32.mrb[0].mxu0
  %1058 = vdwg.mxu0
  %v1059 = vlaneseq
  %v1060 = vshrl.u32 %v1059, 7
  %v1061 = vsub.s32 0, %v1060
  %v1062 = vrot.slane %v1056, %v1061
  %v1063 = vmul.f32 %v903, %v1062
  %v1064 = vld [vmem:[%s3] sm:$0x1]
  %v1066 = vsel %vm825, %v1064, 0
  %1068 = vmatprep.subr.mxu0 0.0
  %1069 = vmatpush1.msra.mxu0 %v821
  %1070 = vmatprep.subr.mxu0 0.0
  %1071 = vmatpush1.msra.mxu0 %v822
  %1072 = vmatprep.subr.mxu0 0.0
  %1073 = vmatpush1.msra.mxu0 %v823
  %1074 = vmatprep.subr.mxu0 0.0
  %1075 = vmatpush1.msra.mxu0 %v824
  %1076 = vmatprep.subr.mxu0 0.0
  %1077 = vmatpush1.msra.mxu0 0.0
  %1078 = vmatprep.subr.mxu0 0.0
  %1079 = vmatpush1.msra.mxu0 0.0
  %1080 = vmatprep.subr.mxu0 0.0
  %1081 = vmatpush1.msra.mxu0 0.0
  %1082 = vmatprep.subr.mxu0 0.0
  %1083 = vmatpush1.msra.mxu0 0.0
  %1084 = vmatprep.subr.mxu0 0.0
  %1085 = vmatpush1.msra.mxu0 0.0
  %1086 = vmatprep.subr.mxu0 0.0
  %1087 = vmatpush1.msra.mxu0 0.0
  %1088 = vmatprep.subr.mxu0 0.0
  %1089 = vmatpush1.msra.mxu0 0.0
  %1090 = vmatprep.subr.mxu0 0.0
  %1091 = vmatpush1.msra.mxu0 0.0
  %1092 = vmatprep.subr.mxu0 0.0
  %1093 = vmatpush1.msra.mxu0 0.0
  %1094 = vmatprep.subr.mxu0 0.0
  %1095 = vmatpush1.msra.mxu0 0.0
  %1096 = vmatprep.subr.mxu0 0.0
  %1097 = vmatpush1.msra.mxu0 0.0
  %1098 = vmatprep.subr.mxu0 0.0
  %1099 = vmatpush1.msra.mxu0 0.0
  %1100 = vmatprep.subr.mxu0 0.0
  %1101 = vmatpush1.msra.mxu0 0.0
  %1102 = vmatprep.subr.mxu0 0.0
  %1103 = vmatpush1.msra.mxu0 0.0
  %1104 = vmatprep.subr.mxu0 0.0
  %1105 = vmatpush1.msra.mxu0 0.0
  %1106 = vmatprep.subr.mxu0 0.0
  %1107 = vmatpush1.msra.mxu0 0.0
  %1108 = vmatprep.subr.mxu0 0.0
  %1109 = vmatpush1.msra.mxu0 0.0
  %1110 = vmatprep.subr.mxu0 0.0
  %1111 = vmatpush1.msra.mxu0 0.0
  %1112 = vmatprep.subr.mxu0 0.0
  %1113 = vmatpush1.msra.mxu0 0.0
  %1114 = vmatprep.subr.mxu0 0.0
  %1115 = vmatpush1.msra.mxu0 0.0
  %1116 = vmatprep.subr.mxu0 0.0
  %1117 = vmatpush1.msra.mxu0 0.0
  %1118 = vmatprep.subr.mxu0 0.0
  %1119 = vmatpush1.msra.mxu0 0.0
  %1120 = vmatprep.subr.mxu0 0.0
  %1121 = vmatpush1.msra.mxu0 0.0
  %1122 = vmatprep.subr.mxu0 0.0
  %1123 = vmatpush1.msra.mxu0 0.0
  %1124 = vmatprep.subr.mxu0 0.0
  %1125 = vmatpush1.msra.mxu0 0.0
  %1126 = vmatprep.subr.mxu0 0.0
  %1127 = vmatpush1.msra.mxu0 0.0
  %1128 = vmatprep.subr.mxu0 0.0
  %1129 = vmatpush1.msra.mxu0 0.0
  %1130 = vmatprep.subr.mxu0 0.0
  %1131 = vmatpush1.msra.mxu0 0.0
  %1132 = vmatprep.mubr.f32.mxu0 0.0
  %1133 = vmatmul.mubr.f32.gmra.mrb[0].mxu0 %v1066
  %v1134 = vpop.f32.mrb[0].mxu0
  %v1135 = vadd.f32 0.0, %v1134
  %v1136 = vpop.f32.mrb[0].mxu0
  %1137 = vdwg.mxu0
  %v1138 = vlaneseq
  %v1139 = vshrl.u32 %v1138, 7
  %v1140 = vsub.s32 0, %v1139
  %v1141 = vrot.slane %v1135, %v1140
  %v1142 = vadd.f32 %v1063, %v1141
  %vm1143 = vcmp.ge.f32.partialorder %v1142, 0.0
  %v1144 = vmul.f32 %v1142, 0.01
  %v1145 = vsel %vm1143, %v1142, %v1144
  %v1146 = vpack.c.bf16 %v1145, %v1145
  %1147 = vst [vmem:[%s6] sm:$0xf] %v1146
  // Predicated region
  $region26: #{net_forward.6} parent=0 // pred_check
    _
  $region27: #{net_forward.6} parent=0 // pred_check_branch
    %1149 = sbr.rel (0) target = $region29
  $region28: #{net_forward.6} parent=0 // pred_region
    _
  $region29: #{net_forward.6} parent=0 // pred_fallthru
    _
  // Predicated region
  $region30: #{net_forward.6} parent=0 // pred_check
    _
  $region31: #{net_forward.6} parent=0 // pred_check_branch
    %1151 = sbr.rel (0) target = $region33
  $region32: #{net_forward.6} parent=0 // pred_region
    _
  $region33: #{net_forward.6} parent=0 // pred_fallthru
    _

// kernel: net_forward.7
$region0: #{net_forward.7}
  #allocation0 [shape = 'u32[]', space=smem, size = 0x4, offset = 0x4, fixed_abs, tag = 'smem constant byte address 0x4 - core index']
  #allocation1 [shape = 'u32[144,128]{1,0:T(1,128)}', space=vmem, size = 0x12000, scoped, tag = 'internal scratch']
  %s0 = inlined_call_operand.vmem [shape: bf16[2,2048], index: 0, kind: input, shape index: {}]
  %s1 = inlined_call_operand.vmem [shape: bf16[2048,256], index: 1, kind: input, shape index: {}]
  %s2 = inlined_call_operand.vmem [shape: f32[1,64], index: 2, kind: input, shape index: {}]
  %s3 = inlined_call_operand.vmem [shape: f32[1,64], index: 3, kind: input, shape index: {}]
  %s4 = inlined_call_operand.vmem [shape: f32[256,64], index: 4, kind: input, shape index: {}]
  %s5 = inlined_call_operand.vmem [shape: f32[64,256], index: 5, kind: input, shape index: {}]
  %s6 = inlined_call_operand.vmem [shape: bf16[256,640], index: 6, kind: input, shape index: {}]
  %s7 = inlined_call_operand.vmem [shape: f32[1,640], index: 7, kind: input, shape index: {}]
  %s8 = inlined_call_operand.hbm [shape: f32[2,640], index: 8, kind: output, shape index: {}]
  %s9 = sld [smem:[#allocation0]]
  $region42: #{net_forward.7} parent=0
    _
  %s11 = ssub.s32 1, %s9
  %s12 = scalar_select 0, %s11, %s9
  $region1: #{net_forward.7} parent=0
    #allocation2 [shape = 'u8[5120]{0}', space=vmem, size = 0x1400, scoped, tag = 'output window, operand 0, single buffered']
    #allocation3 [shape = 's32[1]{0}', space=sflag, size = 0x4, scoped, tag = 'scoped memory for net_forward.7']
    %13 = vsyncpa [#allocation3], 0
    // Predicated region
    $region2: #{net_forward.7} parent=1 // pred_check
      _
    $region3: #{net_forward.7} parent=1 // pred_check_branch
      %15 = sbr.rel (0) target = $region5
    $region4: #{net_forward.7} parent=1 // pred_region
      _
    $region5: #{net_forward.7} parent=1 // pred_fallthru
      _
    // Predicated region
    $region6: #{net_forward.7} parent=1 // pred_check
      _
    $region7: #{net_forward.7} parent=1 // pred_check_branch
      %17 = sbr.rel (0) target = $region9
    $region8: #{net_forward.7} parent=1 // pred_region
      _
    $region9: #{net_forward.7} parent=1 // pred_fallthru
      _
    // Predicated region
    $region10: #{net_forward.7} parent=1 // pred_check
      _
    $region11: #{net_forward.7} parent=1 // pred_check_branch
      %19 = sbr.rel (0) target = $region13
    $region12: #{net_forward.7} parent=1 // pred_region
      _
    $region13: #{net_forward.7} parent=1 // pred_fallthru
      _
    // Predicated region
    $region14: #{net_forward.7} parent=1 // pred_check
      _
    $region15: #{net_forward.7} parent=1 // pred_check_branch
      %21 = sbr.rel (0) target = $region17
    $region16: #{net_forward.7} parent=1 // pred_region
      _
    $region17: #{net_forward.7} parent=1 // pred_fallthru
      _
    // Predicated region
    $region18: #{net_forward.7} parent=1 // pred_check
      _
    $region19: #{net_forward.7} parent=1 // pred_check_branch
      %23 = sbr.rel (0) target = $region21
    $region20: #{net_forward.7} parent=1 // pred_region
      _
    $region21: #{net_forward.7} parent=1 // pred_fallthru
      _
    // Predicated region
    $region22: #{net_forward.7} parent=1 // pred_check
      _
    $region23: #{net_forward.7} parent=1 // pred_check_branch
      %25 = sbr.rel (0) target = $region25
    $region24: #{net_forward.7} parent=1 // pred_region
      _
    $region25: #{net_forward.7} parent=1 // pred_fallthru
      _
    // Predicated region
    $region26: #{net_forward.7} parent=1 // pred_check
      _
    $region27: #{net_forward.7} parent=1 // pred_check_branch
      %27 = sbr.rel (0) target = $region29
    $region28: #{net_forward.7} parent=1 // pred_region
      _
    $region29: #{net_forward.7} parent=1 // pred_fallthru
      _
    // Predicated region
    $region30: #{net_forward.7} parent=1 // pred_check
      _
    $region31: #{net_forward.7} parent=1 // pred_check_branch
      %29 = sbr.rel (0) target = $region33
    $region32: #{net_forward.7} parent=1 // pred_region
      _
    $region33: #{net_forward.7} parent=1 // pred_fallthru
      _
    %v31 = vld [vmem:[%s0] sm:$0xff]
    %v32 = vld [vmem:[%s0 + $0x8] sm:$0xff]
    %v33 = vld [vmem:[%s1] sm:$0xff]
    %v34 = vld [vmem:[%s1 + $0x8] sm:$0xff]
    %v35 = vld [vmem:[%s1 + $0x10] sm:$0xff]
    %v36 = vld [vmem:[%s1 + $0x18] sm:$0xff]
    %v37 = vld [vmem:[%s1 + $0x20] sm:$0xff]
    %v38 = vld [vmem:[%s1 + $0x28] sm:$0xff]
    %v39 = vld [vmem:[%s1 + $0x30] sm:$0xff]
    %v40 = vld [vmem:[%s1 + $0x38] sm:$0xff]
    %v41 = vld [vmem:[%s1 + $0x40] sm:$0xff]
    %v42 = vld [vmem:[%s1 + $0x48] sm:$0xff]
    %v43 = vld [vmem:[%s1 + $0x50] sm:$0xff]
    %v44 = vld [vmem:[%s1 + $0x58] sm:$0xff]
    %v45 = vld [vmem:[%s1 + $0x60] sm:$0xff]
    %v46 = vld [vmem:[%s1 + $0x68] sm:$0xff]
    %v47 = vld [vmem:[%s1 + $0x70] sm:$0xff]
    %v48 = vld [vmem:[%s1 + $0x78] sm:$0xff]
    %v49 = vld [vmem:[%s1 + $0x80] sm:$0xff]
    %v50 = vld [vmem:[%s1 + $0x88] sm:$0xff]
    %v51 = vld [vmem:[%s1 + $0x90] sm:$0xff]
    %v52 = vld [vmem:[%s1 + $0x98] sm:$0xff]
    %v53 = vld [vmem:[%s1 + $0xa0] sm:$0xff]
    %v54 = vld [vmem:[%s1 + $0xa8] sm:$0xff]
    %v55 = vld [vmem:[%s1 + $0xb0] sm:$0xff]
    %v56 = vld [vmem:[%s1 + $0xb8] sm:$0xff]
    %v57 = vld [vmem:[%s1 + $0xc0] sm:$0xff]
    %v58 = vld [vmem:[%s1 + $0xc8] sm:$0xff]
    %v59 = vld [vmem:[%s1 + $0xd0] sm:$0xff]
    %v60 = vld [vmem:[%s1 + $0xd8] sm:$0xff]
    %v61 = vld [vmem:[%s1 + $0xe0] sm:$0xff]
    %v62 = vld [vmem:[%s1 + $0xe8] sm:$0xff]
    %v63 = vld [vmem:[%s1 + $0xf0] sm:$0xff]
    %v64 = vld [vmem:[%s1 + $0xf8] sm:$0xff]
    %v65 = vld [vmem:[%s1 + $0x100] sm:$0xff]
    %v66 = vld [vmem:[%s1 + $0x108] sm:$0xff]
    %v67 = vld [vmem:[%s1 + $0x110] sm:$0xff]
    %v68 = vld [vmem:[%s1 + $0x118] sm:$0xff]
    %v69 = vld [vmem:[%s1 + $0x120] sm:$0xff]
    %v70 = vld [vmem:[%s1 + $0x128] sm:$0xff]
    %v71 = vld [vmem:[%s1 + $0x130] sm:$0xff]
    %v72 = vld [vmem:[%s1 + $0x138] sm:$0xff]
    %v73 = vld [vmem:[%s1 + $0x140] sm:$0xff]
    %v74 = vld [vmem:[%s1 + $0x148] sm:$0xff]
    %v75 = vld [vmem:[%s1 + $0x150] sm:$0xff]
    %v76 = vld [vmem:[%s1 + $0x158] sm:$0xff]
    %v77 = vld [vmem:[%s1 + $0x160] sm:$0xff]
    %v78 = vld [vmem:[%s1 + $0x168] sm:$0xff]
    %v79 = vld [vmem:[%s1 + $0x170] sm:$0xff]
    %v80 = vld [vmem:[%s1 + $0x178] sm:$0xff]
    %v81 = vld [vmem:[%s1 + $0x180] sm:$0xff]
    %v82 = vld [vmem:[%s1 + $0x188] sm:$0xff]
    %v83 = vld [vmem:[%s1 + $0x190] sm:$0xff]
    %v84 = vld [vmem:[%s1 + $0x198] sm:$0xff]
    %v85 = vld [vmem:[%s1 + $0x1a0] sm:$0xff]
    %v86 = vld [vmem:[%s1 + $0x1a8] sm:$0xff]
    %v87 = vld [vmem:[%s1 + $0x1b0] sm:$0xff]
    %v88 = vld [vmem:[%s1 + $0x1b8] sm:$0xff]
    %v89 = vld [vmem:[%s1 + $0x1c0] sm:$0xff]
    %v90 = vld [vmem:[%s1 + $0x1c8] sm:$0xff]
    %v91 = vld [vmem:[%s1 + $0x1d0] sm:$0xff]
    %v92 = vld [vmem:[%s1 + $0x1d8] sm:$0xff]
    %v93 = vld [vmem:[%s1 + $0x1e0] sm:$0xff]
    %v94 = vld [vmem:[%s1 + $0x1e8] sm:$0xff]
    %v95 = vld [vmem:[%s1 + $0x1f0] sm:$0xff]
    %v96 = vld [vmem:[%s1 + $0x1f8] sm:$0xff]
    %v97 = vld [vmem:[%s1 + $0x200] sm:$0xff]
    %v98 = vld [vmem:[%s1 + $0x208] sm:$0xff]
    %v99 = vld [vmem:[%s1 + $0x210] sm:$0xff]
    %v100 = vld [vmem:[%s1 + $0x218] sm:$0xff]
    %v101 = vld [vmem:[%s1 + $0x220] sm:$0xff]
    %v102 = vld [vmem:[%s1 + $0x228] sm:$0xff]
    %v103 = vld [vmem:[%s1 + $0x230] sm:$0xff]
    %v104 = vld [vmem:[%s1 + $0x238] sm:$0xff]
    %v105 = vld [vmem:[%s1 + $0x240] sm:$0xff]
    %v106 = vld [vmem:[%s1 + $0x248] sm:$0xff]
    %v107 = vld [vmem:[%s1 + $0x250] sm:$0xff]
    %v108 = vld [vmem:[%s1 + $0x258] sm:$0xff]
    %v109 = vld [vmem:[%s1 + $0x260] sm:$0xff]
    %v110 = vld [vmem:[%s1 + $0x268] sm:$0xff]
    %v111 = vld [vmem:[%s1 + $0x270] sm:$0xff]
    %v112 = vld [vmem:[%s1 + $0x278] sm:$0xff]
    %v113 = vld [vmem:[%s1 + $0x280] sm:$0xff]
    %v114 = vld [vmem:[%s1 + $0x288] sm:$0xff]
    %v115 = vld [vmem:[%s1 + $0x290] sm:$0xff]
    %v116 = vld [vmem:[%s1 + $0x298] sm:$0xff]
    %v117 = vld [vmem:[%s1 + $0x2a0] sm:$0xff]
    %v118 = vld [vmem:[%s1 + $0x2a8] sm:$0xff]
    %v119 = vld [vmem:[%s1 + $0x2b0] sm:$0xff]
    %v120 = vld [vmem:[%s1 + $0x2b8] sm:$0xff]
    %v121 = vld [vmem:[%s1 + $0x2c0] sm:$0xff]
    %v122 = vld [vmem:[%s1 + $0x2c8] sm:$0xff]
    %v123 = vld [vmem:[%s1 + $0x2d0] sm:$0xff]
    %v124 = vld [vmem:[%s1 + $0x2d8] sm:$0xff]
    %v125 = vld [vmem:[%s1 + $0x2e0] sm:$0xff]
    %v126 = vld [vmem:[%s1 + $0x2e8] sm:$0xff]
    %v127 = vld [vmem:[%s1 + $0x2f0] sm:$0xff]
    %v128 = vld [vmem:[%s1 + $0x2f8] sm:$0xff]
    %v129 = vld [vmem:[%s1 + $0x300] sm:$0xff]
    %v130 = vld [vmem:[%s1 + $0x308] sm:$0xff]
    %v131 = vld [vmem:[%s1 + $0x310] sm:$0xff]
    %v132 = vld [vmem:[%s1 + $0x318] sm:$0xff]
    %v133 = vld [vmem:[%s1 + $0x320] sm:$0xff]
    %v134 = vld [vmem:[%s1 + $0x328] sm:$0xff]
    %v135 = vld [vmem:[%s1 + $0x330] sm:$0xff]
    %v136 = vld [vmem:[%s1 + $0x338] sm:$0xff]
    %v137 = vld [vmem:[%s1 + $0x340] sm:$0xff]
    %v138 = vld [vmem:[%s1 + $0x348] sm:$0xff]
    %v139 = vld [vmem:[%s1 + $0x350] sm:$0xff]
    %v140 = vld [vmem:[%s1 + $0x358] sm:$0xff]
    %v141 = vld [vmem:[%s1 + $0x360] sm:$0xff]
    %v142 = vld [vmem:[%s1 + $0x368] sm:$0xff]
    %v143 = vld [vmem:[%s1 + $0x370] sm:$0xff]
    %v144 = vld [vmem:[%s1 + $0x378] sm:$0xff]
    %v145 = vld [vmem:[%s1 + $0x380] sm:$0xff]
    %v146 = vld [vmem:[%s1 + $0x388] sm:$0xff]
    %v147 = vld [vmem:[%s1 + $0x390] sm:$0xff]
    %v148 = vld [vmem:[%s1 + $0x398] sm:$0xff]
    %v149 = vld [vmem:[%s1 + $0x3a0] sm:$0xff]
    %v150 = vld [vmem:[%s1 + $0x3a8] sm:$0xff]
    %v151 = vld [vmem:[%s1 + $0x3b0] sm:$0xff]
    %v152 = vld [vmem:[%s1 + $0x3b8] sm:$0xff]
    %v153 = vld [vmem:[%s1 + $0x3c0] sm:$0xff]
    %v154 = vld [vmem:[%s1 + $0x3c8] sm:$0xff]
    %v155 = vld [vmem:[%s1 + $0x3d0] sm:$0xff]
    %v156 = vld [vmem:[%s1 + $0x3d8] sm:$0xff]
    %v157 = vld [vmem:[%s1 + $0x3e0] sm:$0xff]
    %v158 = vld [vmem:[%s1 + $0x3e8] sm:$0xff]
    %v159 = vld [vmem:[%s1 + $0x3f0] sm:$0xff]
    %v160 = vld [vmem:[%s1 + $0x3f8] sm:$0xff]
    %v161 = vld [vmem:[%s1 + $0x400] sm:$0xff]
    %v162 = vld [vmem:[%s1 + $0x408] sm:$0xff]
    %v163 = vld [vmem:[%s1 + $0x410] sm:$0xff]
    %v164 = vld [vmem:[%s1 + $0x418] sm:$0xff]
    %v165 = vld [vmem:[%s1 + $0x420] sm:$0xff]
    %v166 = vld [vmem:[%s1 + $0x428] sm:$0xff]
    %v167 = vld [vmem:[%s1 + $0x430] sm:$0xff]
    %v168 = vld [vmem:[%s1 + $0x438] sm:$0xff]
    %v169 = vld [vmem:[%s1 + $0x440] sm:$0xff]
    %v170 = vld [vmem:[%s1 + $0x448] sm:$0xff]
    %v171 = vld [vmem:[%s1 + $0x450] sm:$0xff]
    %v172 = vld [vmem:[%s1 + $0x458] sm:$0xff]
    %v173 = vld [vmem:[%s1 + $0x460] sm:$0xff]
    %v174 = vld [vmem:[%s1 + $0x468] sm:$0xff]
    %v175 = vld [vmem:[%s1 + $0x470] sm:$0xff]
    %v176 = vld [vmem:[%s1 + $0x478] sm:$0xff]
    %v177 = vld [vmem:[%s1 + $0x480] sm:$0xff]
    %v178 = vld [vmem:[%s1 + $0x488] sm:$0xff]
    %v179 = vld [vmem:[%s1 + $0x490] sm:$0xff]
    %v180 = vld [vmem:[%s1 + $0x498] sm:$0xff]
    %v181 = vld [vmem:[%s1 + $0x4a0] sm:$0xff]
    %v182 = vld [vmem:[%s1 + $0x4a8] sm:$0xff]
    %v183 = vld [vmem:[%s1 + $0x4b0] sm:$0xff]
    %v184 = vld [vmem:[%s1 + $0x4b8] sm:$0xff]
    %v185 = vld [vmem:[%s1 + $0x4c0] sm:$0xff]
    %v186 = vld [vmem:[%s1 + $0x4c8] sm:$0xff]
    %v187 = vld [vmem:[%s1 + $0x4d0] sm:$0xff]
    %v188 = vld [vmem:[%s1 + $0x4d8] sm:$0xff]
    %v189 = vld [vmem:[%s1 + $0x4e0] sm:$0xff]
    %v190 = vld [vmem:[%s1 + $0x4e8] sm:$0xff]
    %v191 = vld [vmem:[%s1 + $0x4f0] sm:$0xff]
    %v192 = vld [vmem:[%s1 + $0x4f8] sm:$0xff]
    %v193 = vld [vmem:[%s1 + $0x500] sm:$0xff]
    %v194 = vld [vmem:[%s1 + $0x508] sm:$0xff]
    %v195 = vld [vmem:[%s1 + $0x510] sm:$0xff]
    %v196 = vld [vmem:[%s1 + $0x518] sm:$0xff]
    %v197 = vld [vmem:[%s1 + $0x520] sm:$0xff]
    %v198 = vld [vmem:[%s1 + $0x528] sm:$0xff]
    %v199 = vld [vmem:[%s1 + $0x530] sm:$0xff]
    %v200 = vld [vmem:[%s1 + $0x538] sm:$0xff]
    %v201 = vld [vmem:[%s1 + $0x540] sm:$0xff]
    %v202 = vld [vmem:[%s1 + $0x548] sm:$0xff]
    %v203 = vld [vmem:[%s1 + $0x550] sm:$0xff]
    %v204 = vld [vmem:[%s1 + $0x558] sm:$0xff]
    %v205 = vld [vmem:[%s1 + $0x560] sm:$0xff]
    %v206 = vld [vmem:[%s1 + $0x568] sm:$0xff]
    %v207 = vld [vmem:[%s1 + $0x570] sm:$0xff]
    %v208 = vld [vmem:[%s1 + $0x578] sm:$0xff]
    %v209 = vld [vmem:[%s1 + $0x580] sm:$0xff]
    %v210 = vld [vmem:[%s1 + $0x588] sm:$0xff]
    %v211 = vld [vmem:[%s1 + $0x590] sm:$0xff]
    %v212 = vld [vmem:[%s1 + $0x598] sm:$0xff]
    %v213 = vld [vmem:[%s1 + $0x5a0] sm:$0xff]
    %v214 = vld [vmem:[%s1 + $0x5a8] sm:$0xff]
    %v215 = vld [vmem:[%s1 + $0x5b0] sm:$0xff]
    %v216 = vld [vmem:[%s1 + $0x5b8] sm:$0xff]
    %v217 = vld [vmem:[%s1 + $0x5c0] sm:$0xff]
    %v218 = vld [vmem:[%s1 + $0x5c8] sm:$0xff]
    %v219 = vld [vmem:[%s1 + $0x5d0] sm:$0xff]
    %v220 = vld [vmem:[%s1 + $0x5d8] sm:$0xff]
    %v221 = vld [vmem:[%s1 + $0x5e0] sm:$0xff]
    %v222 = vld [vmem:[%s1 + $0x5e8] sm:$0xff]
    %v223 = vld [vmem:[%s1 + $0x5f0] sm:$0xff]
    %v224 = vld [vmem:[%s1 + $0x5f8] sm:$0xff]
    %v225 = vld [vmem:[%s1 + $0x600] sm:$0xff]
    %v226 = vld [vmem:[%s1 + $0x608] sm:$0xff]
    %v227 = vld [vmem:[%s1 + $0x610] sm:$0xff]
    %v228 = vld [vmem:[%s1 + $0x618] sm:$0xff]
    %v229 = vld [vmem:[%s1 + $0x620] sm:$0xff]
    %v230 = vld [vmem:[%s1 + $0x628] sm:$0xff]
    %v231 = vld [vmem:[%s1 + $0x630] sm:$0xff]
    %v232 = vld [vmem:[%s1 + $0x638] sm:$0xff]
    %v233 = vld [vmem:[%s1 + $0x640] sm:$0xff]
    %v234 = vld [vmem:[%s1 + $0x648] sm:$0xff]
    %v235 = vld [vmem:[%s1 + $0x650] sm:$0xff]
    %v236 = vld [vmem:[%s1 + $0x658] sm:$0xff]
    %v237 = vld [vmem:[%s1 + $0x660] sm:$0xff]
    %v238 = vld [vmem:[%s1 + $0x668] sm:$0xff]
    %v239 = vld [vmem:[%s1 + $0x670] sm:$0xff]
    %v240 = vld [vmem:[%s1 + $0x678] sm:$0xff]
    %v241 = vld [vmem:[%s1 + $0x680] sm:$0xff]
    %v242 = vld [vmem:[%s1 + $0x688] sm:$0xff]
    %v243 = vld [vmem:[%s1 + $0x690] sm:$0xff]
    %v244 = vld [vmem:[%s1 + $0x698] sm:$0xff]
    %v245 = vld [vmem:[%s1 + $0x6a0] sm:$0xff]
    %v246 = vld [vmem:[%s1 + $0x6a8] sm:$0xff]
    %v247 = vld [vmem:[%s1 + $0x6b0] sm:$0xff]
    %v248 = vld [vmem:[%s1 + $0x6b8] sm:$0xff]
    %v249 = vld [vmem:[%s1 + $0x6c0] sm:$0xff]
    %v250 = vld [vmem:[%s1 + $0x6c8] sm:$0xff]
    %v251 = vld [vmem:[%s1 + $0x6d0] sm:$0xff]
    %v252 = vld [vmem:[%s1 + $0x6d8] sm:$0xff]
    %v253 = vld [vmem:[%s1 + $0x6e0] sm:$0xff]
    %v254 = vld [vmem:[%s1 + $0x6e8] sm:$0xff]
    %v255 = vld [vmem:[%s1 + $0x6f0] sm:$0xff]
    %v256 = vld [vmem:[%s1 + $0x6f8] sm:$0xff]
    %v257 = vld [vmem:[%s1 + $0x700] sm:$0xff]
    %v258 = vld [vmem:[%s1 + $0x708] sm:$0xff]
    %v259 = vld [vmem:[%s1 + $0x710] sm:$0xff]
    %v260 = vld [vmem:[%s1 + $0x718] sm:$0xff]
    %v261 = vld [vmem:[%s1 + $0x720] sm:$0xff]
    %v262 = vld [vmem:[%s1 + $0x728] sm:$0xff]
    %v263 = vld [vmem:[%s1 + $0x730] sm:$0xff]
    %v264 = vld [vmem:[%s1 + $0x738] sm:$0xff]
    %v265 = vld [vmem:[%s1 + $0x740] sm:$0xff]
    %v266 = vld [vmem:[%s1 + $0x748] sm:$0xff]
    %v267 = vld [vmem:[%s1 + $0x750] sm:$0xff]
    %v268 = vld [vmem:[%s1 + $0x758] sm:$0xff]
    %v269 = vld [vmem:[%s1 + $0x760] sm:$0xff]
    %v270 = vld [vmem:[%s1 + $0x768] sm:$0xff]
    %v271 = vld [vmem:[%s1 + $0x770] sm:$0xff]
    %v272 = vld [vmem:[%s1 + $0x778] sm:$0xff]
    %v273 = vld [vmem:[%s1 + $0x780] sm:$0xff]
    %v274 = vld [vmem:[%s1 + $0x788] sm:$0xff]
    %v275 = vld [vmem:[%s1 + $0x790] sm:$0xff]
    %v276 = vld [vmem:[%s1 + $0x798] sm:$0xff]
    %v277 = vld [vmem:[%s1 + $0x7a0] sm:$0xff]
    %v278 = vld [vmem:[%s1 + $0x7a8] sm:$0xff]
    %v279 = vld [vmem:[%s1 + $0x7b0] sm:$0xff]
    %v280 = vld [vmem:[%s1 + $0x7b8] sm:$0xff]
    %v281 = vld [vmem:[%s1 + $0x7c0] sm:$0xff]
    %v282 = vld [vmem:[%s1 + $0x7c8] sm:$0xff]
    %v283 = vld [vmem:[%s1 + $0x7d0] sm:$0xff]
    %v284 = vld [vmem:[%s1 + $0x7d8] sm:$0xff]
    %v285 = vld [vmem:[%s1 + $0x7e0] sm:$0xff]
    %v286 = vld [vmem:[%s1 + $0x7e8] sm:$0xff]
    %v287 = vld [vmem:[%s1 + $0x7f0] sm:$0xff]
    %v288 = vld [vmem:[%s1 + $0x7f8] sm:$0xff]
    %v291 = vcombine.high %v31, %v31
    %v293 = vunpack.c.l.s4 1966171168
    %v294 = vunpack.c.0.s8 %v293
    %v295 = vlaneseq
    %v296 = vshrl.u32 %v295, 7
    %v297 = vsub.s32 %v294, %v296
    %v298 = vrot.slane %v31, %v297
    %v300 = vunpack.c.l.s4 1966171168
    %v301 = vunpack.c.0.s8 %v300
    %v302 = vlaneseq
    %v303 = vshrl.u32 %v302, 7
    %v304 = vsub.s32 %v301, %v303
    %v305 = vrot.slane %v291, %v304
    %v306 = vcombine.high %v298, %v298
    %v307 = vcombine.high %v305, %v305
    %v309 = vunpack.c.l.s4 1966171168
    %v310 = vunpack.c.0.s8 %v309
    %v311 = vlaneseq
    %v312 = vshrl.u32 %v311, 7
    %v313 = vsub.s32 %v310, %v312
    %v314 = vrot.slane %v298, %v313
    %v316 = vunpack.c.l.s4 1966171168
    %v317 = vunpack.c.0.s8 %v316
    %v318 = vlaneseq
    %v319 = vshrl.u32 %v318, 7
    %v320 = vsub.s32 %v317, %v319
    %v321 = vrot.slane %v305, %v320
    %v323 = vunpack.c.l.s4 1966171168
    %v324 = vunpack.c.0.s8 %v323
    %v325 = vlaneseq
    %v326 = vshrl.u32 %v325, 7
    %v327 = vsub.s32 %v324, %v326
    %v328 = vrot.slane %v306, %v327
    %v330 = vunpack.c.l.s4 1966171168
    %v331 = vunpack.c.0.s8 %v330
    %v332 = vlaneseq
    %v333 = vshrl.u32 %v332, 7
    %v334 = vsub.s32 %v331, %v333
    %v335 = vrot.slane %v307, %v334
    %v336 = vcombine.high %v314, %v314
    %v337 = vcombine.high %v321, %v321
    %v338 = vcombine.high %v328, %v328
    %v339 = vcombine.high %v335, %v335
    %v340 = vcombine.high %v32, %v32
    %v342 = vunpack.c.l.s4 1966171168
    %v343 = vunpack.c.0.s8 %v342
    %v344 = vlaneseq
    %v345 = vshrl.u32 %v344, 7
    %v346 = vsub.s32 %v343, %v345
    %v347 = vrot.slane %v32, %v346
    %v349 = vunpack.c.l.s4 1966171168
    %v350 = vunpack.c.0.s8 %v349
    %v351 = vlaneseq
    %v352 = vshrl.u32 %v351, 7
    %v353 = vsub.s32 %v350, %v352
    %v354 = vrot.slane %v340, %v353
    %v355 = vcombine.high %v347, %v347
    %v356 = vcombine.high %v354, %v354
    %v358 = vunpack.c.l.s4 1966171168
    %v359 = vunpack.c.0.s8 %v358
    %v360 = vlaneseq
    %v361 = vshrl.u32 %v360, 7
    %v362 = vsub.s32 %v359, %v361
    %v363 = vrot.slane %v347, %v362
    %v365 = vunpack.c.l.s4 1966171168
    %v366 = vunpack.c.0.s8 %v365
    %v367 = vlaneseq
    %v368 = vshrl.u32 %v367, 7
    %v369 = vsub.s32 %v366, %v368
    %v370 = vrot.slane %v354, %v369
    %v372 = vunpack.c.l.s4 1966171168
    %v373 = vunpack.c.0.s8 %v372
    %v374 = vlaneseq
    %v375 = vshrl.u32 %v374, 7
    %v376 = vsub.s32 %v373, %v375
    %v377 = vrot.slane %v355, %v376
    %v379 = vunpack.c.l.s4 1966171168
    %v380 = vunpack.c.0.s8 %v379
    %v381 = vlaneseq
    %v382 = vshrl.u32 %v381, 7
    %v383 = vsub.s32 %v380, %v382
    %v384 = vrot.slane %v356, %v383
    %v385 = vcombine.high %v363, %v363
    %v386 = vcombine.high %v370, %v370
    %v387 = vcombine.high %v377, %v377
    %v388 = vcombine.high %v384, %v384
    %v661 = vunpack.c.l.b16 %v33
    %v662 = vunpack.c.h.b16 %v33
    %v663 = vunpack.c.l.b16 %v34
    %v664 = vunpack.c.h.b16 %v34
    %v665 = vunpack.c.l.b16 %v35
    %v666 = vunpack.c.h.b16 %v35
    %v667 = vunpack.c.l.b16 %v36
    %v668 = vunpack.c.h.b16 %v36
    %v669 = vunpack.c.l.b16 %v37
    %v670 = vunpack.c.h.b16 %v37
    %v671 = vunpack.c.l.b16 %v38
    %v672 = vunpack.c.h.b16 %v38
    %v673 = vunpack.c.l.b16 %v39
    %v674 = vunpack.c.h.b16 %v39
    %v675 = vunpack.c.l.b16 %v40
    %v676 = vunpack.c.h.b16 %v40
    %v677 = vunpack.c.l.b16 %v41
    %v678 = vunpack.c.h.b16 %v41
    %v679 = vunpack.c.l.b16 %v42
    %v680 = vunpack.c.h.b16 %v42
    %v681 = vunpack.c.l.b16 %v43
    %v682 = vunpack.c.h.b16 %v43
    %v683 = vunpack.c.l.b16 %v44
    %v684 = vunpack.c.h.b16 %v44
    %v685 = vunpack.c.l.b16 %v45
    %v686 = vunpack.c.h.b16 %v45
    %v687 = vunpack.c.l.b16 %v46
    %v688 = vunpack.c.h.b16 %v46
    %v689 = vunpack.c.l.b16 %v47
    %v690 = vunpack.c.h.b16 %v47
    %v691 = vunpack.c.l.b16 %v48
    %v692 = vunpack.c.h.b16 %v48
    %v693 = vunpack.c.l.b16 %v49
    %v694 = vunpack.c.h.b16 %v49
    %v695 = vunpack.c.l.b16 %v50
    %v696 = vunpack.c.h.b16 %v50
    %v697 = vunpack.c.l.b16 %v51
    %v698 = vunpack.c.h.b16 %v51
    %v699 = vunpack.c.l.b16 %v52
    %v700 = vunpack.c.h.b16 %v52
    %v701 = vunpack.c.l.b16 %v53
    %v702 = vunpack.c.h.b16 %v53
    %v703 = vunpack.c.l.b16 %v54
    %v704 = vunpack.c.h.b16 %v54
    %v705 = vunpack.c.l.b16 %v55
    %v706 = vunpack.c.h.b16 %v55
    %v707 = vunpack.c.l.b16 %v56
    %v708 = vunpack.c.h.b16 %v56
    %v709 = vunpack.c.l.b16 %v57
    %v710 = vunpack.c.h.b16 %v57
    %v711 = vunpack.c.l.b16 %v58
    %v712 = vunpack.c.h.b16 %v58
    %v713 = vunpack.c.l.b16 %v59
    %v714 = vunpack.c.h.b16 %v59
    %v715 = vunpack.c.l.b16 %v60
    %v716 = vunpack.c.h.b16 %v60
    %v717 = vunpack.c.l.b16 %v61
    %v718 = vunpack.c.h.b16 %v61
    %v719 = vunpack.c.l.b16 %v62
    %v720 = vunpack.c.h.b16 %v62
    %v721 = vunpack.c.l.b16 %v63
    %v722 = vunpack.c.h.b16 %v63
    %v723 = vunpack.c.l.b16 %v64
    %v724 = vunpack.c.h.b16 %v64
    %v725 = vunpack.c.l.b16 %v65
    %v726 = vunpack.c.h.b16 %v65
    %v727 = vunpack.c.l.b16 %v66
    %v728 = vunpack.c.h.b16 %v66
    %v729 = vunpack.c.l.b16 %v67
    %v730 = vunpack.c.h.b16 %v67
    %v731 = vunpack.c.l.b16 %v68
    %v732 = vunpack.c.h.b16 %v68
    %v733 = vunpack.c.l.b16 %v69
    %v734 = vunpack.c.h.b16 %v69
    %v735 = vunpack.c.l.b16 %v70
    %v736 = vunpack.c.h.b16 %v70
    %v737 = vunpack.c.l.b16 %v71
    %v738 = vunpack.c.h.b16 %v71
    %v739 = vunpack.c.l.b16 %v72
    %v740 = vunpack.c.h.b16 %v72
    %v741 = vunpack.c.l.b16 %v73
    %v742 = vunpack.c.h.b16 %v73
    %v743 = vunpack.c.l.b16 %v74
    %v744 = vunpack.c.h.b16 %v74
    %v745 = vunpack.c.l.b16 %v75
    %v746 = vunpack.c.h.b16 %v75
    %v747 = vunpack.c.l.b16 %v76
    %v748 = vunpack.c.h.b16 %v76
    %v749 = vunpack.c.l.b16 %v77
    %v750 = vunpack.c.h.b16 %v77
    %v751 = vunpack.c.l.b16 %v78
    %v752 = vunpack.c.h.b16 %v78
    %v753 = vunpack.c.l.b16 %v79
    %v754 = vunpack.c.h.b16 %v79
    %v755 = vunpack.c.l.b16 %v80
    %v756 = vunpack.c.h.b16 %v80
    %v757 = vunpack.c.l.b16 %v81
    %v758 = vunpack.c.h.b16 %v81
    %v759 = vunpack.c.l.b16 %v82
    %v760 = vunpack.c.h.b16 %v82
    %v761 = vunpack.c.l.b16 %v83
    %v762 = vunpack.c.h.b16 %v83
    %v763 = vunpack.c.l.b16 %v84
    %v764 = vunpack.c.h.b16 %v84
    %v765 = vunpack.c.l.b16 %v85
    %v766 = vunpack.c.h.b16 %v85
    %v767 = vunpack.c.l.b16 %v86
    %v768 = vunpack.c.h.b16 %v86
    %v769 = vunpack.c.l.b16 %v87
    %v770 = vunpack.c.h.b16 %v87
    %v771 = vunpack.c.l.b16 %v88
    %v772 = vunpack.c.h.b16 %v88
    %v773 = vunpack.c.l.b16 %v89
    %v774 = vunpack.c.h.b16 %v89
    %v775 = vunpack.c.l.b16 %v90
    %v776 = vunpack.c.h.b16 %v90
    %v777 = vunpack.c.l.b16 %v91
    %v778 = vunpack.c.h.b16 %v91
    %v779 = vunpack.c.l.b16 %v92
    %v780 = vunpack.c.h.b16 %v92
    %v781 = vunpack.c.l.b16 %v93
    %v782 = vunpack.c.h.b16 %v93
    %v783 = vunpack.c.l.b16 %v94
    %v784 = vunpack.c.h.b16 %v94
    %v785 = vunpack.c.l.b16 %v95
    %v786 = vunpack.c.h.b16 %v95
    %v787 = vunpack.c.l.b16 %v96
    %v788 = vunpack.c.h.b16 %v96
    %v789 = vunpack.c.l.b16 %v97
    %v790 = vunpack.c.h.b16 %v97
    %v791 = vunpack.c.l.b16 %v98
    %v792 = vunpack.c.h.b16 %v98
    %v793 = vunpack.c.l.b16 %v99
    %v794 = vunpack.c.h.b16 %v99
    %v795 = vunpack.c.l.b16 %v100
    %v796 = vunpack.c.h.b16 %v100
    %v797 = vunpack.c.l.b16 %v101
    %v798 = vunpack.c.h.b16 %v101
    %v799 = vunpack.c.l.b16 %v102
    %v800 = vunpack.c.h.b16 %v102
    %v801 = vunpack.c.l.b16 %v103
    %v802 = vunpack.c.h.b16 %v103
    %v803 = vunpack.c.l.b16 %v104
    %v804 = vunpack.c.h.b16 %v104
    %v805 = vunpack.c.l.b16 %v105
    %v806 = vunpack.c.h.b16 %v105
    %v807 = vunpack.c.l.b16 %v106
    %v808 = vunpack.c.h.b16 %v106
    %v809 = vunpack.c.l.b16 %v107
    %v810 = vunpack.c.h.b16 %v107
    %v811 = vunpack.c.l.b16 %v108
    %v812 = vunpack.c.h.b16 %v108
    %v813 = vunpack.c.l.b16 %v109
    %v814 = vunpack.c.h.b16 %v109
    %v815 = vunpack.c.l.b16 %v110
    %v816 = vunpack.c.h.b16 %v110
    %v817 = vunpack.c.l.b16 %v111
    %v818 = vunpack.c.h.b16 %v111
    %v819 = vunpack.c.l.b16 %v112
    %v820 = vunpack.c.h.b16 %v112
    %v821 = vunpack.c.l.b16 %v113
    %v822 = vunpack.c.h.b16 %v113
    %v823 = vunpack.c.l.b16 %v114
    %v824 = vunpack.c.h.b16 %v114
    %v825 = vunpack.c.l.b16 %v115
    %v826 = vunpack.c.h.b16 %v115
    %v827 = vunpack.c.l.b16 %v116
    %v828 = vunpack.c.h.b16 %v116
    %v829 = vunpack.c.l.b16 %v117
    %v830 = vunpack.c.h.b16 %v117
    %v831 = vunpack.c.l.b16 %v118
    %v832 = vunpack.c.h.b16 %v118
    %v833 = vunpack.c.l.b16 %v119
    %v834 = vunpack.c.h.b16 %v119
    %v835 = vunpack.c.l.b16 %v120
    %v836 = vunpack.c.h.b16 %v120
    %v837 = vunpack.c.l.b16 %v121
    %v838 = vunpack.c.h.b16 %v121
    %v839 = vunpack.c.l.b16 %v122
    %v840 = vunpack.c.h.b16 %v122
    %v841 = vunpack.c.l.b16 %v123
    %v842 = vunpack.c.h.b16 %v123
    %v843 = vunpack.c.l.b16 %v124
    %v844 = vunpack.c.h.b16 %v124
    %v845 = vunpack.c.l.b16 %v125
    %v846 = vunpack.c.h.b16 %v125
    %v847 = vunpack.c.l.b16 %v126
    %v848 = vunpack.c.h.b16 %v126
    %v849 = vunpack.c.l.b16 %v127
    %v850 = vunpack.c.h.b16 %v127
    %v851 = vunpack.c.l.b16 %v128
    %v852 = vunpack.c.h.b16 %v128
    %v853 = vunpack.c.l.b16 %v129
    %v854 = vunpack.c.h.b16 %v129
    %v855 = vunpack.c.l.b16 %v130
    %v856 = vunpack.c.h.b16 %v130
    %v857 = vunpack.c.l.b16 %v131
    %v858 = vunpack.c.h.b16 %v131
    %v859 = vunpack.c.l.b16 %v132
    %v860 = vunpack.c.h.b16 %v132
    %v861 = vunpack.c.l.b16 %v133
    %v862 = vunpack.c.h.b16 %v133
    %v863 = vunpack.c.l.b16 %v134
    %v864 = vunpack.c.h.b16 %v134
    %v865 = vunpack.c.l.b16 %v135
    %v866 = vunpack.c.h.b16 %v135
    %v867 = vunpack.c.l.b16 %v136
    %v868 = vunpack.c.h.b16 %v136
    %v869 = vunpack.c.l.b16 %v137
    %v870 = vunpack.c.h.b16 %v137
    %v871 = vunpack.c.l.b16 %v138
    %v872 = vunpack.c.h.b16 %v138
    %v873 = vunpack.c.l.b16 %v139
    %v874 = vunpack.c.h.b16 %v139
    %v875 = vunpack.c.l.b16 %v140
    %v876 = vunpack.c.h.b16 %v140
    %v877 = vunpack.c.l.b16 %v141
    %v878 = vunpack.c.h.b16 %v141
    %v879 = vunpack.c.l.b16 %v142
    %v880 = vunpack.c.h.b16 %v142
    %v881 = vunpack.c.l.b16 %v143
    %v882 = vunpack.c.h.b16 %v143
    %v883 = vunpack.c.l.b16 %v144
    %v884 = vunpack.c.h.b16 %v144
    %v885 = vunpack.c.l.b16 %v145
    %v886 = vunpack.c.h.b16 %v145
    %v887 = vunpack.c.l.b16 %v146
    %v888 = vunpack.c.h.b16 %v146
    %v889 = vunpack.c.l.b16 %v147
    %v890 = vunpack.c.h.b16 %v147
    %v891 = vunpack.c.l.b16 %v148
    %v892 = vunpack.c.h.b16 %v148
    %v893 = vunpack.c.l.b16 %v149
    %v894 = vunpack.c.h.b16 %v149
    %v895 = vunpack.c.l.b16 %v150
    %v896 = vunpack.c.h.b16 %v150
    %v897 = vunpack.c.l.b16 %v151
    %v898 = vunpack.c.h.b16 %v151
    %v899 = vunpack.c.l.b16 %v152
    %v900 = vunpack.c.h.b16 %v152
    %v901 = vunpack.c.l.b16 %v153
    %v902 = vunpack.c.h.b16 %v153
    %v903 = vunpack.c.l.b16 %v154
    %v904 = vunpack.c.h.b16 %v154
    %v905 = vunpack.c.l.b16 %v155
    %v906 = vunpack.c.h.b16 %v155
    %v907 = vunpack.c.l.b16 %v156
    %v908 = vunpack.c.h.b16 %v156
    %v909 = vunpack.c.l.b16 %v157
    %v910 = vunpack.c.h.b16 %v157
    %v911 = vunpack.c.l.b16 %v158
    %v912 = vunpack.c.h.b16 %v158
    %v913 = vunpack.c.l.b16 %v159
    %v914 = vunpack.c.h.b16 %v159
    %v915 = vunpack.c.l.b16 %v160
    %v916 = vunpack.c.h.b16 %v160
    %v917 = vunpack.c.l.b16 %v161
    %v918 = vunpack.c.h.b16 %v161
    %v919 = vunpack.c.l.b16 %v162
    %v920 = vunpack.c.h.b16 %v162
    %v921 = vunpack.c.l.b16 %v163
    %v922 = vunpack.c.h.b16 %v163
    %v923 = vunpack.c.l.b16 %v164
    %v924 = vunpack.c.h.b16 %v164
    %v925 = vunpack.c.l.b16 %v165
    %v926 = vunpack.c.h.b16 %v165
    %v927 = vunpack.c.l.b16 %v166
    %v928 = vunpack.c.h.b16 %v166
    %v929 = vunpack.c.l.b16 %v167
    %v930 = vunpack.c.h.b16 %v167
    %v931 = vunpack.c.l.b16 %v168
    %v932 = vunpack.c.h.b16 %v168
    %v933 = vunpack.c.l.b16 %v169
    %v934 = vunpack.c.h.b16 %v169
    %v935 = vunpack.c.l.b16 %v170
    %v936 = vunpack.c.h.b16 %v170
    %v937 = vunpack.c.l.b16 %v171
    %v938 = vunpack.c.h.b16 %v171
    %v939 = vunpack.c.l.b16 %v172
    %v940 = vunpack.c.h.b16 %v172
    %v941 = vunpack.c.l.b16 %v173
    %v942 = vunpack.c.h.b16 %v173
    %v943 = vunpack.c.l.b16 %v174
    %v944 = vunpack.c.h.b16 %v174
    %v945 = vunpack.c.l.b16 %v175
    %v946 = vunpack.c.h.b16 %v175
    %v947 = vunpack.c.l.b16 %v176
    %v948 = vunpack.c.h.b16 %v176
    %v949 = vunpack.c.l.b16 %v177
    %v950 = vunpack.c.h.b16 %v177
    %v951 = vunpack.c.l.b16 %v178
    %v952 = vunpack.c.h.b16 %v178
    %v953 = vunpack.c.l.b16 %v179
    %v954 = vunpack.c.h.b16 %v179
    %v955 = vunpack.c.l.b16 %v180
    %v956 = vunpack.c.h.b16 %v180
    %v957 = vunpack.c.l.b16 %v181
    %v958 = vunpack.c.h.b16 %v181
    %v959 = vunpack.c.l.b16 %v182
    %v960 = vunpack.c.h.b16 %v182
    %v961 = vunpack.c.l.b16 %v183
    %v962 = vunpack.c.h.b16 %v183
    %v963 = vunpack.c.l.b16 %v184
    %v964 = vunpack.c.h.b16 %v184
    %v965 = vunpack.c.l.b16 %v185
    %v966 = vunpack.c.h.b16 %v185
    %v967 = vunpack.c.l.b16 %v186
    %v968 = vunpack.c.h.b16 %v186
    %v969 = vunpack.c.l.b16 %v187
    %v970 = vunpack.c.h.b16 %v187
    %v971 = vunpack.c.l.b16 %v188
    %v972 = vunpack.c.h.b16 %v188
    %v973 = vunpack.c.l.b16 %v189
    %v974 = vunpack.c.h.b16 %v189
    %v975 = vunpack.c.l.b16 %v190
    %v976 = vunpack.c.h.b16 %v190
    %v977 = vunpack.c.l.b16 %v191
    %v978 = vunpack.c.h.b16 %v191
    %v979 = vunpack.c.l.b16 %v192
    %v980 = vunpack.c.h.b16 %v192
    %v981 = vunpack.c.l.b16 %v193
    %v982 = vunpack.c.h.b16 %v193
    %v983 = vunpack.c.l.b16 %v194
    %v984 = vunpack.c.h.b16 %v194
    %v985 = vunpack.c.l.b16 %v195
    %v986 = vunpack.c.h.b16 %v195
    %v987 = vunpack.c.l.b16 %v196
    %v988 = vunpack.c.h.b16 %v196
    %v989 = vunpack.c.l.b16 %v197
    %v990 = vunpack.c.h.b16 %v197
    %v991 = vunpack.c.l.b16 %v198
    %v992 = vunpack.c.h.b16 %v198
    %v993 = vunpack.c.l.b16 %v199
    %v994 = vunpack.c.h.b16 %v199
    %v995 = vunpack.c.l.b16 %v200
    %v996 = vunpack.c.h.b16 %v200
    %v997 = vunpack.c.l.b16 %v201
    %v998 = vunpack.c.h.b16 %v201
    %v999 = vunpack.c.l.b16 %v202
    %v1000 = vunpack.c.h.b16 %v202
    %v1001 = vunpack.c.l.b16 %v203
    %v1002 = vunpack.c.h.b16 %v203
    %v1003 = vunpack.c.l.b16 %v204
    %v1004 = vunpack.c.h.b16 %v204
    %v1005 = vunpack.c.l.b16 %v205
    %v1006 = vunpack.c.h.b16 %v205
    %v1007 = vunpack.c.l.b16 %v206
    %v1008 = vunpack.c.h.b16 %v206
    %v1009 = vunpack.c.l.b16 %v207
    %v1010 = vunpack.c.h.b16 %v207
    %v1011 = vunpack.c.l.b16 %v208
    %v1012 = vunpack.c.h.b16 %v208
    %v1013 = vunpack.c.l.b16 %v209
    %v1014 = vunpack.c.h.b16 %v209
    %v1015 = vunpack.c.l.b16 %v210
    %v1016 = vunpack.c.h.b16 %v210
    %v1017 = vunpack.c.l.b16 %v211
    %v1018 = vunpack.c.h.b16 %v211
    %v1019 = vunpack.c.l.b16 %v212
    %v1020 = vunpack.c.h.b16 %v212
    %v1021 = vunpack.c.l.b16 %v213
    %v1022 = vunpack.c.h.b16 %v213
    %v1023 = vunpack.c.l.b16 %v214
    %v1024 = vunpack.c.h.b16 %v214
    %v1025 = vunpack.c.l.b16 %v215
    %v1026 = vunpack.c.h.b16 %v215
    %v1027 = vunpack.c.l.b16 %v216
    %v1028 = vunpack.c.h.b16 %v216
    %v1029 = vunpack.c.l.b16 %v217
    %v1030 = vunpack.c.h.b16 %v217
    %v1031 = vunpack.c.l.b16 %v218
    %v1032 = vunpack.c.h.b16 %v218
    %v1033 = vunpack.c.l.b16 %v219
    %v1034 = vunpack.c.h.b16 %v219
    %v1035 = vunpack.c.l.b16 %v220
    %v1036 = vunpack.c.h.b16 %v220
    %v1037 = vunpack.c.l.b16 %v221
    %v1038 = vunpack.c.h.b16 %v221
    %v1039 = vunpack.c.l.b16 %v222
    %v1040 = vunpack.c.h.b16 %v222
    %v1041 = vunpack.c.l.b16 %v223
    %v1042 = vunpack.c.h.b16 %v223
    %v1043 = vunpack.c.l.b16 %v224
    %v1044 = vunpack.c.h.b16 %v224
    %v1045 = vunpack.c.l.b16 %v225
    %v1046 = vunpack.c.h.b16 %v225
    %v1047 = vunpack.c.l.b16 %v226
    %v1048 = vunpack.c.h.b16 %v226
    %v1049 = vunpack.c.l.b16 %v227
    %v1050 = vunpack.c.h.b16 %v227
    %v1051 = vunpack.c.l.b16 %v228
    %v1052 = vunpack.c.h.b16 %v228
    %v1053 = vunpack.c.l.b16 %v229
    %v1054 = vunpack.c.h.b16 %v229
    %v1055 = vunpack.c.l.b16 %v230
    %v1056 = vunpack.c.h.b16 %v230
    %v1057 = vunpack.c.l.b16 %v231
    %v1058 = vunpack.c.h.b16 %v231
    %v1059 = vunpack.c.l.b16 %v232
    %v1060 = vunpack.c.h.b16 %v232
    %v1061 = vunpack.c.l.b16 %v233
    %v1062 = vunpack.c.h.b16 %v233
    %v1063 = vunpack.c.l.b16 %v234
    %v1064 = vunpack.c.h.b16 %v234
    %v1065 = vunpack.c.l.b16 %v235
    %v1066 = vunpack.c.h.b16 %v235
    %v1067 = vunpack.c.l.b16 %v236
    %v1068 = vunpack.c.h.b16 %v236
    %v1069 = vunpack.c.l.b16 %v237
    %v1070 = vunpack.c.h.b16 %v237
    %v1071 = vunpack.c.l.b16 %v238
    %v1072 = vunpack.c.h.b16 %v238
    %v1073 = vunpack.c.l.b16 %v239
    %v1074 = vunpack.c.h.b16 %v239
    %v1075 = vunpack.c.l.b16 %v240
    %v1076 = vunpack.c.h.b16 %v240
    %v1077 = vunpack.c.l.b16 %v241
    %v1078 = vunpack.c.h.b16 %v241
    %v1079 = vunpack.c.l.b16 %v242
    %v1080 = vunpack.c.h.b16 %v242
    %v1081 = vunpack.c.l.b16 %v243
    %v1082 = vunpack.c.h.b16 %v243
    %v1083 = vunpack.c.l.b16 %v244
    %v1084 = vunpack.c.h.b16 %v244
    %v1085 = vunpack.c.l.b16 %v245
    %v1086 = vunpack.c.h.b16 %v245
    %v1087 = vunpack.c.l.b16 %v246
    %v1088 = vunpack.c.h.b16 %v246
    %v1089 = vunpack.c.l.b16 %v247
    %v1090 = vunpack.c.h.b16 %v247
    %v1091 = vunpack.c.l.b16 %v248
    %v1092 = vunpack.c.h.b16 %v248
    %v1093 = vunpack.c.l.b16 %v249
    %v1094 = vunpack.c.h.b16 %v249
    %v1095 = vunpack.c.l.b16 %v250
    %v1096 = vunpack.c.h.b16 %v250
    %v1097 = vunpack.c.l.b16 %v251
    %v1098 = vunpack.c.h.b16 %v251
    %v1099 = vunpack.c.l.b16 %v252
    %v1100 = vunpack.c.h.b16 %v252
    %v1101 = vunpack.c.l.b16 %v253
    %v1102 = vunpack.c.h.b16 %v253
    %v1103 = vunpack.c.l.b16 %v254
    %v1104 = vunpack.c.h.b16 %v254
    %v1105 = vunpack.c.l.b16 %v255
    %v1106 = vunpack.c.h.b16 %v255
    %v1107 = vunpack.c.l.b16 %v256
    %v1108 = vunpack.c.h.b16 %v256
    %v1109 = vunpack.c.l.b16 %v257
    %v1110 = vunpack.c.h.b16 %v257
    %v1111 = vunpack.c.l.b16 %v258
    %v1112 = vunpack.c.h.b16 %v258
    %v1113 = vunpack.c.l.b16 %v259
    %v1114 = vunpack.c.h.b16 %v259
    %v1115 = vunpack.c.l.b16 %v260
    %v1116 = vunpack.c.h.b16 %v260
    %v1117 = vunpack.c.l.b16 %v261
    %v1118 = vunpack.c.h.b16 %v261
    %v1119 = vunpack.c.l.b16 %v262
    %v1120 = vunpack.c.h.b16 %v262
    %v1121 = vunpack.c.l.b16 %v263
    %v1122 = vunpack.c.h.b16 %v263
    %v1123 = vunpack.c.l.b16 %v264
    %v1124 = vunpack.c.h.b16 %v264
    %v1125 = vunpack.c.l.b16 %v265
    %v1126 = vunpack.c.h.b16 %v265
    %v1127 = vunpack.c.l.b16 %v266
    %v1128 = vunpack.c.h.b16 %v266
    %v1129 = vunpack.c.l.b16 %v267
    %v1130 = vunpack.c.h.b16 %v267
    %v1131 = vunpack.c.l.b16 %v268
    %v1132 = vunpack.c.h.b16 %v268
    %v1133 = vunpack.c.l.b16 %v269
    %v1134 = vunpack.c.h.b16 %v269
    %v1135 = vunpack.c.l.b16 %v270
    %v1136 = vunpack.c.h.b16 %v270
    %v1137 = vunpack.c.l.b16 %v271
    %v1138 = vunpack.c.h.b16 %v271
    %v1139 = vunpack.c.l.b16 %v272
    %v1140 = vunpack.c.h.b16 %v272
    %v1141 = vunpack.c.l.b16 %v273
    %v1142 = vunpack.c.h.b16 %v273
    %v1143 = vunpack.c.l.b16 %v274
    %v1144 = vunpack.c.h.b16 %v274
    %v1145 = vunpack.c.l.b16 %v275
    %v1146 = vunpack.c.h.b16 %v275
    %v1147 = vunpack.c.l.b16 %v276
    %v1148 = vunpack.c.h.b16 %v276
    %v1149 = vunpack.c.l.b16 %v277
    %v1150 = vunpack.c.h.b16 %v277
    %v1151 = vunpack.c.l.b16 %v278
    %v1152 = vunpack.c.h.b16 %v278
    %v1153 = vunpack.c.l.b16 %v279
    %v1154 = vunpack.c.h.b16 %v279
    %v1155 = vunpack.c.l.b16 %v280
    %v1156 = vunpack.c.h.b16 %v280
    %v1157 = vunpack.c.l.b16 %v281
    %v1158 = vunpack.c.h.b16 %v281
    %v1159 = vunpack.c.l.b16 %v282
    %v1160 = vunpack.c.h.b16 %v282
    %v1161 = vunpack.c.l.b16 %v283
    %v1162 = vunpack.c.h.b16 %v283
    %v1163 = vunpack.c.l.b16 %v284
    %v1164 = vunpack.c.h.b16 %v284
    %v1165 = vunpack.c.l.b16 %v285
    %v1166 = vunpack.c.h.b16 %v285
    %v1167 = vunpack.c.l.b16 %v286
    %v1168 = vunpack.c.h.b16 %v286
    %v1169 = vunpack.c.l.b16 %v287
    %v1170 = vunpack.c.h.b16 %v287
    %v1171 = vunpack.c.l.b16 %v288
    %v1172 = vunpack.c.h.b16 %v288
    %v1173 = vpack.c.b16 %v663, %v661
    %v1174 = vpack.c.b16 %v664, %v662
    %v1175 = vpack.c.b16 %v667, %v665
    %v1176 = vpack.c.b16 %v668, %v666
    %v1177 = vpack.c.b16 %v671, %v669
    %v1178 = vpack.c.b16 %v672, %v670
    %v1179 = vpack.c.b16 %v675, %v673
    %v1180 = vpack.c.b16 %v676, %v674
    %v1181 = vpack.c.b16 %v679, %v677
    %v1182 = vpack.c.b16 %v680, %v678
    %v1183 = vpack.c.b16 %v683, %v681
    %v1184 = vpack.c.b16 %v684, %v682
    %v1185 = vpack.c.b16 %v687, %v685
    %v1186 = vpack.c.b16 %v688, %v686
    %v1187 = vpack.c.b16 %v691, %v689
    %v1188 = vpack.c.b16 %v692, %v690
    %v1189 = vpack.c.b16 %v695, %v693
    %v1190 = vpack.c.b16 %v696, %v694
    %v1191 = vpack.c.b16 %v699, %v697
    %v1192 = vpack.c.b16 %v700, %v698
    %v1193 = vpack.c.b16 %v703, %v701
    %v1194 = vpack.c.b16 %v704, %v702
    %v1195 = vpack.c.b16 %v707, %v705
    %v1196 = vpack.c.b16 %v708, %v706
    %v1197 = vpack.c.b16 %v711, %v709
    %v1198 = vpack.c.b16 %v712, %v710
    %v1199 = vpack.c.b16 %v715, %v713
    %v1200 = vpack.c.b16 %v716, %v714
    %v1201 = vpack.c.b16 %v719, %v717
    %v1202 = vpack.c.b16 %v720, %v718
    %v1203 = vpack.c.b16 %v723, %v721
    %v1204 = vpack.c.b16 %v724, %v722
    %v1205 = vpack.c.b16 %v727, %v725
    %v1206 = vpack.c.b16 %v728, %v726
    %v1207 = vpack.c.b16 %v731, %v729
    %v1208 = vpack.c.b16 %v732, %v730
    %v1209 = vpack.c.b16 %v735, %v733
    %v1210 = vpack.c.b16 %v736, %v734
    %v1211 = vpack.c.b16 %v739, %v737
    %v1212 = vpack.c.b16 %v740, %v738
    %v1213 = vpack.c.b16 %v743, %v741
    %v1214 = vpack.c.b16 %v744, %v742
    %v1215 = vpack.c.b16 %v747, %v745
    %v1216 = vpack.c.b16 %v748, %v746
    %v1217 = vpack.c.b16 %v751, %v749
    %v1218 = vpack.c.b16 %v752, %v750
    %v1219 = vpack.c.b16 %v755, %v753
    %v1220 = vpack.c.b16 %v756, %v754
    %v1221 = vpack.c.b16 %v759, %v757
    %v1222 = vpack.c.b16 %v760, %v758
    %v1223 = vpack.c.b16 %v763, %v761
    %v1224 = vpack.c.b16 %v764, %v762
    %v1225 = vpack.c.b16 %v767, %v765
    %v1226 = vpack.c.b16 %v768, %v766
    %v1227 = vpack.c.b16 %v771, %v769
    %v1228 = vpack.c.b16 %v772, %v770
    %v1229 = vpack.c.b16 %v775, %v773
    %v1230 = vpack.c.b16 %v776, %v774
    %v1231 = vpack.c.b16 %v779, %v777
    %v1232 = vpack.c.b16 %v780, %v778
    %v1233 = vpack.c.b16 %v783, %v781
    %v1234 = vpack.c.b16 %v784, %v782
    %v1235 = vpack.c.b16 %v787, %v785
    %v1236 = vpack.c.b16 %v788, %v786
    %v1237 = vpack.c.b16 %v791, %v789
    %v1238 = vpack.c.b16 %v792, %v790
    %v1239 = vpack.c.b16 %v795, %v793
    %v1240 = vpack.c.b16 %v796, %v794
    %v1241 = vpack.c.b16 %v799, %v797
    %v1242 = vpack.c.b16 %v800, %v798
    %v1243 = vpack.c.b16 %v803, %v801
    %v1244 = vpack.c.b16 %v804, %v802
    %v1245 = vpack.c.b16 %v807, %v805
    %v1246 = vpack.c.b16 %v808, %v806
    %v1247 = vpack.c.b16 %v811, %v809
    %v1248 = vpack.c.b16 %v812, %v810
    %v1249 = vpack.c.b16 %v815, %v813
    %v1250 = vpack.c.b16 %v816, %v814
    %v1251 = vpack.c.b16 %v819, %v817
    %v1252 = vpack.c.b16 %v820, %v818
    %v1253 = vpack.c.b16 %v823, %v821
    %v1254 = vpack.c.b16 %v824, %v822
    %v1255 = vpack.c.b16 %v827, %v825
    %v1256 = vpack.c.b16 %v828, %v826
    %v1257 = vpack.c.b16 %v831, %v829
    %v1258 = vpack.c.b16 %v832, %v830
    %v1259 = vpack.c.b16 %v835, %v833
    %v1260 = vpack.c.b16 %v836, %v834
    %v1261 = vpack.c.b16 %v839, %v837
    %v1262 = vpack.c.b16 %v840, %v838
    %v1263 = vpack.c.b16 %v843, %v841
    %v1264 = vpack.c.b16 %v844, %v842
    %v1265 = vpack.c.b16 %v847, %v845
    %v1266 = vpack.c.b16 %v848, %v846
    %v1267 = vpack.c.b16 %v851, %v849
    %v1268 = vpack.c.b16 %v852, %v850
    %v1269 = vpack.c.b16 %v855, %v853
    %v1270 = vpack.c.b16 %v856, %v854
    %v1271 = vpack.c.b16 %v859, %v857
    %v1272 = vpack.c.b16 %v860, %v858
    %v1273 = vpack.c.b16 %v863, %v861
    %v1274 = vpack.c.b16 %v864, %v862
    %v1275 = vpack.c.b16 %v867, %v865
    %v1276 = vpack.c.b16 %v868, %v866
    %v1277 = vpack.c.b16 %v871, %v869
    %v1278 = vpack.c.b16 %v872, %v870
    %v1279 = vpack.c.b16 %v875, %v873
    %v1280 = vpack.c.b16 %v876, %v874
    %v1281 = vpack.c.b16 %v879, %v877
    %v1282 = vpack.c.b16 %v880, %v878
    %v1283 = vpack.c.b16 %v883, %v881
    %v1284 = vpack.c.b16 %v884, %v882
    %v1285 = vpack.c.b16 %v887, %v885
    %v1286 = vpack.c.b16 %v888, %v886
    %v1287 = vpack.c.b16 %v891, %v889
    %v1288 = vpack.c.b16 %v892, %v890
    %v1289 = vpack.c.b16 %v895, %v893
    %v1290 = vpack.c.b16 %v896, %v894
    %v1291 = vpack.c.b16 %v899, %v897
    %v1292 = vpack.c.b16 %v900, %v898
    %v1293 = vpack.c.b16 %v903, %v901
    %v1294 = vpack.c.b16 %v904, %v902
    %v1295 = vpack.c.b16 %v907, %v905
    %v1296 = vpack.c.b16 %v908, %v906
    %v1297 = vpack.c.b16 %v911, %v909
    %v1298 = vpack.c.b16 %v912, %v910
    %v1299 = vpack.c.b16 %v915, %v913
    %v1300 = vpack.c.b16 %v916, %v914
    %v1301 = vpack.c.b16 %v919, %v917
    %v1302 = vpack.c.b16 %v920, %v918
    %v1303 = vpack.c.b16 %v923, %v921
    %v1304 = vpack.c.b16 %v924, %v922
    %v1305 = vpack.c.b16 %v927, %v925
    %v1306 = vpack.c.b16 %v928, %v926
    %v1307 = vpack.c.b16 %v931, %v929
    %v1308 = vpack.c.b16 %v932, %v930
    %v1309 = vpack.c.b16 %v935, %v933
    %v1310 = vpack.c.b16 %v936, %v934
    %v1311 = vpack.c.b16 %v939, %v937
    %v1312 = vpack.c.b16 %v940, %v938
    %v1313 = vpack.c.b16 %v943, %v941
    %v1314 = vpack.c.b16 %v944, %v942
    %v1315 = vpack.c.b16 %v947, %v945
    %v1316 = vpack.c.b16 %v948, %v946
    %v1317 = vpack.c.b16 %v951, %v949
    %v1318 = vpack.c.b16 %v952, %v950
    %v1319 = vpack.c.b16 %v955, %v953
    %v1320 = vpack.c.b16 %v956, %v954
    %v1321 = vpack.c.b16 %v959, %v957
    %v1322 = vpack.c.b16 %v960, %v958
    %v1323 = vpack.c.b16 %v963, %v961
    %v1324 = vpack.c.b16 %v964, %v962
    %v1325 = vpack.c.b16 %v967, %v965
    %v1326 = vpack.c.b16 %v968, %v966
    %v1327 = vpack.c.b16 %v971, %v969
    %v1328 = vpack.c.b16 %v972, %v970
    %v1329 = vpack.c.b16 %v975, %v973
    %v1330 = vpack.c.b16 %v976, %v974
    %v1331 = vpack.c.b16 %v979, %v977
    %v1332 = vpack.c.b16 %v980, %v978
    %v1333 = vpack.c.b16 %v983, %v981
    %v1334 = vpack.c.b16 %v984, %v982
    %v1335 = vpack.c.b16 %v987, %v985
    %v1336 = vpack.c.b16 %v988, %v986
    %v1337 = vpack.c.b16 %v991, %v989
    %v1338 = vpack.c.b16 %v992, %v990
    %v1339 = vpack.c.b16 %v995, %v993
    %v1340 = vpack.c.b16 %v996, %v994
    %v1341 = vpack.c.b16 %v999, %v997
    %v1342 = vpack.c.b16 %v1000, %v998
    %v1343 = vpack.c.b16 %v1003, %v1001
    %v1344 = vpack.c.b16 %v1004, %v1002
    %v1345 = vpack.c.b16 %v1007, %v1005
    %v1346 = vpack.c.b16 %v1008, %v1006
    %v1347 = vpack.c.b16 %v1011, %v1009
    %v1348 = vpack.c.b16 %v1012, %v1010
    %v1349 = vpack.c.b16 %v1015, %v1013
    %v1350 = vpack.c.b16 %v1016, %v1014
    %v1351 = vpack.c.b16 %v1019, %v1017
    %v1352 = vpack.c.b16 %v1020, %v1018
    %v1353 = vpack.c.b16 %v1023, %v1021
    %v1354 = vpack.c.b16 %v1024, %v1022
    %v1355 = vpack.c.b16 %v1027, %v1025
    %v1356 = vpack.c.b16 %v1028, %v1026
    %v1357 = vpack.c.b16 %v1031, %v1029
    %v1358 = vpack.c.b16 %v1032, %v1030
    %v1359 = vpack.c.b16 %v1035, %v1033
    %v1360 = vpack.c.b16 %v1036, %v1034
    %v1361 = vpack.c.b16 %v1039, %v1037
    %v1362 = vpack.c.b16 %v1040, %v1038
    %v1363 = vpack.c.b16 %v1043, %v1041
    %v1364 = vpack.c.b16 %v1044, %v1042
    %v1365 = vpack.c.b16 %v1047, %v1045
    %v1366 = vpack.c.b16 %v1048, %v1046
    %v1367 = vpack.c.b16 %v1051, %v1049
    %v1368 = vpack.c.b16 %v1052, %v1050
    %v1369 = vpack.c.b16 %v1055, %v1053
    %v1370 = vpack.c.b16 %v1056, %v1054
    %v1371 = vpack.c.b16 %v1059, %v1057
    %v1372 = vpack.c.b16 %v1060, %v1058
    %v1373 = vpack.c.b16 %v1063, %v1061
    %v1374 = vpack.c.b16 %v1064, %v1062
    %v1375 = vpack.c.b16 %v1067, %v1065
    %v1376 = vpack.c.b16 %v1068, %v1066
    %v1377 = vpack.c.b16 %v1071, %v1069
    %v1378 = vpack.c.b16 %v1072, %v1070
    %v1379 = vpack.c.b16 %v1075, %v1073
    %v1380 = vpack.c.b16 %v1076, %v1074
    %v1381 = vpack.c.b16 %v1079, %v1077
    %v1382 = vpack.c.b16 %v1080, %v1078
    %v1383 = vpack.c.b16 %v1083, %v1081
    %v1384 = vpack.c.b16 %v1084, %v1082
    %v1385 = vpack.c.b16 %v1087, %v1085
    %v1386 = vpack.c.b16 %v1088, %v1086
    %v1387 = vpack.c.b16 %v1091, %v1089
    %v1388 = vpack.c.b16 %v1092, %v1090
    %v1389 = vpack.c.b16 %v1095, %v1093
    %v1390 = vpack.c.b16 %v1096, %v1094
    %v1391 = vpack.c.b16 %v1099, %v1097
    %v1392 = vpack.c.b16 %v1100, %v1098
    %v1393 = vpack.c.b16 %v1103, %v1101
    %v1394 = vpack.c.b16 %v1104, %v1102
    %v1395 = vpack.c.b16 %v1107, %v1105
    %v1396 = vpack.c.b16 %v1108, %v1106
    %v1397 = vpack.c.b16 %v1111, %v1109
    %v1398 = vpack.c.b16 %v1112, %v1110
    %v1399 = vpack.c.b16 %v1115, %v1113
    %v1400 = vpack.c.b16 %v1116, %v1114
    %v1401 = vpack.c.b16 %v1119, %v1117
    %v1402 = vpack.c.b16 %v1120, %v1118
    %v1403 = vpack.c.b16 %v1123, %v1121
    %v1404 = vpack.c.b16 %v1124, %v1122
    %v1405 = vpack.c.b16 %v1127, %v1125
    %v1406 = vpack.c.b16 %v1128, %v1126
    %v1407 = vpack.c.b16 %v1131, %v1129
    %v1408 = vpack.c.b16 %v1132, %v1130
    %v1409 = vpack.c.b16 %v1135, %v1133
    %v1410 = vpack.c.b16 %v1136, %v1134
    %v1411 = vpack.c.b16 %v1139, %v1137
    %v1412 = vpack.c.b16 %v1140, %v1138
    %v1413 = vpack.c.b16 %v1143, %v1141
    %v1414 = vpack.c.b16 %v1144, %v1142
    %v1415 = vpack.c.b16 %v1147, %v1145
    %v1416 = vpack.c.b16 %v1148, %v1146
    %v1417 = vpack.c.b16 %v1151, %v1149
    %v1418 = vpack.c.b16 %v1152, %v1150
    %v1419 = vpack.c.b16 %v1155, %v1153
    %v1420 = vpack.c.b16 %v1156, %v1154
    %v1421 = vpack.c.b16 %v1159, %v1157
    %v1422 = vpack.c.b16 %v1160, %v1158
    %v1423 = vpack.c.b16 %v1163, %v1161
    %v1424 = vpack.c.b16 %v1164, %v1162
    %v1425 = vpack.c.b16 %v1167, %v1165
    %v1426 = vpack.c.b16 %v1168, %v1166
    %v1427 = vpack.c.b16 %v1171, %v1169
    %v1428 = vpack.c.b16 %v1172, %v1170
    %1685 = vmatprep.subr.bf16.mxu0 %v1174
    %1686 = vmatpush1.bf16.msra.mxu0 %v1173
    %1687 = vmatprep.subr.bf16.mxu0 %v1176
    %1688 = vmatpush1.bf16.msra.mxu0 %v1175
    %1689 = vmatprep.subr.bf16.mxu0 %v1178
    %1690 = vmatpush1.bf16.msra.mxu0 %v1177
    %1691 = vmatprep.subr.bf16.mxu0 %v1180
    %1692 = vmatpush1.bf16.msra.mxu0 %v1179
    %1693 = vmatprep.subr.bf16.mxu0 %v1182
    %1694 = vmatpush1.bf16.msra.mxu0 %v1181
    %1695 = vmatprep.subr.bf16.mxu0 %v1184
    %1696 = vmatpush1.bf16.msra.mxu0 %v1183
    %1697 = vmatprep.subr.bf16.mxu0 %v1186
    %1698 = vmatpush1.bf16.msra.mxu0 %v1185
    %1699 = vmatprep.subr.bf16.mxu0 %v1188
    %1700 = vmatpush1.bf16.msra.mxu0 %v1187
    %1701 = vmatprep.subr.bf16.mxu0 %v1190
    %1702 = vmatpush1.bf16.msra.mxu0 %v1189
    %1703 = vmatprep.subr.bf16.mxu0 %v1192
    %1704 = vmatpush1.bf16.msra.mxu0 %v1191
    %1705 = vmatprep.subr.bf16.mxu0 %v1194
    %1706 = vmatpush1.bf16.msra.mxu0 %v1193
    %1707 = vmatprep.subr.bf16.mxu0 %v1196
    %1708 = vmatpush1.bf16.msra.mxu0 %v1195
    %1709 = vmatprep.subr.bf16.mxu0 %v1198
    %1710 = vmatpush1.bf16.msra.mxu0 %v1197
    %1711 = vmatprep.subr.bf16.mxu0 %v1200
    %1712 = vmatpush1.bf16.msra.mxu0 %v1199
    %1713 = vmatprep.subr.bf16.mxu0 %v1202
    %1714 = vmatpush1.bf16.msra.mxu0 %v1201
    %1715 = vmatprep.subr.bf16.mxu0 %v1204
    %1716 = vmatpush1.bf16.msra.mxu0 %v1203
    %1717 = vmatprep.mubr.bf16.mxu0 %v328
    %1718 = vmatmul.mubr.bf16.gmra.mrb[0].mxu0 %v314
    %v1719 = vpop.f32.mrb[0].mxu0
    %v1720 = vadd.f32 0.0, %v1719
    %v1721 = vpop.f32.mrb[0].mxu0
    %v1722 = vadd.f32 0.0, %v1721
    %v1723 = vpop.f32.mrb[0].mxu0
    %v1724 = vpop.f32.mrb[0].mxu0
    %1725 = vdwg.mxu0
    %1726 = vmatprep.subr.bf16.mxu0 %v1206
    %1727 = vmatpush1.bf16.msra.mxu0 %v1205
    %1728 = vmatprep.subr.bf16.mxu0 %v1208
    %1729 = vmatpush1.bf16.msra.mxu0 %v1207
    %1730 = vmatprep.subr.bf16.mxu0 %v1210
    %1731 = vmatpush1.bf16.msra.mxu0 %v1209
    %1732 = vmatprep.subr.bf16.mxu0 %v1212
    %1733 = vmatpush1.bf16.msra.mxu0 %v1211
    %1734 = vmatprep.subr.bf16.mxu0 %v1214
    %1735 = vmatpush1.bf16.msra.mxu0 %v1213
    %1736 = vmatprep.subr.bf16.mxu0 %v1216
    %1737 = vmatpush1.bf16.msra.mxu0 %v1215
    %1738 = vmatprep.subr.bf16.mxu0 %v1218
    %1739 = vmatpush1.bf16.msra.mxu0 %v1217
    %1740 = vmatprep.subr.bf16.mxu0 %v1220
    %1741 = vmatpush1.bf16.msra.mxu0 %v1219
    %1742 = vmatprep.subr.bf16.mxu0 %v1222
    %1743 = vmatpush1.bf16.msra.mxu0 %v1221
    %1744 = vmatprep.subr.bf16.mxu0 %v1224
    %1745 = vmatpush1.bf16.msra.mxu0 %v1223
    %1746 = vmatprep.subr.bf16.mxu0 %v1226
    %1747 = vmatpush1.bf16.msra.mxu0 %v1225
    %1748 = vmatprep.subr.bf16.mxu0 %v1228
    %1749 = vmatpush1.bf16.msra.mxu0 %v1227
    %1750 = vmatprep.subr.bf16.mxu0 %v1230
    %1751 = vmatpush1.bf16.msra.mxu0 %v1229
    %1752 = vmatprep.subr.bf16.mxu0 %v1232
    %1753 = vmatpush1.bf16.msra.mxu0 %v1231
    %1754 = vmatprep.subr.bf16.mxu0 %v1234
    %1755 = vmatpush1.bf16.msra.mxu0 %v1233
    %1756 = vmatprep.subr.bf16.mxu0 %v1236
    %1757 = vmatpush1.bf16.msra.mxu0 %v1235
    %1758 = vmatprep.mubr.bf16.mxu0 %v338
    %1759 = vmatmul.mubr.bf16.gmra.mrb[0].mxu0 %v336
    %v1760 = vpop.f32.mrb[0].mxu0
    %v1761 = vadd.f32 %v1720, %v1760
    %v1762 = vpop.f32.mrb[0].mxu0
    %v1763 = vadd.f32 %v1722, %v1762
    %v1764 = vpop.f32.mrb[0].mxu0
    %v1765 = vpop.f32.mrb[0].mxu0
    %1766 = vdwg.mxu0
    %1767 = vmatprep.subr.bf16.mxu0 %v1238
    %1768 = vmatpush1.bf16.msra.mxu0 %v1237
    %1769 = vmatprep.subr.bf16.mxu0 %v1240
    %1770 = vmatpush1.bf16.msra.mxu0 %v1239
    %1771 = vmatprep.subr.bf16.mxu0 %v1242
    %1772 = vmatpush1.bf16.msra.mxu0 %v1241
    %1773 = vmatprep.subr.bf16.mxu0 %v1244
    %1774 = vmatpush1.bf16.msra.mxu0 %v1243
    %1775 = vmatprep.subr.bf16.mxu0 %v1246
    %1776 = vmatpush1.bf16.msra.mxu0 %v1245
    %1777 = vmatprep.subr.bf16.mxu0 %v1248
    %1778 = vmatpush1.bf16.msra.mxu0 %v1247
    %1779 = vmatprep.subr.bf16.mxu0 %v1250
    %1780 = vmatpush1.bf16.msra.mxu0 %v1249
    %1781 = vmatprep.subr.bf16.mxu0 %v1252
    %1782 = vmatpush1.bf16.msra.mxu0 %v1251
    %1783 = vmatprep.subr.bf16.mxu0 %v1254
    %1784 = vmatpush1.bf16.msra.mxu0 %v1253
    %1785 = vmatprep.subr.bf16.mxu0 %v1256
    %1786 = vmatpush1.bf16.msra.mxu0 %v1255
    %1787 = vmatprep.subr.bf16.mxu0 %v1258
    %1788 = vmatpush1.bf16.msra.mxu0 %v1257
    %1789 = vmatprep.subr.bf16.mxu0 %v1260
    %1790 = vmatpush1.bf16.msra.mxu0 %v1259
    %1791 = vmatprep.subr.bf16.mxu0 %v1262
    %1792 = vmatpush1.bf16.msra.mxu0 %v1261
    %1793 = vmatprep.subr.bf16.mxu0 %v1264
    %1794 = vmatpush1.bf16.msra.mxu0 %v1263
    %1795 = vmatprep.subr.bf16.mxu0 %v1266
    %1796 = vmatpush1.bf16.msra.mxu0 %v1265
    %1797 = vmatprep.subr.bf16.mxu0 %v1268
    %1798 = vmatpush1.bf16.msra.mxu0 %v1267
    %1799 = vmatprep.mubr.bf16.mxu0 %v335
    %1800 = vmatmul.mubr.bf16.gmra.mrb[0].mxu0 %v321
    %v1801 = vpop.f32.mrb[0].mxu0
    %v1802 = vadd.f32 %v1761, %v1801
    %v1803 = vpop.f32.mrb[0].mxu0
    %v1804 = vadd.f32 %v1763, %v1803
    %v1805 = vpop.f32.mrb[0].mxu0
    %v1806 = vpop.f32.mrb[0].mxu0
    %1807 = vdwg.mxu0
    %1808 = vmatprep.subr.bf16.mxu0 %v1270
    %1809 = vmatpush1.bf16.msra.mxu0 %v1269
    %1810 = vmatprep.subr.bf16.mxu0 %v1272
    %1811 = vmatpush1.bf16.msra.mxu0 %v1271
    %1812 = vmatprep.subr.bf16.mxu0 %v1274
    %1813 = vmatpush1.bf16.msra.mxu0 %v1273
    %1814 = vmatprep.subr.bf16.mxu0 %v1276
    %1815 = vmatpush1.bf16.msra.mxu0 %v1275
    %1816 = vmatprep.subr.bf16.mxu0 %v1278
    %1817 = vmatpush1.bf16.msra.mxu0 %v1277
    %1818 = vmatprep.subr.bf16.mxu0 %v1280
    %1819 = vmatpush1.bf16.msra.mxu0 %v1279
    %1820 = vmatprep.subr.bf16.mxu0 %v1282
    %1821 = vmatpush1.bf16.msra.mxu0 %v1281
    %1822 = vmatprep.subr.bf16.mxu0 %v1284
    %1823 = vmatpush1.bf16.msra.mxu0 %v1283
    %1824 = vmatprep.subr.bf16.mxu0 %v1286
    %1825 = vmatpush1.bf16.msra.mxu0 %v1285
    %1826 = vmatprep.subr.bf16.mxu0 %v1288
    %1827 = vmatpush1.bf16.msra.mxu0 %v1287
    %1828 = vmatprep.subr.bf16.mxu0 %v1290
    %1829 = vmatpush1.bf16.msra.mxu0 %v1289
    %1830 = vmatprep.subr.bf16.mxu0 %v1292
    %1831 = vmatpush1.bf16.msra.mxu0 %v1291
    %1832 = vmatprep.subr.bf16.mxu0 %v1294
    %1833 = vmatpush1.bf16.msra.mxu0 %v1293
    %1834 = vmatprep.subr.bf16.mxu0 %v1296
    %1835 = vmatpush1.bf16.msra.mxu0 %v1295
    %1836 = vmatprep.subr.bf16.mxu0 %v1298
    %1837 = vmatpush1.bf16.msra.mxu0 %v1297
    %1838 = vmatprep.subr.bf16.mxu0 %v1300
    %1839 = vmatpush1.bf16.msra.mxu0 %v1299
    %1840 = vmatprep.mubr.bf16.mxu0 %v339
    %1841 = vmatmul.mubr.bf16.gmra.mrb[0].mxu0 %v337
    %v1842 = vpop.f32.mrb[0].mxu0
    %v1843 = vadd.f32 %v1802, %v1842
    %v1844 = vpop.f32.mrb[0].mxu0
    %v1845 = vadd.f32 %v1804, %v1844
    %v1846 = vpop.f32.mrb[0].mxu0
    %v1847 = vpop.f32.mrb[0].mxu0
    %1848 = vdwg.mxu0
    %1849 = vmatprep.subr.bf16.mxu0 %v1302
    %1850 = vmatpush1.bf16.msra.mxu0 %v1301
    %1851 = vmatprep.subr.bf16.mxu0 %v1304
    %1852 = vmatpush1.bf16.msra.mxu0 %v1303
    %1853 = vmatprep.subr.bf16.mxu0 %v1306
    %1854 = vmatpush1.bf16.msra.mxu0 %v1305
    %1855 = vmatprep.subr.bf16.mxu0 %v1308
    %1856 = vmatpush1.bf16.msra.mxu0 %v1307
    %1857 = vmatprep.subr.bf16.mxu0 %v1310
    %1858 = vmatpush1.bf16.msra.mxu0 %v1309
    %1859 = vmatprep.subr.bf16.mxu0 %v1312
    %1860 = vmatpush1.bf16.msra.mxu0 %v1311
    %1861 = vmatprep.subr.bf16.mxu0 %v1314
    %1862 = vmatpush1.bf16.msra.mxu0 %v1313
    %1863 = vmatprep.subr.bf16.mxu0 %v1316
    %1864 = vmatpush1.bf16.msra.mxu0 %v1315
    %1865 = vmatprep.subr.bf16.mxu0 %v1318
    %1866 = vmatpush1.bf16.msra.mxu0 %v1317
    %1867 = vmatprep.subr.bf16.mxu0 %v1320
    %1868 = vmatpush1.bf16.msra.mxu0 %v1319
    %1869 = vmatprep.subr.bf16.mxu0 %v1322
    %1870 = vmatpush1.bf16.msra.mxu0 %v1321
    %1871 = vmatprep.subr.bf16.mxu0 %v1324
    %1872 = vmatpush1.bf16.msra.mxu0 %v1323
    %1873 = vmatprep.subr.bf16.mxu0 %v1326
    %1874 = vmatpush1.bf16.msra.mxu0 %v1325
    %1875 = vmatprep.subr.bf16.mxu0 %v1328
    %1876 = vmatpush1.bf16.msra.mxu0 %v1327
    %1877 = vmatprep.subr.bf16.mxu0 %v1330
    %1878 = vmatpush1.bf16.msra.mxu0 %v1329
    %1879 = vmatprep.subr.bf16.mxu0 %v1332
    %1880 = vmatpush1.bf16.msra.mxu0 %v1331
    %1881 = vmatprep.mubr.bf16.mxu0 %v377
    %1882 = vmatmul.mubr.bf16.gmra.mrb[0].mxu0 %v363
    %v1883 = vpop.f32.mrb[0].mxu0
    %v1884 = vadd.f32 %v1843, %v1883
    %v1885 = vpop.f32.mrb[0].mxu0
    %v1886 = vadd.f32 %v1845, %v1885
    %v1887 = vpop.f32.mrb[0].mxu0
    %v1888 = vpop.f32.mrb[0].mxu0
    %1889 = vdwg.mxu0
    %1890 = vmatprep.subr.bf16.mxu0 %v1334
    %1891 = vmatpush1.bf16.msra.mxu0 %v1333
    %1892 = vmatprep.subr.bf16.mxu0 %v1336
    %1893 = vmatpush1.bf16.msra.mxu0 %v1335
    %1894 = vmatprep.subr.bf16.mxu0 %v1338
    %1895 = vmatpush1.bf16.msra.mxu0 %v1337
    %1896 = vmatprep.subr.bf16.mxu0 %v1340
    %1897 = vmatpush1.bf16.msra.mxu0 %v1339
    %1898 = vmatprep.subr.bf16.mxu0 %v1342
    %1899 = vmatpush1.bf16.msra.mxu0 %v1341
    %1900 = vmatprep.subr.bf16.mxu0 %v1344
    %1901 = vmatpush1.bf16.msra.mxu0 %v1343
    %1902 = vmatprep.subr.bf16.mxu0 %v1346
    %1903 = vmatpush1.bf16.msra.mxu0 %v1345
    %1904 = vmatprep.subr.bf16.mxu0 %v1348
    %1905 = vmatpush1.bf16.msra.mxu0 %v1347
    %1906 = vmatprep.subr.bf16.mxu0 %v1350
    %1907 = vmatpush1.bf16.msra.mxu0 %v1349
    %1908 = vmatprep.subr.bf16.mxu0 %v1352
    %1909 = vmatpush1.bf16.msra.mxu0 %v1351
    %1910 = vmatprep.subr.bf16.mxu0 %v1354
    %1911 = vmatpush1.bf16.msra.mxu0 %v1353
    %1912 = vmatprep.subr.bf16.mxu0 %v1356
    %1913 = vmatpush1.bf16.msra.mxu0 %v1355
    %1914 = vmatprep.subr.bf16.mxu0 %v1358
    %1915 = vmatpush1.bf16.msra.mxu0 %v1357
    %1916 = vmatprep.subr.bf16.mxu0 %v1360
    %1917 = vmatpush1.bf16.msra.mxu0 %v1359
    %1918 = vmatprep.subr.bf16.mxu0 %v1362
    %1919 = vmatpush1.bf16.msra.mxu0 %v1361
    %1920 = vmatprep.subr.bf16.mxu0 %v1364
    %1921 = vmatpush1.bf16.msra.mxu0 %v1363
    %1922 = vmatprep.mubr.bf16.mxu0 %v387
    %1923 = vmatmul.mubr.bf16.gmra.mrb[0].mxu0 %v385
    %v1924 = vpop.f32.mrb[0].mxu0
    %v1925 = vadd.f32 %v1884, %v1924
    %v1926 = vpop.f32.mrb[0].mxu0
    %v1927 = vadd.f32 %v1886, %v1926
    %v1928 = vpop.f32.mrb[0].mxu0
    %v1929 = vpop.f32.mrb[0].mxu0
    %1930 = vdwg.mxu0
    %1931 = vmatprep.subr.bf16.mxu0 %v1366
    %1932 = vmatpush1.bf16.msra.mxu0 %v1365
    %1933 = vmatprep.subr.bf16.mxu0 %v1368
    %1934 = vmatpush1.bf16.msra.mxu0 %v1367
    %1935 = vmatprep.subr.bf16.mxu0 %v1370
    %1936 = vmatpush1.bf16.msra.mxu0 %v1369
    %1937 = vmatprep.subr.bf16.mxu0 %v1372
    %1938 = vmatpush1.bf16.msra.mxu0 %v1371
    %1939 = vmatprep.subr.bf16.mxu0 %v1374
    %1940 = vmatpush1.bf16.msra.mxu0 %v1373
    %1941 = vmatprep.subr.bf16.mxu0 %v1376
    %1942 = vmatpush1.bf16.msra.mxu0 %v1375
    %1943 = vmatprep.subr.bf16.mxu0 %v1378
    %1944 = vmatpush1.bf16.msra.mxu0 %v1377
    %1945 = vmatprep.subr.bf16.mxu0 %v1380
    %1946 = vmatpush1.bf16.msra.mxu0 %v1379
    %1947 = vmatprep.subr.bf16.mxu0 %v1382
    %1948 = vmatpush1.bf16.msra.mxu0 %v1381
    %1949 = vmatprep.subr.bf16.mxu0 %v1384
    %1950 = vmatpush1.bf16.msra.mxu0 %v1383
    %1951 = vmatprep.subr.bf16.mxu0 %v1386
    %1952 = vmatpush1.bf16.msra.mxu0 %v1385
    %1953 = vmatprep.subr.bf16.mxu0 %v1388
    %1954 = vmatpush1.bf16.msra.mxu0 %v1387
    %1955 = vmatprep.subr.bf16.mxu0 %v1390
    %1956 = vmatpush1.bf16.msra.mxu0 %v1389
    %1957 = vmatprep.subr.bf16.mxu0 %v1392
    %1958 = vmatpush1.bf16.msra.mxu0 %v1391
    %1959 = vmatprep.subr.bf16.mxu0 %v1394
    %1960 = vmatpush1.bf16.msra.mxu0 %v1393
    %1961 = vmatprep.subr.bf16.mxu0 %v1396
    %1962 = vmatpush1.bf16.msra.mxu0 %v1395
    %1963 = vmatprep.mubr.bf16.mxu0 %v384
    %1964 = vmatmul.mubr.bf16.gmra.mrb[0].mxu0 %v370
    %v1965 = vpop.f32.mrb[0].mxu0
    %v1966 = vadd.f32 %v1925, %v1965
    %v1967 = vpop.f32.mrb[0].mxu0
    %v1968 = vadd.f32 %v1927, %v1967
    %v1969 = vpop.f32.mrb[0].mxu0
    %v1970 = vpop.f32.mrb[0].mxu0
    %1971 = vdwg.mxu0
    %1972 = vmatprep.subr.bf16.mxu0 %v1398
    %1973 = vmatpush1.bf16.msra.mxu0 %v1397
    %1974 = vmatprep.subr.bf16.mxu0 %v1400
    %1975 = vmatpush1.bf16.msra.mxu0 %v1399
    %1976 = vmatprep.subr.bf16.mxu0 %v1402
    %1977 = vmatpush1.bf16.msra.mxu0 %v1401
    %1978 = vmatprep.subr.bf16.mxu0 %v1404
    %1979 = vmatpush1.bf16.msra.mxu0 %v1403
    %1980 = vmatprep.subr.bf16.mxu0 %v1406
    %1981 = vmatpush1.bf16.msra.mxu0 %v1405
    %1982 = vmatprep.subr.bf16.mxu0 %v1408
    %1983 = vmatpush1.bf16.msra.mxu0 %v1407
    %1984 = vmatprep.subr.bf16.mxu0 %v1410
    %1985 = vmatpush1.bf16.msra.mxu0 %v1409
    %1986 = vmatprep.subr.bf16.mxu0 %v1412
    %1987 = vmatpush1.bf16.msra.mxu0 %v1411
    %1988 = vmatprep.subr.bf16.mxu0 %v1414
    %1989 = vmatpush1.bf16.msra.mxu0 %v1413
    %1990 = vmatprep.subr.bf16.mxu0 %v1416
    %1991 = vmatpush1.bf16.msra.mxu0 %v1415
    %1992 = vmatprep.subr.bf16.mxu0 %v1418
    %1993 = vmatpush1.bf16.msra.mxu0 %v1417
    %1994 = vmatprep.subr.bf16.mxu0 %v1420
    %1995 = vmatpush1.bf16.msra.mxu0 %v1419
    %1996 = vmatprep.subr.bf16.mxu0 %v1422
    %1997 = vmatpush1.bf16.msra.mxu0 %v1421
    %1998 = vmatprep.subr.bf16.mxu0 %v1424
    %1999 = vmatpush1.bf16.msra.mxu0 %v1423
    %2000 = vmatprep.subr.bf16.mxu0 %v1426
    %2001 = vmatpush1.bf16.msra.mxu0 %v1425
    %2002 = vmatprep.subr.bf16.mxu0 %v1428
    %2003 = vmatpush1.bf16.msra.mxu0 %v1427
    %2004 = vmatprep.mubr.bf16.mxu0 %v388
    %2005 = vmatmul.mubr.bf16.gmra.mrb[0].mxu0 %v386
    %v2006 = vpop.f32.mrb[0].mxu0
    %v2007 = vadd.f32 %v1966, %v2006
    %v2008 = vpop.f32.mrb[0].mxu0
    %v2009 = vadd.f32 %v1968, %v2008
    %v2010 = vpop.f32.mrb[0].mxu0
    %v2011 = vpop.f32.mrb[0].mxu0
    %2012 = vdwg.mxu0
    %vm2013 = vcmask 1041408
    %v2014 = vsel %vm2013, %v2007, 0.0
    %v2015 = vrot.slane %v2014, 4
    %v2016 = vadd.f32 %v2014, %v2015
    %v2017 = vrot.slane %v2016, 2
    %v2018 = vadd.f32 %v2016, %v2017
    %v2019 = vrot.slane %v2018, 1
    %v2020 = vadd.f32 %v2018, %v2019
    %v2021 = vsel %vm2013, %v2009, 0.0
    %v2022 = vrot.slane %v2021, 4
    %v2023 = vadd.f32 %v2021, %v2022
    %v2024 = vrot.slane %v2023, 2
    %v2025 = vadd.f32 %v2023, %v2024
    %v2026 = vrot.slane %v2025, 1
    %v2027 = vadd.f32 %v2025, %v2026
    %v2028 = vld [vmem:[%s4] sm:$0xff]
    %v2029 = vld [vmem:[%s4 + $0x8] sm:$0xff]
    %v2030 = vld [vmem:[%s4 + $0x10] sm:$0xff]
    %v2031 = vld [vmem:[%s4 + $0x18] sm:$0xff]
    %v2032 = vld [vmem:[%s4 + $0x20] sm:$0xff]
    %v2033 = vld [vmem:[%s4 + $0x28] sm:$0xff]
    %v2034 = vld [vmem:[%s4 + $0x30] sm:$0xff]
    %v2035 = vld [vmem:[%s4 + $0x38] sm:$0xff]
    %v2036 = vld [vmem:[%s4 + $0x40] sm:$0xff]
    %v2037 = vld [vmem:[%s4 + $0x48] sm:$0xff]
    %v2038 = vld [vmem:[%s4 + $0x50] sm:$0xff]
    %v2039 = vld [vmem:[%s4 + $0x58] sm:$0xff]
    %v2040 = vld [vmem:[%s4 + $0x60] sm:$0xff]
    %v2041 = vld [vmem:[%s4 + $0x68] sm:$0xff]
    %v2042 = vld [vmem:[%s4 + $0x70] sm:$0xff]
    %v2043 = vld [vmem:[%s4 + $0x78] sm:$0xff]
    %v2044 = vld [vmem:[%s4 + $0x80] sm:$0xff]
    %v2045 = vld [vmem:[%s4 + $0x88] sm:$0xff]
    %v2046 = vld [vmem:[%s4 + $0x90] sm:$0xff]
    %v2047 = vld [vmem:[%s4 + $0x98] sm:$0xff]
    %v2048 = vld [vmem:[%s4 + $0xa0] sm:$0xff]
    %v2049 = vld [vmem:[%s4 + $0xa8] sm:$0xff]
    %v2050 = vld [vmem:[%s4 + $0xb0] sm:$0xff]
    %v2051 = vld [vmem:[%s4 + $0xb8] sm:$0xff]
    %v2052 = vld [vmem:[%s4 + $0xc0] sm:$0xff]
    %v2053 = vld [vmem:[%s4 + $0xc8] sm:$0xff]
    %v2054 = vld [vmem:[%s4 + $0xd0] sm:$0xff]
    %v2055 = vld [vmem:[%s4 + $0xd8] sm:$0xff]
    %v2056 = vld [vmem:[%s4 + $0xe0] sm:$0xff]
    %v2057 = vld [vmem:[%s4 + $0xe8] sm:$0xff]
    %v2058 = vld [vmem:[%s4 + $0xf0] sm:$0xff]
    %v2059 = vld [vmem:[%s4 + $0xf8] sm:$0xff]
    %2060 = vmatprep.subr.mxu0 0.0
    %2061 = vmatpush1.msra.mxu0 %v2028
    %2062 = vmatprep.subr.mxu0 0.0
    %2063 = vmatpush1.msra.mxu0 %v2029
    %2064 = vmatprep.subr.mxu0 0.0
    %2065 = vmatpush1.msra.mxu0 %v2030
    %2066 = vmatprep.subr.mxu0 0.0
    %2067 = vmatpush1.msra.mxu0 %v2031
    %2068 = vmatprep.subr.mxu0 0.0
    %2069 = vmatpush1.msra.mxu0 %v2032
    %2070 = vmatprep.subr.mxu0 0.0
    %2071 = vmatpush1.msra.mxu0 %v2033
    %2072 = vmatprep.subr.mxu0 0.0
    %2073 = vmatpush1.msra.mxu0 %v2034
    %2074 = vmatprep.subr.mxu0 0.0
    %2075 = vmatpush1.msra.mxu0 %v2035
    %2076 = vmatprep.subr.mxu0 0.0
    %2077 = vmatpush1.msra.mxu0 %v2036
    %2078 = vmatprep.subr.mxu0 0.0
    %2079 = vmatpush1.msra.mxu0 %v2037
    %2080 = vmatprep.subr.mxu0 0.0
    %2081 = vmatpush1.msra.mxu0 %v2038
    %2082 = vmatprep.subr.mxu0 0.0
    %2083 = vmatpush1.msra.mxu0 %v2039
    %2084 = vmatprep.subr.mxu0 0.0
    %2085 = vmatpush1.msra.mxu0 %v2040
    %2086 = vmatprep.subr.mxu0 0.0
    %2087 = vmatpush1.msra.mxu0 %v2041
    %2088 = vmatprep.subr.mxu0 0.0
    %2089 = vmatpush1.msra.mxu0 %v2042
    %2090 = vmatprep.subr.mxu0 0.0
    %2091 = vmatpush1.msra.mxu0 %v2043
    %2092 = vmatprep.subr.mxu0 0.0
    %2093 = vmatpush1.msra.mxu0 %v2044
    %2094 = vmatprep.subr.mxu0 0.0
    %2095 = vmatpush1.msra.mxu0 %v2045
    %2096 = vmatprep.subr.mxu0 0.0
    %2097 = vmatpush1.msra.mxu0 %v2046
    %2098 = vmatprep.subr.mxu0 0.0
    %2099 = vmatpush1.msra.mxu0 %v2047
    %2100 = vmatprep.subr.mxu0 0.0
    %2101 = vmatpush1.msra.mxu0 %v2048
    %2102 = vmatprep.subr.mxu0 0.0
    %2103 = vmatpush1.msra.mxu0 %v2049
    %2104 = vmatprep.subr.mxu0 0.0
    %2105 = vmatpush1.msra.mxu0 %v2050
    %2106 = vmatprep.subr.mxu0 0.0
    %2107 = vmatpush1.msra.mxu0 %v2051
    %2108 = vmatprep.subr.mxu0 0.0
    %2109 = vmatpush1.msra.mxu0 %v2052
    %2110 = vmatprep.subr.mxu0 0.0
    %2111 = vmatpush1.msra.mxu0 %v2053
    %2112 = vmatprep.subr.mxu0 0.0
    %2113 = vmatpush1.msra.mxu0 %v2054
    %2114 = vmatprep.subr.mxu0 0.0
    %2115 = vmatpush1.msra.mxu0 %v2055
    %2116 = vmatprep.subr.mxu0 0.0
    %2117 = vmatpush1.msra.mxu0 %v2056
    %2118 = vmatprep.subr.mxu0 0.0
    %2119 = vmatpush1.msra.mxu0 %v2057
    %2120 = vmatprep.subr.mxu0 0.0
    %2121 = vmatpush1.msra.mxu0 %v2058
    %2122 = vmatprep.subr.mxu0 0.0
    %2123 = vmatpush1.msra.mxu0 %v2059
    %2124 = vmatprep.mubr.f32.mxu0 %v2027
    %2125 = vmatmul.mubr.f32.gmra.mrb[0].mxu0 %v2020
    %v2126 = vpop.f32.mrb[0].mxu0
    %v2127 = vadd.f32 0.0, %v2126
    %v2128 = vpop.f32.mrb[0].mxu0
    %2129 = vdwg.mxu0
    %v2130 = vmul.f32 %v2127, 0.125
    %v2131 = vld [vmem:[%s5] sm:$0xff]
    %v2132 = vld [vmem:[%s5 + $0x8] sm:$0xff]
    %v2133 = vld [vmem:[%s5 + $0x10] sm:$0xff]
    %v2134 = vld [vmem:[%s5 + $0x18] sm:$0xff]
    %v2135 = vld [vmem:[%s5 + $0x20] sm:$0xff]
    %v2136 = vld [vmem:[%s5 + $0x28] sm:$0xff]
    %v2137 = vld [vmem:[%s5 + $0x30] sm:$0xff]
    %v2138 = vld [vmem:[%s5 + $0x38] sm:$0xff]
    %v2139 = vld [vmem:[%s5 + $0x40] sm:$0xff]
    %v2140 = vld [vmem:[%s5 + $0x48] sm:$0xff]
    %v2141 = vld [vmem:[%s5 + $0x50] sm:$0xff]
    %v2142 = vld [vmem:[%s5 + $0x58] sm:$0xff]
    %v2143 = vld [vmem:[%s5 + $0x60] sm:$0xff]
    %v2144 = vld [vmem:[%s5 + $0x68] sm:$0xff]
    %v2145 = vld [vmem:[%s5 + $0x70] sm:$0xff]
    %v2146 = vld [vmem:[%s5 + $0x78] sm:$0xff]
    %vm2147 = vcmask 523264
    %v2149 = vsel %vm2147, %v2130, 0
    %2151 = vmatprep.subr.mxu0 %v2132
    %2152 = vmatpush1.msra.mxu0 %v2131
    %2153 = vmatprep.subr.mxu0 %v2134
    %2154 = vmatpush1.msra.mxu0 %v2133
    %2155 = vmatprep.subr.mxu0 %v2136
    %2156 = vmatpush1.msra.mxu0 %v2135
    %2157 = vmatprep.subr.mxu0 %v2138
    %2158 = vmatpush1.msra.mxu0 %v2137
    %2159 = vmatprep.subr.mxu0 %v2140
    %2160 = vmatpush1.msra.mxu0 %v2139
    %2161 = vmatprep.subr.mxu0 %v2142
    %2162 = vmatpush1.msra.mxu0 %v2141
    %2163 = vmatprep.subr.mxu0 %v2144
    %2164 = vmatpush1.msra.mxu0 %v2143
    %2165 = vmatprep.subr.mxu0 %v2146
    %2166 = vmatpush1.msra.mxu0 %v2145
    %2167 = vmatprep.subr.mxu0 0.0
    %2168 = vmatpush1.msra.mxu0 0.0
    %2169 = vmatprep.subr.mxu0 0.0
    %2170 = vmatpush1.msra.mxu0 0.0
    %2171 = vmatprep.subr.mxu0 0.0
    %2172 = vmatpush1.msra.mxu0 0.0
    %2173 = vmatprep.subr.mxu0 0.0
    %2174 = vmatpush1.msra.mxu0 0.0
    %2175 = vmatprep.subr.mxu0 0.0
    %2176 = vmatpush1.msra.mxu0 0.0
    %2177 = vmatprep.subr.mxu0 0.0
    %2178 = vmatpush1.msra.mxu0 0.0
    %2179 = vmatprep.subr.mxu0 0.0
    %2180 = vmatpush1.msra.mxu0 0.0
    %2181 = vmatprep.subr.mxu0 0.0
    %2182 = vmatpush1.msra.mxu0 0.0
    %2183 = vmatprep.subr.mxu0 0.0
    %2184 = vmatpush1.msra.mxu0 0.0
    %2185 = vmatprep.subr.mxu0 0.0
    %2186 = vmatpush1.msra.mxu0 0.0
    %2187 = vmatprep.subr.mxu0 0.0
    %2188 = vmatpush1.msra.mxu0 0.0
    %2189 = vmatprep.subr.mxu0 0.0
    %2190 = vmatpush1.msra.mxu0 0.0
    %2191 = vmatprep.subr.mxu0 0.0
    %2192 = vmatpush1.msra.mxu0 0.0
    %2193 = vmatprep.subr.mxu0 0.0
    %2194 = vmatpush1.msra.mxu0 0.0
    %2195 = vmatprep.subr.mxu0 0.0
    %2196 = vmatpush1.msra.mxu0 0.0
    %2197 = vmatprep.subr.mxu0 0.0
    %2198 = vmatpush1.msra.mxu0 0.0
    %2199 = vmatprep.subr.mxu0 0.0
    %2200 = vmatpush1.msra.mxu0 0.0
    %2201 = vmatprep.subr.mxu0 0.0
    %2202 = vmatpush1.msra.mxu0 0.0
    %2203 = vmatprep.subr.mxu0 0.0
    %2204 = vmatpush1.msra.mxu0 0.0
    %2205 = vmatprep.subr.mxu0 0.0
    %2206 = vmatpush1.msra.mxu0 0.0
    %2207 = vmatprep.subr.mxu0 0.0
    %2208 = vmatpush1.msra.mxu0 0.0
    %2209 = vmatprep.subr.mxu0 0.0
    %2210 = vmatpush1.msra.mxu0 0.0
    %2211 = vmatprep.subr.mxu0 0.0
    %2212 = vmatpush1.msra.mxu0 0.0
    %2213 = vmatprep.subr.mxu0 0.0
    %2214 = vmatpush1.msra.mxu0 0.0
    %2215 = vmatprep.mubr.f32.mxu0 0.0
    %2216 = vmatmul.mubr.f32.gmra.mrb[0].mxu0 %v2149
    %v2217 = vpop.f32.mrb[0].mxu0
    %v2218 = vadd.f32 0.0, %v2217
    %v2219 = vpop.f32.mrb[0].mxu0
    %v2220 = vadd.f32 0.0, %v2219
    %2221 = vdwg.mxu0
    %v2222 = vlaneseq
    %v2223 = vshrl.u32 %v2222, 7
    %v2224 = vsub.s32 0, %v2223
    %v2225 = vrot.slane %v2218, %v2224
    %v2226 = vlaneseq
    %v2227 = vshrl.u32 %v2226, 7
    %v2228 = vsub.s32 0, %v2227
    %v2229 = vrot.slane %v2220, %v2228
    %v2230 = vsub.f32 %v2007, %v2225
    %v2231 = vsub.f32 %v2009, %v2229
    %v2232 = vmul.f32 %v2230, %v2230
    %v2233 = vmul.f32 %v2231, %v2231
    %v2234 = vsel %vm2013, %v2232, 0.0
    %v2235 = vrot.slane %v2234, 4
    %v2236 = vadd.f32 %v2234, %v2235
    %v2237 = vrot.slane %v2236, 2
    %v2238 = vadd.f32 %v2236, %v2237
    %v2239 = vrot.slane %v2238, 1
    %v2240 = vadd.f32 %v2238, %v2239
    %v2241 = vsel %vm2013, %v2233, 0.0
    %v2242 = vrot.slane %v2241, 4
    %v2243 = vadd.f32 %v2241, %v2242
    %v2244 = vrot.slane %v2243, 2
    %v2245 = vadd.f32 %v2243, %v2244
    %v2246 = vrot.slane %v2245, 1
    %v2247 = vadd.f32 %v2245, %v2246
    %2248 = vmatprep.subr.mxu0 0.0
    %2249 = vmatpush1.msra.mxu0 %v2028
    %2250 = vmatprep.subr.mxu0 0.0
    %2251 = vmatpush1.msra.mxu0 %v2029
    %2252 = vmatprep.subr.mxu0 0.0
    %2253 = vmatpush1.msra.mxu0 %v2030
    %2254 = vmatprep.subr.mxu0 0.0
    %2255 = vmatpush1.msra.mxu0 %v2031
    %2256 = vmatprep.subr.mxu0 0.0
    %2257 = vmatpush1.msra.mxu0 %v2032
    %2258 = vmatprep.subr.mxu0 0.0
    %2259 = vmatpush1.msra.mxu0 %v2033
    %2260 = vmatprep.subr.mxu0 0.0
    %2261 = vmatpush1.msra.mxu0 %v2034
    %2262 = vmatprep.subr.mxu0 0.0
    %2263 = vmatpush1.msra.mxu0 %v2035
    %2264 = vmatprep.subr.mxu0 0.0
    %2265 = vmatpush1.msra.mxu0 %v2036
    %2266 = vmatprep.subr.mxu0 0.0
    %2267 = vmatpush1.msra.mxu0 %v2037
    %2268 = vmatprep.subr.mxu0 0.0
    %2269 = vmatpush1.msra.mxu0 %v2038
    %2270 = vmatprep.subr.mxu0 0.0
    %2271 = vmatpush1.msra.mxu0 %v2039
    %2272 = vmatprep.subr.mxu0 0.0
    %2273 = vmatpush1.msra.mxu0 %v2040
    %2274 = vmatprep.subr.mxu0 0.0
    %2275 = vmatpush1.msra.mxu0 %v2041
    %2276 = vmatprep.subr.mxu0 0.0
    %2277 = vmatpush1.msra.mxu0 %v2042
    %2278 = vmatprep.subr.mxu0 0.0
    %2279 = vmatpush1.msra.mxu0 %v2043
    %2280 = vmatprep.subr.mxu0 0.0
    %2281 = vmatpush1.msra.mxu0 %v2044
    %2282 = vmatprep.subr.mxu0 0.0
    %2283 = vmatpush1.msra.mxu0 %v2045
    %2284 = vmatprep.subr.mxu0 0.0
    %2285 = vmatpush1.msra.mxu0 %v2046
    %2286 = vmatprep.subr.mxu0 0.0
    %2287 = vmatpush1.msra.mxu0 %v2047
    %2288 = vmatprep.subr.mxu0 0.0
    %2289 = vmatpush1.msra.mxu0 %v2048
    %2290 = vmatprep.subr.mxu0 0.0
    %2291 = vmatpush1.msra.mxu0 %v2049
    %2292 = vmatprep.subr.mxu0 0.0
    %2293 = vmatpush1.msra.mxu0 %v2050
    %2294 = vmatprep.subr.mxu0 0.0
    %2295 = vmatpush1.msra.mxu0 %v2051
    %2296 = vmatprep.subr.mxu0 0.0
    %2297 = vmatpush1.msra.mxu0 %v2052
    %2298 = vmatprep.subr.mxu0 0.0
    %2299 = vmatpush1.msra.mxu0 %v2053
    %2300 = vmatprep.subr.mxu0 0.0
    %2301 = vmatpush1.msra.mxu0 %v2054
    %2302 = vmatprep.subr.mxu0 0.0
    %2303 = vmatpush1.msra.mxu0 %v2055
    %2304 = vmatprep.subr.mxu0 0.0
    %2305 = vmatpush1.msra.mxu0 %v2056
    %2306 = vmatprep.subr.mxu0 0.0
    %2307 = vmatpush1.msra.mxu0 %v2057
    %2308 = vmatprep.subr.mxu0 0.0
    %2309 = vmatpush1.msra.mxu0 %v2058
    %2310 = vmatprep.subr.mxu0 0.0
    %2311 = vmatpush1.msra.mxu0 %v2059
    %2312 = vmatprep.mubr.f32.mxu0 %v2247
    %2313 = vmatmul.mubr.f32.gmra.mrb[0].mxu0 %v2240
    %v2314 = vpop.f32.mrb[0].mxu0
    %v2315 = vadd.f32 0.0, %v2314
    %v2316 = vpop.f32.mrb[0].mxu0
    %2317 = vdwg.mxu0
    %v2318 = vmul.f32 %v2315, 0.125
    %v2319 = vld [vmem:[%s2] sm:$0x1]
    %v2320 = vadd.f32 %v2318, 1e-05
    %v2321 = vrsqrt.pop %v2320
    %v2322 = vmul.f32 %v2319, %v2321
    %v2324 = vsel %vm2147, %v2322, 0
    %2326 = vmatprep.subr.mxu0 %v2132
    %2327 = vmatpush1.msra.mxu0 %v2131
    %2328 = vmatprep.subr.mxu0 %v2134
    %2329 = vmatpush1.msra.mxu0 %v2133
    %2330 = vmatprep.subr.mxu0 %v2136
    %2331 = vmatpush1.msra.mxu0 %v2135
    %2332 = vmatprep.subr.mxu0 %v2138
    %2333 = vmatpush1.msra.mxu0 %v2137
    %2334 = vmatprep.subr.mxu0 %v2140
    %2335 = vmatpush1.msra.mxu0 %v2139
    %2336 = vmatprep.subr.mxu0 %v2142
    %2337 = vmatpush1.msra.mxu0 %v2141
    %2338 = vmatprep.subr.mxu0 %v2144
    %2339 = vmatpush1.msra.mxu0 %v2143
    %2340 = vmatprep.subr.mxu0 %v2146
    %2341 = vmatpush1.msra.mxu0 %v2145
    %2342 = vmatprep.subr.mxu0 0.0
    %2343 = vmatpush1.msra.mxu0 0.0
    %2344 = vmatprep.subr.mxu0 0.0
    %2345 = vmatpush1.msra.mxu0 0.0
    %2346 = vmatprep.subr.mxu0 0.0
    %2347 = vmatpush1.msra.mxu0 0.0
    %2348 = vmatprep.subr.mxu0 0.0
    %2349 = vmatpush1.msra.mxu0 0.0
    %2350 = vmatprep.subr.mxu0 0.0
    %2351 = vmatpush1.msra.mxu0 0.0
    %2352 = vmatprep.subr.mxu0 0.0
    %2353 = vmatpush1.msra.mxu0 0.0
    %2354 = vmatprep.subr.mxu0 0.0
    %2355 = vmatpush1.msra.mxu0 0.0
    %2356 = vmatprep.subr.mxu0 0.0
    %2357 = vmatpush1.msra.mxu0 0.0
    %2358 = vmatprep.subr.mxu0 0.0
    %2359 = vmatpush1.msra.mxu0 0.0
    %2360 = vmatprep.subr.mxu0 0.0
    %2361 = vmatpush1.msra.mxu0 0.0
    %2362 = vmatprep.subr.mxu0 0.0
    %2363 = vmatpush1.msra.mxu0 0.0
    %2364 = vmatprep.subr.mxu0 0.0
    %2365 = vmatpush1.msra.mxu0 0.0
    %2366 = vmatprep.subr.mxu0 0.0
    %2367 = vmatpush1.msra.mxu0 0.0
    %2368 = vmatprep.subr.mxu0 0.0
    %2369 = vmatpush1.msra.mxu0 0.0
    %2370 = vmatprep.subr.mxu0 0.0
    %2371 = vmatpush1.msra.mxu0 0.0
    %2372 = vmatprep.subr.mxu0 0.0
    %2373 = vmatpush1.msra.mxu0 0.0
    %2374 = vmatprep.subr.mxu0 0.0
    %2375 = vmatpush1.msra.mxu0 0.0
    %2376 = vmatprep.subr.mxu0 0.0
    %2377 = vmatpush1.msra.mxu0 0.0
    %2378 = vmatprep.subr.mxu0 0.0
    %2379 = vmatpush1.msra.mxu0 0.0
    %2380 = vmatprep.subr.mxu0 0.0
    %2381 = vmatpush1.msra.mxu0 0.0
    %2382 = vmatprep.subr.mxu0 0.0
    %2383 = vmatpush1.msra.mxu0 0.0
    %2384 = vmatprep.subr.mxu0 0.0
    %2385 = vmatpush1.msra.mxu0 0.0
    %2386 = vmatprep.subr.mxu0 0.0
    %2387 = vmatpush1.msra.mxu0 0.0
    %2388 = vmatprep.subr.mxu0 0.0
    %2389 = vmatpush1.msra.mxu0 0.0
    %2390 = vmatprep.mubr.f32.mxu0 0.0
    %2391 = vmatmul.mubr.f32.gmra.mrb[0].mxu0 %v2324
    %v2392 = vpop.f32.mrb[0].mxu0
    %v2393 = vadd.f32 0.0, %v2392
    %v2394 = vpop.f32.mrb[0].mxu0
    %v2395 = vadd.f32 0.0, %v2394
    %2396 = vdwg.mxu0
    %v2397 = vlaneseq
    %v2398 = vshrl.u32 %v2397, 7
    %v2399 = vsub.s32 0, %v2398
    %v2400 = vrot.slane %v2393, %v2399
    %v2401 = vlaneseq
    %v2402 = vshrl.u32 %v2401, 7
    %v2403 = vsub.s32 0, %v2402
    %v2404 = vrot.slane %v2395, %v2403
    %v2405 = vmul.f32 %v2230, %v2400
    %v2406 = vmul.f32 %v2231, %v2404
    %v2407 = vld [vmem:[%s3] sm:$0x1]
    %v2409 = vsel %vm2147, %v2407, 0
    %2411 = vmatprep.subr.mxu0 %v2132
    %2412 = vmatpush1.msra.mxu0 %v2131
    %2413 = vmatprep.subr.mxu0 %v2134
    %2414 = vmatpush1.msra.mxu0 %v2133
    %2415 = vmatprep.subr.mxu0 %v2136
    %2416 = vmatpush1.msra.mxu0 %v2135
    %2417 = vmatprep.subr.mxu0 %v2138
    %2418 = vmatpush1.msra.mxu0 %v2137
    %2419 = vmatprep.subr.mxu0 %v2140
    %2420 = vmatpush1.msra.mxu0 %v2139
    %2421 = vmatprep.subr.mxu0 %v2142
    %2422 = vmatpush1.msra.mxu0 %v2141
    %2423 = vmatprep.subr.mxu0 %v2144
    %2424 = vmatpush1.msra.mxu0 %v2143
    %2425 = vmatprep.subr.mxu0 %v2146
    %2426 = vmatpush1.msra.mxu0 %v2145
    %2427 = vmatprep.subr.mxu0 0.0
    %2428 = vmatpush1.msra.mxu0 0.0
    %2429 = vmatprep.subr.mxu0 0.0
    %2430 = vmatpush1.msra.mxu0 0.0
    %2431 = vmatprep.subr.mxu0 0.0
    %2432 = vmatpush1.msra.mxu0 0.0
    %2433 = vmatprep.subr.mxu0 0.0
    %2434 = vmatpush1.msra.mxu0 0.0
    %2435 = vmatprep.subr.mxu0 0.0
    %2436 = vmatpush1.msra.mxu0 0.0
    %2437 = vmatprep.subr.mxu0 0.0
    %2438 = vmatpush1.msra.mxu0 0.0
    %2439 = vmatprep.subr.mxu0 0.0
    %2440 = vmatpush1.msra.mxu0 0.0
    %2441 = vmatprep.subr.mxu0 0.0
    %2442 = vmatpush1.msra.mxu0 0.0
    %2443 = vmatprep.subr.mxu0 0.0
    %2444 = vmatpush1.msra.mxu0 0.0
    %2445 = vmatprep.subr.mxu0 0.0
    %2446 = vmatpush1.msra.mxu0 0.0
    %2447 = vmatprep.subr.mxu0 0.0
    %2448 = vmatpush1.msra.mxu0 0.0
    %2449 = vmatprep.subr.mxu0 0.0
    %2450 = vmatpush1.msra.mxu0 0.0
    %2451 = vmatprep.subr.mxu0 0.0
    %2452 = vmatpush1.msra.mxu0 0.0
    %2453 = vmatprep.subr.mxu0 0.0
    %2454 = vmatpush1.msra.mxu0 0.0
    %2455 = vmatprep.subr.mxu0 0.0
    %2456 = vmatpush1.msra.mxu0 0.0
    %2457 = vmatprep.subr.mxu0 0.0
    %2458 = vmatpush1.msra.mxu0 0.0
    %2459 = vmatprep.subr.mxu0 0.0
    %2460 = vmatpush1.msra.mxu0 0.0
    %2461 = vmatprep.subr.mxu0 0.0
    %2462 = vmatpush1.msra.mxu0 0.0
    %2463 = vmatprep.subr.mxu0 0.0
    %2464 = vmatpush1.msra.mxu0 0.0
    %2465 = vmatprep.subr.mxu0 0.0
    %2466 = vmatpush1.msra.mxu0 0.0
    %2467 = vmatprep.subr.mxu0 0.0
    %2468 = vmatpush1.msra.mxu0 0.0
    %2469 = vmatprep.subr.mxu0 0.0
    %2470 = vmatpush1.msra.mxu0 0.0
    %2471 = vmatprep.subr.mxu0 0.0
    %2472 = vmatpush1.msra.mxu0 0.0
    %2473 = vmatprep.subr.mxu0 0.0
    %2474 = vmatpush1.msra.mxu0 0.0
    %2475 = vmatprep.mubr.f32.mxu0 0.0
    %2476 = vmatmul.mubr.f32.gmra.mrb[0].mxu0 %v2409
    %v2477 = vpop.f32.mrb[0].mxu0
    %v2478 = vadd.f32 0.0, %v2477
    %v2479 = vpop.f32.mrb[0].mxu0
    %v2480 = vadd.f32 0.0, %v2479
    %2481 = vdwg.mxu0
    %v2482 = vlaneseq
    %v2483 = vshrl.u32 %v2482, 7
    %v2484 = vsub.s32 0, %v2483
    %v2485 = vrot.slane %v2478, %v2484
    %v2486 = vlaneseq
    %v2487 = vshrl.u32 %v2486, 7
    %v2488 = vsub.s32 0, %v2487
    %v2489 = vrot.slane %v2480, %v2488
    %v2490 = vadd.f32 %v2405, %v2485
    %v2491 = vadd.f32 %v2406, %v2489
    %vm2492 = vcmp.ge.f32.partialorder %v2490, 0.0
    %vm2493 = vcmp.ge.f32.partialorder %v2491, 0.0
    %v2494 = vmul.f32 %v2490, 0.01
    %v2495 = vmul.f32 %v2491, 0.01
    %v2496 = vsel %vm2492, %v2490, %v2494
    %v2497 = vsel %vm2493, %v2491, %v2495
    %v2498 = vpack.c.bf16 %v2496, %v2496
    %v2499 = vpack.c.bf16 %v2497, %v2497
    %v2500 = vld [vmem:[%s6] sm:$0xff]
    %v2501 = vld [vmem:[%s6 + $0x8] sm:$0xff]
    %v2502 = vld [vmem:[%s6 + $0x10] sm:$0xf]
    %v2503 = vld [vmem:[%s6 + $0x14] sm:$0xff]
    %v2504 = vld [vmem:[%s6 + $0x1c] sm:$0xff]
    %v2505 = vld [vmem:[%s6 + $0x24] sm:$0xf]
    %v2506 = vld [vmem:[%s6 + $0x28] sm:$0xff]
    %v2507 = vld [vmem:[%s6 + $0x30] sm:$0xff]
    %v2508 = vld [vmem:[%s6 + $0x38] sm:$0xf]
    %v2509 = vld [vmem:[%s6 + $0x3c] sm:$0xff]
    %v2510 = vld [vmem:[%s6 + $0x44] sm:$0xff]
    %v2511 = vld [vmem:[%s6 + $0x4c] sm:$0xf]
    %v2512 = vld [vmem:[%s6 + $0x50] sm:$0xff]
    %v2513 = vld [vmem:[%s6 + $0x58] sm:$0xff]
    %v2514 = vld [vmem:[%s6 + $0x60] sm:$0xf]
    %v2515 = vld [vmem:[%s6 + $0x64] sm:$0xff]
    %v2516 = vld [vmem:[%s6 + $0x6c] sm:$0xff]
    %v2517 = vld [vmem:[%s6 + $0x74] sm:$0xf]
    %v2518 = vld [vmem:[%s6 + $0x78] sm:$0xff]
    %v2519 = vld [vmem:[%s6 + $0x80] sm:$0xff]
    %v2520 = vld [vmem:[%s6 + $0x88] sm:$0xf]
    %v2521 = vld [vmem:[%s6 + $0x8c] sm:$0xff]
    %v2522 = vld [vmem:[%s6 + $0x94] sm:$0xff]
    %v2523 = vld [vmem:[%s6 + $0x9c] sm:$0xf]
    %v2524 = vld [vmem:[%s6 + $0xa0] sm:$0xff]
    %v2525 = vld [vmem:[%s6 + $0xa8] sm:$0xff]
    %v2526 = vld [vmem:[%s6 + $0xb0] sm:$0xf]
    %v2527 = vld [vmem:[%s6 + $0xb4] sm:$0xff]
    %v2528 = vld [vmem:[%s6 + $0xbc] sm:$0xff]
    %v2529 = vld [vmem:[%s6 + $0xc4] sm:$0xf]
    %v2530 = vld [vmem:[%s6 + $0xc8] sm:$0xff]
    %v2531 = vld [vmem:[%s6 + $0xd0] sm:$0xff]
    %v2532 = vld [vmem:[%s6 + $0xd8] sm:$0xf]
    %v2533 = vld [vmem:[%s6 + $0xdc] sm:$0xff]
    %v2534 = vld [vmem:[%s6 + $0xe4] sm:$0xff]
    %v2535 = vld [vmem:[%s6 + $0xec] sm:$0xf]
    %v2536 = vld [vmem:[%s6 + $0xf0] sm:$0xff]
    %v2537 = vld [vmem:[%s6 + $0xf8] sm:$0xff]
    %v2538 = vld [vmem:[%s6 + $0x100] sm:$0xf]
    %v2539 = vld [vmem:[%s6 + $0x104] sm:$0xff]
    %v2540 = vld [vmem:[%s6 + $0x10c] sm:$0xff]
    %v2541 = vld [vmem:[%s6 + $0x114] sm:$0xf]
    %v2542 = vld [vmem:[%s6 + $0x118] sm:$0xff]
    %v2543 = vld [vmem:[%s6 + $0x120] sm:$0xff]
    %v2544 = vld [vmem:[%s6 + $0x128] sm:$0xf]
    %v2545 = vld [vmem:[%s6 + $0x12c] sm:$0xff]
    %v2546 = vld [vmem:[%s6 + $0x134] sm:$0xff]
    %v2547 = vld [vmem:[%s6 + $0x13c] sm:$0xf]
    %v2548 = vld [vmem:[%s6 + $0x140] sm:$0xff]
    %v2549 = vld [vmem:[%s6 + $0x148] sm:$0xff]
    %v2550 = vld [vmem:[%s6 + $0x150] sm:$0xf]
    %v2551 = vld [vmem:[%s6 + $0x154] sm:$0xff]
    %v2552 = vld [vmem:[%s6 + $0x15c] sm:$0xff]
    %v2553 = vld [vmem:[%s6 + $0x164] sm:$0xf]
    %v2554 = vld [vmem:[%s6 + $0x168] sm:$0xff]
    %v2555 = vld [vmem:[%s6 + $0x170] sm:$0xff]
    %v2556 = vld [vmem:[%s6 + $0x178] sm:$0xf]
    %v2557 = vld [vmem:[%s6 + $0x17c] sm:$0xff]
    %v2558 = vld [vmem:[%s6 + $0x184] sm:$0xff]
    %v2559 = vld [vmem:[%s6 + $0x18c] sm:$0xf]
    %v2560 = vld [vmem:[%s6 + $0x190] sm:$0xff]
    %v2561 = vld [vmem:[%s6 + $0x198] sm:$0xff]
    %v2562 = vld [vmem:[%s6 + $0x1a0] sm:$0xf]
    %v2563 = vld [vmem:[%s6 + $0x1a4] sm:$0xff]
    %v2564 = vld [vmem:[%s6 + $0x1ac] sm:$0xff]
    %v2565 = vld [vmem:[%s6 + $0x1b4] sm:$0xf]
    %v2566 = vld [vmem:[%s6 + $0x1b8] sm:$0xff]
    %v2567 = vld [vmem:[%s6 + $0x1c0] sm:$0xff]
    %v2568 = vld [vmem:[%s6 + $0x1c8] sm:$0xf]
    %v2569 = vld [vmem:[%s6 + $0x1cc] sm:$0xff]
    %v2570 = vld [vmem:[%s6 + $0x1d4] sm:$0xff]
    %v2571 = vld [vmem:[%s6 + $0x1dc] sm:$0xf]
    %v2572 = vld [vmem:[%s6 + $0x1e0] sm:$0xff]
    %v2573 = vld [vmem:[%s6 + $0x1e8] sm:$0xff]
    %v2574 = vld [vmem:[%s6 + $0x1f0] sm:$0xf]
    %v2575 = vld [vmem:[%s6 + $0x1f4] sm:$0xff]
    %v2576 = vld [vmem:[%s6 + $0x1fc] sm:$0xff]
    %v2577 = vld [vmem:[%s6 + $0x204] sm:$0xf]
    %v2578 = vld [vmem:[%s6 + $0x208] sm:$0xff]
    %v2579 = vld [vmem:[%s6 + $0x210] sm:$0xff]
    %v2580 = vld [vmem:[%s6 + $0x218] sm:$0xf]
    %v2581 = vld [vmem:[%s6 + $0x21c] sm:$0xff]
    %v2582 = vld [vmem:[%s6 + $0x224] sm:$0xff]
    %v2583 = vld [vmem:[%s6 + $0x22c] sm:$0xf]
    %v2584 = vld [vmem:[%s6 + $0x230] sm:$0xff]
    %v2585 = vld [vmem:[%s6 + $0x238] sm:$0xff]
    %v2586 = vld [vmem:[%s6 + $0x240] sm:$0xf]
    %v2587 = vld [vmem:[%s6 + $0x244] sm:$0xff]
    %v2588 = vld [vmem:[%s6 + $0x24c] sm:$0xff]
    %v2589 = vld [vmem:[%s6 + $0x254] sm:$0xf]
    %v2590 = vld [vmem:[%s6 + $0x258] sm:$0xff]
    %v2591 = vld [vmem:[%s6 + $0x260] sm:$0xff]
    %v2592 = vld [vmem:[%s6 + $0x268] sm:$0xf]
    %v2593 = vld [vmem:[%s6 + $0x26c] sm:$0xff]
    %v2594 = vld [vmem:[%s6 + $0x274] sm:$0xff]
    %v2595 = vld [vmem:[%s6 + $0x27c] sm:$0xf]
    %v2596 = vld [vmem:[%s7] sm:$0x1f]
    %v2598 = vlaneseq
    %v2599 = vshrl.u32 %v2598, 7
    %v2600 = vsub.s32 0, %v2599
    %v2601 = vrot.slane %v2596, %v2600
    %v2602 = vlaneseq
    %v2603 = vshrl.u32 %v2602, 7
    %v2604 = vsub.s32 1, %v2603
    %v2605 = vrot.slane %v2596, %v2604
    %v2606 = vlaneseq
    %v2607 = vshrl.u32 %v2606, 7
    %v2608 = vsub.s32 2, %v2607
    %v2609 = vrot.slane %v2596, %v2608
    %v2610 = vlaneseq
    %v2611 = vshrl.u32 %v2610, 7
    %v2612 = vsub.s32 3, %v2611
    %v2613 = vrot.slane %v2596, %v2612
    %v2614 = vlaneseq
    %v2615 = vshrl.u32 %v2614, 7
    %v2616 = vsub.s32 4, %v2615
    %v2617 = vrot.slane %v2596, %v2616
    %v2719 = vunpack.c.l.b16 %v2500
    %v2720 = vunpack.c.h.b16 %v2500
    %v2721 = vunpack.c.l.b16 %v2501
    %v2722 = vunpack.c.h.b16 %v2501
    %v2723 = vunpack.c.l.b16 %v2502
    %v2724 = vunpack.c.l.b16 %v2503
    %v2725 = vunpack.c.h.b16 %v2503
    %v2726 = vunpack.c.l.b16 %v2504
    %v2727 = vunpack.c.h.b16 %v2504
    %v2728 = vunpack.c.l.b16 %v2505
    %v2729 = vunpack.c.l.b16 %v2506
    %v2730 = vunpack.c.h.b16 %v2506
    %v2731 = vunpack.c.l.b16 %v2507
    %v2732 = vunpack.c.h.b16 %v2507
    %v2733 = vunpack.c.l.b16 %v2508
    %v2734 = vunpack.c.l.b16 %v2509
    %v2735 = vunpack.c.h.b16 %v2509
    %v2736 = vunpack.c.l.b16 %v2510
    %v2737 = vunpack.c.h.b16 %v2510
    %v2738 = vunpack.c.l.b16 %v2511
    %v2739 = vunpack.c.l.b16 %v2512
    %v2740 = vunpack.c.h.b16 %v2512
    %v2741 = vunpack.c.l.b16 %v2513
    %v2742 = vunpack.c.h.b16 %v2513
    %v2743 = vunpack.c.l.b16 %v2514
    %v2744 = vunpack.c.l.b16 %v2515
    %v2745 = vunpack.c.h.b16 %v2515
    %v2746 = vunpack.c.l.b16 %v2516
    %v2747 = vunpack.c.h.b16 %v2516
    %v2748 = vunpack.c.l.b16 %v2517
    %v2749 = vunpack.c.l.b16 %v2518
    %v2750 = vunpack.c.h.b16 %v2518
    %v2751 = vunpack.c.l.b16 %v2519
    %v2752 = vunpack.c.h.b16 %v2519
    %v2753 = vunpack.c.l.b16 %v2520
    %v2754 = vunpack.c.l.b16 %v2521
    %v2755 = vunpack.c.h.b16 %v2521
    %v2756 = vunpack.c.l.b16 %v2522
    %v2757 = vunpack.c.h.b16 %v2522
    %v2758 = vunpack.c.l.b16 %v2523
    %v2759 = vunpack.c.l.b16 %v2524
    %v2760 = vunpack.c.h.b16 %v2524
    %v2761 = vunpack.c.l.b16 %v2525
    %v2762 = vunpack.c.h.b16 %v2525
    %v2763 = vunpack.c.l.b16 %v2526
    %v2764 = vunpack.c.l.b16 %v2527
    %v2765 = vunpack.c.h.b16 %v2527
    %v2766 = vunpack.c.l.b16 %v2528
    %v2767 = vunpack.c.h.b16 %v2528
    %v2768 = vunpack.c.l.b16 %v2529
    %v2769 = vunpack.c.l.b16 %v2530
    %v2770 = vunpack.c.h.b16 %v2530
    %v2771 = vunpack.c.l.b16 %v2531
    %v2772 = vunpack.c.h.b16 %v2531
    %v2773 = vunpack.c.l.b16 %v2532
    %v2774 = vunpack.c.l.b16 %v2533
    %v2775 = vunpack.c.h.b16 %v2533
    %v2776 = vunpack.c.l.b16 %v2534
    %v2777 = vunpack.c.h.b16 %v2534
    %v2778 = vunpack.c.l.b16 %v2535
    %v2779 = vunpack.c.l.b16 %v2536
    %v2780 = vunpack.c.h.b16 %v2536
    %v2781 = vunpack.c.l.b16 %v2537
    %v2782 = vunpack.c.h.b16 %v2537
    %v2783 = vunpack.c.l.b16 %v2538
    %v2784 = vunpack.c.l.b16 %v2539
    %v2785 = vunpack.c.h.b16 %v2539
    %v2786 = vunpack.c.l.b16 %v2540
    %v2787 = vunpack.c.h.b16 %v2540
    %v2788 = vunpack.c.l.b16 %v2541
    %v2789 = vunpack.c.l.b16 %v2542
    %v2790 = vunpack.c.h.b16 %v2542
    %v2791 = vunpack.c.l.b16 %v2543
    %v2792 = vunpack.c.h.b16 %v2543
    %v2793 = vunpack.c.l.b16 %v2544
    %v2794 = vunpack.c.l.b16 %v2545
    %v2795 = vunpack.c.h.b16 %v2545
    %v2796 = vunpack.c.l.b16 %v2546
    %v2797 = vunpack.c.h.b16 %v2546
    %v2798 = vunpack.c.l.b16 %v2547
    %v2799 = vunpack.c.l.b16 %v2548
    %v2800 = vunpack.c.h.b16 %v2548
    %v2801 = vunpack.c.l.b16 %v2549
    %v2802 = vunpack.c.h.b16 %v2549
    %v2803 = vunpack.c.l.b16 %v2550
    %v2804 = vunpack.c.l.b16 %v2551
    %v2805 = vunpack.c.h.b16 %v2551
    %v2806 = vunpack.c.l.b16 %v2552
    %v2807 = vunpack.c.h.b16 %v2552
    %v2808 = vunpack.c.l.b16 %v2553
    %v2809 = vunpack.c.l.b16 %v2554
    %v2810 = vunpack.c.h.b16 %v2554
    %v2811 = vunpack.c.l.b16 %v2555
    %v2812 = vunpack.c.h.b16 %v2555
    %v2813 = vunpack.c.l.b16 %v2556
    %v2814 = vunpack.c.l.b16 %v2557
    %v2815 = vunpack.c.h.b16 %v2557
    %v2816 = vunpack.c.l.b16 %v2558
    %v2817 = vunpack.c.h.b16 %v2558
    %v2818 = vunpack.c.l.b16 %v2559
    %v2819 = vunpack.c.l.b16 %v2560
    %v2820 = vunpack.c.h.b16 %v2560
    %v2821 = vunpack.c.l.b16 %v2561
    %v2822 = vunpack.c.h.b16 %v2561
    %v2823 = vunpack.c.l.b16 %v2562
    %v2824 = vunpack.c.l.b16 %v2563
    %v2825 = vunpack.c.h.b16 %v2563
    %v2826 = vunpack.c.l.b16 %v2564
    %v2827 = vunpack.c.h.b16 %v2564
    %v2828 = vunpack.c.l.b16 %v2565
    %v2829 = vunpack.c.l.b16 %v2566
    %v2830 = vunpack.c.h.b16 %v2566
    %v2831 = vunpack.c.l.b16 %v2567
    %v2832 = vunpack.c.h.b16 %v2567
    %v2833 = vunpack.c.l.b16 %v2568
    %v2834 = vunpack.c.l.b16 %v2569
    %v2835 = vunpack.c.h.b16 %v2569
    %v2836 = vunpack.c.l.b16 %v2570
    %v2837 = vunpack.c.h.b16 %v2570
    %v2838 = vunpack.c.l.b16 %v2571
    %v2839 = vunpack.c.l.b16 %v2572
    %v2840 = vunpack.c.h.b16 %v2572
    %v2841 = vunpack.c.l.b16 %v2573
    %v2842 = vunpack.c.h.b16 %v2573
    %v2843 = vunpack.c.l.b16 %v2574
    %v2844 = vunpack.c.l.b16 %v2575
    %v2845 = vunpack.c.h.b16 %v2575
    %v2846 = vunpack.c.l.b16 %v2576
    %v2847 = vunpack.c.h.b16 %v2576
    %v2848 = vunpack.c.l.b16 %v2577
    %v2849 = vunpack.c.l.b16 %v2578
    %v2850 = vunpack.c.h.b16 %v2578
    %v2851 = vunpack.c.l.b16 %v2579
    %v2852 = vunpack.c.h.b16 %v2579
    %v2853 = vunpack.c.l.b16 %v2580
    %v2854 = vunpack.c.l.b16 %v2581
    %v2855 = vunpack.c.h.b16 %v2581
    %v2856 = vunpack.c.l.b16 %v2582
    %v2857 = vunpack.c.h.b16 %v2582
    %v2858 = vunpack.c.l.b16 %v2583
    %v2859 = vunpack.c.l.b16 %v2584
    %v2860 = vunpack.c.h.b16 %v2584
    %v2861 = vunpack.c.l.b16 %v2585
    %v2862 = vunpack.c.h.b16 %v2585
    %v2863 = vunpack.c.l.b16 %v2586
    %v2864 = vunpack.c.l.b16 %v2587
    %v2865 = vunpack.c.h.b16 %v2587
    %v2866 = vunpack.c.l.b16 %v2588
    %v2867 = vunpack.c.h.b16 %v2588
    %v2868 = vunpack.c.l.b16 %v2589
    %v2869 = vunpack.c.l.b16 %v2590
    %v2870 = vunpack.c.h.b16 %v2590
    %v2871 = vunpack.c.l.b16 %v2591
    %v2872 = vunpack.c.h.b16 %v2591
    %v2873 = vunpack.c.l.b16 %v2592
    %v2874 = vunpack.c.l.b16 %v2593
    %v2875 = vunpack.c.h.b16 %v2593
    %v2876 = vunpack.c.l.b16 %v2594
    %v2877 = vunpack.c.h.b16 %v2594
    %v2878 = vunpack.c.l.b16 %v2595
    %v2879 = vpack.c.b16 %v2724, %v2719
    %v2880 = vpack.c.b16 %v2725, %v2720
    %v2881 = vpack.c.b16 %v2726, %v2721
    %v2882 = vpack.c.b16 %v2727, %v2722
    %v2883 = vpack.c.b16 %v2728, %v2723
    %v2884 = vpack.c.b16 %v2734, %v2729
    %v2885 = vpack.c.b16 %v2735, %v2730
    %v2886 = vpack.c.b16 %v2736, %v2731
    %v2887 = vpack.c.b16 %v2737, %v2732
    %v2888 = vpack.c.b16 %v2738, %v2733
    %v2889 = vpack.c.b16 %v2744, %v2739
    %v2890 = vpack.c.b16 %v2745, %v2740
    %v2891 = vpack.c.b16 %v2746, %v2741
    %v2892 = vpack.c.b16 %v2747, %v2742
    %v2893 = vpack.c.b16 %v2748, %v2743
    %v2894 = vpack.c.b16 %v2754, %v2749
    %v2895 = vpack.c.b16 %v2755, %v2750
    %v2896 = vpack.c.b16 %v2756, %v2751
    %v2897 = vpack.c.b16 %v2757, %v2752
    %v2898 = vpack.c.b16 %v2758, %v2753
    %v2899 = vpack.c.b16 %v2764, %v2759
    %v2900 = vpack.c.b16 %v2765, %v2760
    %v2901 = vpack.c.b16 %v2766, %v2761
    %v2902 = vpack.c.b16 %v2767, %v2762
    %v2903 = vpack.c.b16 %v2768, %v2763
    %v2904 = vpack.c.b16 %v2774, %v2769
    %v2905 = vpack.c.b16 %v2775, %v2770
    %v2906 = vpack.c.b16 %v2776, %v2771
    %v2907 = vpack.c.b16 %v2777, %v2772
    %v2908 = vpack.c.b16 %v2778, %v2773
    %v2909 = vpack.c.b16 %v2784, %v2779
    %v2910 = vpack.c.b16 %v2785, %v2780
    %v2911 = vpack.c.b16 %v2786, %v2781
    %v2912 = vpack.c.b16 %v2787, %v2782
    %v2913 = vpack.c.b16 %v2788, %v2783
    %v2914 = vpack.c.b16 %v2794, %v2789
    %v2915 = vpack.c.b16 %v2795, %v2790
    %v2916 = vpack.c.b16 %v2796, %v2791
    %v2917 = vpack.c.b16 %v2797, %v2792
    %v2918 = vpack.c.b16 %v2798, %v2793
    %v2919 = vpack.c.b16 %v2804, %v2799
    %v2920 = vpack.c.b16 %v2805, %v2800
    %v2921 = vpack.c.b16 %v2806, %v2801
    %v2922 = vpack.c.b16 %v2807, %v2802
    %v2923 = vpack.c.b16 %v2808, %v2803
    %v2924 = vpack.c.b16 %v2814, %v2809
    %v2925 = vpack.c.b16 %v2815, %v2810
    %v2926 = vpack.c.b16 %v2816, %v2811
    %v2927 = vpack.c.b16 %v2817, %v2812
    %v2928 = vpack.c.b16 %v2818, %v2813
    %v2929 = vpack.c.b16 %v2824, %v2819
    %v2930 = vpack.c.b16 %v2825, %v2820
    %v2931 = vpack.c.b16 %v2826, %v2821
    %v2932 = vpack.c.b16 %v2827, %v2822
    %v2933 = vpack.c.b16 %v2828, %v2823
    %v2934 = vpack.c.b16 %v2834, %v2829
    %v2935 = vpack.c.b16 %v2835, %v2830
    %v2936 = vpack.c.b16 %v2836, %v2831
    %v2937 = vpack.c.b16 %v2837, %v2832
    %v2938 = vpack.c.b16 %v2838, %v2833
    %v2939 = vpack.c.b16 %v2844, %v2839
    %v2940 = vpack.c.b16 %v2845, %v2840
    %v2941 = vpack.c.b16 %v2846, %v2841
    %v2942 = vpack.c.b16 %v2847, %v2842
    %v2943 = vpack.c.b16 %v2848, %v2843
    %v2944 = vpack.c.b16 %v2854, %v2849
    %v2945 = vpack.c.b16 %v2855, %v2850
    %v2946 = vpack.c.b16 %v2856, %v2851
    %v2947 = vpack.c.b16 %v2857, %v2852
    %v2948 = vpack.c.b16 %v2858, %v2853
    %v2949 = vpack.c.b16 %v2864, %v2859
    %v2950 = vpack.c.b16 %v2865, %v2860
    %v2951 = vpack.c.b16 %v2866, %v2861
    %v2952 = vpack.c.b16 %v2867, %v2862
    %v2953 = vpack.c.b16 %v2868, %v2863
    %v2954 = vpack.c.b16 %v2874, %v2869
    %v2955 = vpack.c.b16 %v2875, %v2870
    %v2956 = vpack.c.b16 %v2876, %v2871
    %v2957 = vpack.c.b16 %v2877, %v2872
    %v2958 = vpack.c.b16 %v2878, %v2873
    %3039 = vmatprep.subr.bf16.mxu0 %v2880
    %3040 = vmatpush1.bf16.msra.mxu0 %v2879
    %3041 = vmatprep.subr.bf16.mxu0 %v2885
    %3042 = vmatpush1.bf16.msra.mxu0 %v2884
    %3043 = vmatprep.subr.bf16.mxu0 %v2890
    %3044 = vmatpush1.bf16.msra.mxu0 %v2889
    %3045 = vmatprep.subr.bf16.mxu0 %v2895
    %3046 = vmatpush1.bf16.msra.mxu0 %v2894
    %3047 = vmatprep.subr.bf16.mxu0 %v2900
    %3048 = vmatpush1.bf16.msra.mxu0 %v2899
    %3049 = vmatprep.subr.bf16.mxu0 %v2905
    %3050 = vmatpush1.bf16.msra.mxu0 %v2904
    %3051 = vmatprep.subr.bf16.mxu0 %v2910
    %3052 = vmatpush1.bf16.msra.mxu0 %v2909
    %3053 = vmatprep.subr.bf16.mxu0 %v2915
    %3054 = vmatpush1.bf16.msra.mxu0 %v2914
    %3055 = vmatprep.subr.bf16.mxu0 %v2920
    %3056 = vmatpush1.bf16.msra.mxu0 %v2919
    %3057 = vmatprep.subr.bf16.mxu0 %v2925
    %3058 = vmatpush1.bf16.msra.mxu0 %v2924
    %3059 = vmatprep.subr.bf16.mxu0 %v2930
    %3060 = vmatpush1.bf16.msra.mxu0 %v2929
    %3061 = vmatprep.subr.bf16.mxu0 %v2935
    %3062 = vmatpush1.bf16.msra.mxu0 %v2934
    %3063 = vmatprep.subr.bf16.mxu0 %v2940
    %3064 = vmatpush1.bf16.msra.mxu0 %v2939
    %3065 = vmatprep.subr.bf16.mxu0 %v2945
    %3066 = vmatpush1.bf16.msra.mxu0 %v2944
    %3067 = vmatprep.subr.bf16.mxu0 %v2950
    %3068 = vmatpush1.bf16.msra.mxu0 %v2949
    %3069 = vmatprep.subr.bf16.mxu0 %v2955
    %3070 = vmatpush1.bf16.msra.mxu0 %v2954
    %3071 = vmatprep.mubr.bf16.mxu0 %v2499
    %3072 = vmatmul.mubr.bf16.gmra.mrb[0].mxu0 %v2498
    %v3073 = vpop.f32.mrb[0].mxu0
    %v3074 = vadd.f32 %v2601, %v3073
    %v3075 = vpop.f32.mrb[0].mxu0
    %v3076 = vadd.f32 %v2605, %v3075
    %v3077 = vpop.f32.mrb[0].mxu0
    %v3078 = vpop.f32.mrb[0].mxu0
    %3079 = vdwg.mxu0
    %3080 = vmatprep.subr.bf16.mxu0 %v2882
    %3081 = vmatpush1.bf16.msra.mxu0 %v2881
    %3082 = vmatprep.subr.bf16.mxu0 %v2887
    %3083 = vmatpush1.bf16.msra.mxu0 %v2886
    %3084 = vmatprep.subr.bf16.mxu0 %v2892
    %3085 = vmatpush1.bf16.msra.mxu0 %v2891
    %3086 = vmatprep.subr.bf16.mxu0 %v2897
    %3087 = vmatpush1.bf16.msra.mxu0 %v2896
    %3088 = vmatprep.subr.bf16.mxu0 %v2902
    %3089 = vmatpush1.bf16.msra.mxu0 %v2901
    %3090 = vmatprep.subr.bf16.mxu0 %v2907
    %3091 = vmatpush1.bf16.msra.mxu0 %v2906
    %3092 = vmatprep.subr.bf16.mxu0 %v2912
    %3093 = vmatpush1.bf16.msra.mxu0 %v2911
    %3094 = vmatprep.subr.bf16.mxu0 %v2917
    %3095 = vmatpush1.bf16.msra.mxu0 %v2916
    %3096 = vmatprep.subr.bf16.mxu0 %v2922
    %3097 = vmatpush1.bf16.msra.mxu0 %v2921
    %3098 = vmatprep.subr.bf16.mxu0 %v2927
    %3099 = vmatpush1.bf16.msra.mxu0 %v2926
    %3100 = vmatprep.subr.bf16.mxu0 %v2932
    %3101 = vmatpush1.bf16.msra.mxu0 %v2931
    %3102 = vmatprep.subr.bf16.mxu0 %v2937
    %3103 = vmatpush1.bf16.msra.mxu0 %v2936
    %3104 = vmatprep.subr.bf16.mxu0 %v2942
    %3105 = vmatpush1.bf16.msra.mxu0 %v2941
    %3106 = vmatprep.subr.bf16.mxu0 %v2947
    %3107 = vmatpush1.bf16.msra.mxu0 %v2946
    %3108 = vmatprep.subr.bf16.mxu0 %v2952
    %3109 = vmatpush1.bf16.msra.mxu0 %v2951
    %3110 = vmatprep.subr.bf16.mxu0 %v2957
    %3111 = vmatpush1.bf16.msra.mxu0 %v2956
    %3112 = vmatprep.mubr.bf16.mxu0 %v2499
    %3113 = vmatmul.mubr.bf16.gmra.mrb[0].mxu0 %v2498
    %v3114 = vpop.f32.mrb[0].mxu0
    %v3115 = vadd.f32 %v2609, %v3114
    %v3116 = vpop.f32.mrb[0].mxu0
    %v3117 = vadd.f32 %v2613, %v3116
    %v3118 = vpop.f32.mrb[0].mxu0
    %v3119 = vpop.f32.mrb[0].mxu0
    %3120 = vdwg.mxu0
    %3121 = vmatprep.subr.bf16.mxu0 0
    %3122 = vmatpush1.bf16.msra.mxu0 %v2883
    %3123 = vmatprep.subr.bf16.mxu0 0
    %3124 = vmatpush1.bf16.msra.mxu0 %v2888
    %3125 = vmatprep.subr.bf16.mxu0 0
    %3126 = vmatpush1.bf16.msra.mxu0 %v2893
    %3127 = vmatprep.subr.bf16.mxu0 0
    %3128 = vmatpush1.bf16.msra.mxu0 %v2898
    %3129 = vmatprep.subr.bf16.mxu0 0
    %3130 = vmatpush1.bf16.msra.mxu0 %v2903
    %3131 = vmatprep.subr.bf16.mxu0 0
    %3132 = vmatpush1.bf16.msra.mxu0 %v2908
    %3133 = vmatprep.subr.bf16.mxu0 0
    %3134 = vmatpush1.bf16.msra.mxu0 %v2913
    %3135 = vmatprep.subr.bf16.mxu0 0
    %3136 = vmatpush1.bf16.msra.mxu0 %v2918
    %3137 = vmatprep.subr.bf16.mxu0 0
    %3138 = vmatpush1.bf16.msra.mxu0 %v2923
    %3139 = vmatprep.subr.bf16.mxu0 0
    %3140 = vmatpush1.bf16.msra.mxu0 %v2928
    %3141 = vmatprep.subr.bf16.mxu0 0
    %3142 = vmatpush1.bf16.msra.mxu0 %v2933
    %3143 = vmatprep.subr.bf16.mxu0 0
    %3144 = vmatpush1.bf16.msra.mxu0 %v2938
    %3145 = vmatprep.subr.bf16.mxu0 0
    %3146 = vmatpush1.bf16.msra.mxu0 %v2943
    %3147 = vmatprep.subr.bf16.mxu0 0
    %3148 = vmatpush1.bf16.msra.mxu0 %v2948
    %3149 = vmatprep.subr.bf16.mxu0 0
    %3150 = vmatpush1.bf16.msra.mxu0 %v2953
    %3151 = vmatprep.subr.bf16.mxu0 0
    %3152 = vmatpush1.bf16.msra.mxu0 %v2958
    %3153 = vmatprep.mubr.bf16.mxu0 %v2499
    %3154 = vmatmul.mubr.bf16.gmra.mrb[0].mxu0 %v2498
    %v3155 = vpop.f32.mrb[0].mxu0
    %v3156 = vadd.f32 %v2617, %v3155
    %v3157 = vpop.f32.mrb[0].mxu0
    %v3158 = vpop.f32.mrb[0].mxu0
    %v3159 = vpop.f32.mrb[0].mxu0
    %3160 = vdwg.mxu0
    %v3166 = vcombine.low %v3074, %v3076
    %v3167 = vcombine.low %v3115, %v3117
    %v3169 = vunpack.c.l.s4 1983009808
    %v3170 = vunpack.c.0.s8 %v3169
    %v3171 = vlaneseq
    %v3172 = vshrl.u32 %v3171, 7
    %v3173 = vsub.s32 %v3170, %v3172
    %v3174 = vrot.slane %v3166, %v3173
    %v3176 = vunpack.c.l.s4 1983009808
    %v3177 = vunpack.c.0.s8 %v3176
    %v3178 = vlaneseq
    %v3179 = vshrl.u32 %v3178, 7
    %v3180 = vsub.s32 %v3177, %v3179
    %v3181 = vrot.slane %v3167, %v3180
    %v3182 = vcombine.low %v3174, %v3181
    %v3184 = vunpack.c.l.s4 1983009808
    %v3185 = vunpack.c.0.s8 %v3184
    %v3186 = vlaneseq
    %v3187 = vshrl.u32 %v3186, 7
    %v3188 = vsub.s32 %v3185, %v3187
    %v3189 = vrot.slane %v3156, %v3188
    %3192 = vst [vmem:[#allocation2] sm:$0xff] %v3182
    %3193 = vst [vmem:[#allocation2 + $0x8] sm:$0x3] %v3189
    // Predicated region
    $region34: #{net_forward.7} parent=1 // pred_check
      _
    $region35: #{net_forward.7} parent=1 // pred_check_branch
      %3195 = sbr.rel (0) target = $region37
    $region36: #{net_forward.7} parent=1 // pred_region
      %s3197 = ssub.s32 160, 160
      %3198 = vsyncadd [#allocation3], %s3197
      %s3200 = sshll.u32 [#allocation2], 4
      %s3201 = int_to_ptr.vmem [resolvable:$true] %s3200
      %3203 = dma.vmem_to_hbm [thread:$0]  %s3201, 160, %s8, [#allocation3]
    $region37: #{net_forward.7} parent=1 // pred_fallthru
      _
    // Predicated region
    $region38: #{net_forward.7} parent=1 // pred_check
      _
    $region39: #{net_forward.7} parent=1 // pred_check_branch
      %3205 = sbr.rel (0) target = $region41
    $region40: #{net_forward.7} parent=1 // pred_region
      %3206 = dma.done [#allocation3], 160
    $region41: #{net_forward.7} parent=1 // pred_fallthru
      _
    %3207 = vsyncpa [#allocation3], 1

</llo_original>
